<compile_context>
chip_gen: v7x
topology: tpu7x:2x2x1
jax: 0.10.0
libtpu: 0.0.40
codegen_flags: <defaults>
</compile_context>

<pallas_src>
import jax
import jax.numpy as jnp
from jax import lax
from jax.experimental import pallas as pl
from jax.experimental.pallas import tpu as pltpu


def _relu6(x):
    return jnp.minimum(jnp.maximum(x, 0.0), 6.0)


def _round_up(a, b):
    return (a + b - 1) // b * b


# ----------------------------------------------------------------------------
# Fused kernel.  One grid step = one (batch, output-row-tile) block.
#   stage 1: expansion 1x1 (MXU, bf16 operands) + ReLU6 -> z_scr (f32)
#   stage 2: depthwise 3x3 (+ bias, ReLU6) as per-chunk in-register tap sums,
#            stored once per chunk into d_scr (bf16)
#   stage 3: pointwise 1x1 (MXU) + bias (+ residual) -> lane-dense store
# ----------------------------------------------------------------------------
def _make_fused_kernel(*, has_exp, use_res, th_out, stride, wt, wo, w_img,
                       h_img, core_rows, cexp_p, n_tiles):
    zrows = core_rows + 2
    # z_scr row index of the first out-of-image row on the LAST tile.
    bot_zero_start = h_img - (n_tiles - 1) * core_rows + 1

    def kernel(*args):
        if has_exp:
            (xc_ref, xh_ref, we_ref, be_ref, wd_ref, bd_ref, wp_ref, bp_ref,
             o_ref, z_scr, d_scr) = args
        else:
            (xc_ref, xh_ref, wd_ref, bd_ref, wp_ref, bp_ref,
             o_ref, z_scr, d_scr) = args

        t = pl.program_id(1)

        # ---- stage 1: expansion (or identity) into z_scr --------------------
        if has_exp:
            # Column-validity mask (valid image cols live at z cols 1..W).
            col = lax.broadcasted_iota(jnp.int32, (wt, 1), 0)
            colmask = ((col >= 1) & (col <= w_img)).astype(jnp.float32)

            w_e = we_ref[...]
            b_e = be_ref[...]
            zc = jnp.dot(xc_ref[...].reshape(core_rows * wt, -1), w_e,
                         preferred_element_type=jnp.float32)
            zc = _relu6(zc + b_e).reshape(core_rows, wt, cexp_p) * colmask
            z_scr[1:1 + core_rows] = zc

            zh = jnp.dot(xh_ref[...].reshape(2 * wt, -1), w_e,
                         preferred_element_type=jnp.float32)
            zh = _relu6(zh + b_e).reshape(2, wt, cexp_p) * colmask
            z_scr[0:1] = zh[0:1]
            z_scr[1 + core_rows:zrows] = zh[1:2]

            # Rows outside the image must be zero (bias + ReLU6 above makes
            # them nonzero).  Only boundary tiles need it.
            @pl.when(t == 0)
            def _():
                z_scr[0:1] = jnp.zeros((1, wt, cexp_p), jnp.float32)

            @pl.when(t == n_tiles - 1)
            def _():
                z_scr[bot_zero_start:zrows] = jnp.zeros(
                    (zrows - bot_zero_start, wt, cexp_p), jnp.float32)
        else:
            # exp_ratio == 1 -> nn.Identity(); input is already zero-padded.
            z_scr[1:1 + core_rows] = xc_ref[...].astype(jnp.float32)
            z_scr[0:1] = xh_ref[0:1].astype(jnp.float32)
            z_scr[1 + core_rows:zrows] = xh_ref[1:2].astype(jnp.float32)

        # ---- stage 2: depthwise 3x3 + bias + ReLU6 (f32 VPU, 1 store/chunk) --
        w_all = wd_ref[...]            # (9, Cexp_p), hoisted
        b_d = bd_ref[...]              # (1, Cexp_p)

        if stride == 1:
            ch = max(1, min(8, 128 // wo))
            for r0 in range(0, th_out, ch):
                rows = min(ch, th_out - r0)
                acc = None
                for kh in range(3):
                    for kw in range(3):
                        tap = w_all[kh * 3 + kw:kh * 3 + kw + 1, :]
                        term = z_scr[r0 + kh:r0 + kh + rows, kw:kw + wo, :] * tap
                        acc = term if acc is None else acc + term
                d = _relu6(acc + b_d)
                d_scr[r0 * wo:(r0 + rows) * wo] = (
                    d.reshape(rows * wo, cexp_p).astype(d_scr.dtype))
        else:
            # In-kernel ROW stride: one output row at a time, plain integer
            # row indices (no strided vector loads).
            for r in range(th_out):
                acc = None
                for kh in range(3):
                    zr = z_scr[r * stride + kh]          # (wt, Cexp_p)
                    for kw in range(3):
                        tap = w_all[kh * 3 + kw:kh * 3 + kw + 1, :]
                        term = zr[kw:kw + wo, :] * tap
                        acc = term if acc is None else acc + term
                d = _relu6(acc + b_d)
                d_scr[r * wo:(r + 1) * wo] = d.astype(d_scr.dtype)

        # ---- stage 3: pointwise 1x1 (MXU) + bias (+ residual), store --------
        y = jnp.dot(d_scr[...], wp_ref[...], preferred_element_type=jnp.float32)
        y = y + bp_ref[...]
        if use_res:
            res = xc_ref[:, 1:1 + wo, :].astype(jnp.float32)
            y = y + res.reshape(th_out * wo, -1)
        o_ref[...] = y.astype(o_ref.dtype)

    return kernel


# ----------------------------------------------------------------------------
# Wrapper: NCHW -> NHWC (channels on lanes), bf16 transport, core/halo row
# split, channel padding, BN-folded weight padding/casting, pallas_call.
# ----------------------------------------------------------------------------
def bottleneck_block(x_nchw, params, *, stride=1):
    N, Cin, H, W = x_nchw.shape
    Cout = params["w_pw"].shape[1]
    has_exp = params["w_exp"] is not None
    Cexp = params["w_exp"].shape[1] if has_exp else Cin
    use_res = (stride == 1 and Cin == Cout)

    LANE, SUB = 128, 8
    Cin_p = _round_up(Cin, LANE)
    Cexp_p = _round_up(Cexp, LANE)
    Cout_p = _round_up(Cout, LANE)

    H_out = -(-H // stride)
    W_out = -(-W // stride)
    Wo = _round_up(W, SUB)            # kernel output columns (stride-1 columns)
    Wt = _round_up(Wo + 2, SUB)       # z_scr / padded-input width incl. halo

    # VMEM-aware output-row tile size.
    try:
        vmem_cap = int(pltpu.get_tpu_info().vmem_capacity_bytes)
    except Exception:
        vmem_cap = 64 * 1024 * 1024   # v7x per-core VMEM (smallest generation)
    budget = max(8 << 20, int(0.6 * vmem_cap))

    def footprint(th_o):
        cr = th_o * stride
        return (2 * cr * Wt * Cin_p * 2            # core input (bf16, 2x buf)
                + 2 * 2 * Wt * Cin_p * 2           # halo input (bf16, 2x buf)
                + 2 * th_o * Wo * Cout_p * 4       # output (f32, 2x buf)
                + (cr + 2) * Wt * Cexp_p * 4       # z scratch (f32)
                + th_o * Wo * Cexp_p * 2           # depthwise scratch (bf16)
                + 2 * (Cin_p * Cexp_p + Cexp_p * Cout_p) * 2   # matmul weights
                + 2 * (11 * Cexp_p + Cout_p) * 4)  # dw weights + biases

    th_o = min(H_out, max(SUB, 512 // Wo))
    while th_o > SUB and footprint(th_o) > budget:
        th_o -= SUB
    th_o = max(1, min(th_o, H_out))
    core_rows = th_o * stride
    nT = -(-H_out // th_o)
    Hp_rows = nT * core_rows

    # bf16 transport (what the MXU consumes); NCHW -> NHWC.
    x = jnp.transpose(x_nchw, (0, 2, 3, 1)).astype(jnp.bfloat16)

    # Core rows: non-overlapping (core_rows)-row blocks; zero col/channel/row pad.
    xcore = jnp.pad(x, ((0, 0), (0, Hp_rows - H), (1, Wt - 1 - W),
                        (0, Cin_p - Cin)))
    # Halo rows: for each tile, the row just above and just below its core
    # rows (tiny: 2*nT rows total; replaces the old overlapping jnp.stack).
    xh_rows = jnp.pad(x, ((0, 0), (1, Hp_rows - H + 1), (0, 0), (0, 0)))
    top = xh_rows[:, 0:Hp_rows:core_rows]
    bot = xh_rows[:, core_rows + 1::core_rows]
    assert top.shape[1] == nT and bot.shape[1] == nT, (top.shape, bot.shape, nT)
    xhalo = jnp.stack([top, bot], axis=2)                 # (N, nT, 2, W, Cin)
    xhalo = jnp.pad(xhalo, ((0, 0), (0, 0), (0, 0), (1, Wt - 1 - W),
                            (0, Cin_p - Cin)))

    def pad2(a, r, c):
        return jnp.pad(a, ((0, r - a.shape[0]), (0, c - a.shape[1])))

    w_dw = pad2(params["w_dw"], 9, Cexp_p).astype(jnp.float32)
    b_dw = pad2(params["b_dw"], 1, Cexp_p).astype(jnp.float32)
    w_pw = pad2(params["w_pw"], Cexp_p, Cout_p).astype(jnp.bfloat16)
    b_pw = pad2(params["b_pw"], 1, Cout_p).astype(jnp.float32)

    inputs = [xcore, xhalo]
    in_specs = [
        pl.BlockSpec((None, core_rows, Wt, Cin_p), lambda n, t: (n, t, 0, 0)),
        pl.BlockSpec((None, None, 2, Wt, Cin_p), lambda n, t: (n, t, 0, 0, 0)),
    ]
    if has_exp:
        w_exp = pad2(params["w_exp"], Cin_p, Cexp_p).astype(jnp.bfloat16)
        b_exp = pad2(params["b_exp"], 1, Cexp_p).astype(jnp.float32)
        inputs += [w_exp, b_exp]
        in_specs += [pl.BlockSpec((Cin_p, Cexp_p), lambda n, t: (0, 0)),
                     pl.BlockSpec((1, Cexp_p), lambda n, t: (0, 0))]
    inputs += [w_dw, b_dw, w_pw, b_pw]
    in_specs += [pl.BlockSpec((9, Cexp_p), lambda n, t: (0, 0)),
                 pl.BlockSpec((1, Cexp_p), lambda n, t: (0, 0)),
                 pl.BlockSpec((Cexp_p, Cout_p), lambda n, t: (0, 0)),
                 pl.BlockSpec((1, Cout_p), lambda n, t: (0, 0))]
    out_spec = pl.BlockSpec((None, None, th_o * Wo, Cout_p),
                            lambda n, t: (n, t, 0, 0))

    kernel = _make_fused_kernel(has_exp=has_exp, use_res=use_res, th_out=th_o,
                                stride=stride, wt=Wt, wo=Wo, w_img=W, h_img=H,
                                core_rows=core_rows, cexp_p=Cexp_p, n_tiles=nT)

    fp = footprint(th_o)
    vmem_limit = int(min(max(int(1.5 * fp), 32 * 1024 * 1024),
                         max(vmem_cap - 4 * 1024 * 1024, 32 * 1024 * 1024)))

    out = pl.pallas_call(
        kernel,
        out_shape=jax.ShapeDtypeStruct((N, nT, th_o * Wo, Cout_p), jnp.float32),
        grid_spec=pltpu.PrefetchScalarGridSpec(
            num_scalar_prefetch=0,
            grid=(N, nT),
            in_specs=in_specs,
            out_specs=out_spec,
            scratch_shapes=[pltpu.VMEM((core_rows + 2, Wt, Cexp_p), jnp.float32),
                            pltpu.VMEM((th_o * Wo, Cexp_p), jnp.bfloat16)]),
        compiler_params=pltpu.CompilerParams(
            dimension_semantics=("parallel", "parallel"),
            vmem_limit_bytes=vmem_limit),
    )(*inputs)

    y = out.reshape(N, nT, th_o, Wo, Cout_p).reshape(N, nT * th_o, Wo, Cout_p)
    y = y[:, :H_out, :W, :Cout]
    if stride != 1:
        # Rows are already strided in-kernel; columns are decimated here (exact).
        # TODO(synk): stride the depthwise columns inside the kernel as well.
        y = y[:, :, ::stride, :]
    # nn.Dropout2d(p=0.0) / eval mode -> identity.
    return jnp.transpose(y, (0, 3, 1, 2))          # back to NCHW, f32


# ----------------------------------------------------------------------------
# Deterministic parameter init (BN folded into conv weights/biases).
# ----------------------------------------------------------------------------
def init_params(key, inplanes, outplanes, exp_ratio, eps=1e-5):
    cexp = int(inplanes * exp_ratio)
    keys = jax.random.split(key, 15)

    def bn_fold(kg, kb, km, kv, c):
        gamma = 1.0 + 0.1 * jax.random.normal(kg, (c,), jnp.float32)
        beta = 0.1 * jax.random.normal(kb, (c,), jnp.float32)
        mean = 0.1 * jax.random.normal(km, (c,), jnp.float32)
        var = 0.5 + jnp.abs(jax.random.normal(kv, (c,), jnp.float32))
        scale = gamma * lax.rsqrt(var + eps)
        shift = beta - mean * scale
        return scale, shift

    params = {}
    if exp_ratio > 1:
        w = 0.3 * jax.random.normal(keys[0], (inplanes, cexp), jnp.float32)
        s, b = bn_fold(keys[1], keys[2], keys[3], keys[4], cexp)
        params["w_exp"] = w * s[None, :]
        params["b_exp"] = b[None, :]
    else:
        params["w_exp"] = None
        params["b_exp"] = None

    w = 0.3 * jax.random.normal(keys[5], (9, cexp), jnp.float32)   # (3*3, Cexp)
    s, b = bn_fold(keys[6], keys[7], keys[8], keys[9], cexp)
    params["w_dw"] = w * s[None, :]
    params["b_dw"] = b[None, :]

    w = 0.3 * jax.random.normal(keys[10], (cexp, outplanes), jnp.float32)
    s, b = bn_fold(keys[11], keys[12], keys[13], keys[14], outplanes)
    params["w_pw"] = w * s[None, :]
    params["b_pw"] = b[None, :]
    return params


# ----------------------------------------------------------------------------
# Pure-JAX reference mirroring the kernel's precision choices (bf16 input
# transport, bf16 MXU operands with f32 accumulation, f32 elementwise).
# ----------------------------------------------------------------------------
def reference(x_nchw, params, stride):
    dn = ("NHWC", "HWIO", "NHWC")
    x = jnp.transpose(x_nchw, (0, 2, 3, 1))
    xq = x.astype(jnp.bfloat16).astype(jnp.float32)
    z = xq
    if params["w_exp"] is not None:
        z = jnp.einsum("nhwc,cd->nhwd", xq.astype(jnp.bfloat16),
                       params["w_exp"].astype(jnp.bfloat16),
                       preferred_element_type=jnp.float32)
        z = _relu6(z + params["b_exp"][0])
    cexp = z.shape[-1]
    wdw = params["w_dw"].reshape(3, 3, 1, cexp)
    d = lax.conv_general_dilated(z, wdw, (stride, stride), ((1, 1), (1, 1)),
                                 dimension_numbers=dn, feature_group_count=cexp)
    d = _relu6(d + params["b_dw"][0])
    y = jnp.einsum("nhwc,cd->nhwd", d.astype(jnp.bfloat16),
                   params["w_pw"].astype(jnp.bfloat16),
                   preferred_element_type=jnp.float32)
    y = y + params["b_pw"][0]
    if stride == 1 and x.shape[-1] == y.shape[-1]:
        y = xq + y
    return jnp.transpose(y, (0, 3, 1, 2))


if __name__ == "__main__":
    key = jax.random.PRNGKey(0)
    kx, kp, kp2 = jax.random.split(key, 3)

    N, Cin, H, W = 2, 4, 16, 16
    x = jax.random.normal(kx, (N, Cin, H, W), jnp.float32)

    # Test 1: BottleneckBlock(inplanes=4, outplanes=4, stride=1, exp_ratio=4)
    params = init_params(kp, Cin, 4, 4)
    out = jax.block_until_ready(bottleneck_block(x, params, stride=1))
    ref = reference(x, params, 1)
    assert out.shape == (N, 4, H, W), out.shape
    err = float(jnp.max(jnp.abs(out - ref)))
    assert jnp.allclose(out, ref, atol=1e-2, rtol=1e-2), err

    # Test 2: stride-2, exp_ratio=1 (identity expansion), channel-changing.
    params2 = init_params(kp2, Cin, 8, 1)
    out2 = jax.block_until_ready(bottleneck_block(x, params2, stride=2))
    ref2 = reference(x, params2, 2)
    assert out2.shape == (N, 8, H // 2, W // 2), out2.shape
    err2 = float(jnp.max(jnp.abs(out2 - ref2)))
    assert jnp.allclose(out2, ref2, atol=1e-2, rtol=1e-2), err2

    print("KERNEL_OK")
</pallas_src>

<mosaic_0001>
module attributes {stable_mosaic.version = 11 : i64} {
  func.func @kernel(%arg0: i32, %arg1: i32, %arg2: memref<1x16x24x128xbf16, #tpu.memory_space<vmem>>, %arg3: memref<1x1x2x24x128xbf16, #tpu.memory_space<vmem>>, %arg4: memref<128x128xbf16, #tpu.memory_space<vmem>>, %arg5: memref<1x128xf32, #tpu.memory_space<vmem>>, %arg6: memref<9x128xf32, #tpu.memory_space<vmem>>, %arg7: memref<1x128xf32, #tpu.memory_space<vmem>>, %arg8: memref<128x128xbf16, #tpu.memory_space<vmem>>, %arg9: memref<1x128xf32, #tpu.memory_space<vmem>>, %arg10: memref<1x1x256x128xf32, #tpu.memory_space<vmem>>, %arg11: memref<18x24x128xf32, #tpu.memory_space<vmem>>, %arg12: memref<256x128xbf16, #tpu.memory_space<vmem>>) attributes {dimension_semantics = [#tpu.dimension_semantics<parallel>, #tpu.dimension_semantics<parallel>], iteration_bounds = array<i64: 2, 1>, scalar_prefetch = 0 : i64, scratch_operands = 2 : i64, tpu.core_type = #tpu.core_type<tc>, window_params = [{transform_indices = @transform_0, window_bounds = array<i64: 1, 16, 24, 128>}, {transform_indices = @transform_1, window_bounds = array<i64: 1, 1, 2, 24, 128>}, {pipeline_mode = #tpu.pipeline_mode<synchronous>, transform_indices = @transform_2, window_bounds = array<i64: 128, 128>}, {pipeline_mode = #tpu.pipeline_mode<synchronous>, transform_indices = @transform_3, window_bounds = array<i64: 1, 128>}, {pipeline_mode = #tpu.pipeline_mode<synchronous>, transform_indices = @transform_4, window_bounds = array<i64: 9, 128>}, {pipeline_mode = #tpu.pipeline_mode<synchronous>, transform_indices = @transform_5, window_bounds = array<i64: 1, 128>}, {pipeline_mode = #tpu.pipeline_mode<synchronous>, transform_indices = @transform_6, window_bounds = array<i64: 128, 128>}, {pipeline_mode = #tpu.pipeline_mode<synchronous>, transform_indices = @transform_7, window_bounds = array<i64: 1, 128>}, {transform_indices = @transform_8, window_bounds = array<i64: 1, 1, 256, 128>}]} {
    %0 = tpu.iota {dimensions = array<i32: 0>} : vector<24x1xi32>
    %c1_i32 = arith.constant 1 : i32
    %1 = vector.broadcast %c1_i32 : i32 to vector<24x1xi32>
    %2 = arith.cmpi sge, %0, %1 : vector<24x1xi32>
    %c16_i32 = arith.constant 16 : i32
    %3 = vector.broadcast %c16_i32 : i32 to vector<24x1xi32>
    %4 = arith.cmpi sle, %0, %3 : vector<24x1xi32>
    %5 = arith.andi %2, %4 : vector<24x1xi1>
    %6 = arith.extui %5 : vector<24x1xi1> to vector<24x1xi32>
    %7 = arith.sitofp %6 : vector<24x1xi32> to vector<24x1xf32>
    %c0 = arith.constant 0 : index
    %c0_0 = arith.constant 0 : index
    %8 = vector.load %arg4[%c0, %c0_0] : memref<128x128xbf16, #tpu.memory_space<vmem>>, vector<128x128xbf16>
    %c0_1 = arith.constant 0 : index
    %c0_2 = arith.constant 0 : index
    %9 = vector.load %arg5[%c0_1, %c0_2] : memref<1x128xf32, #tpu.memory_space<vmem>>, vector<1x128xf32>
    %c0_3 = arith.constant 0 : index
    %c0_4 = arith.constant 0 : index
    %c0_5 = arith.constant 0 : index
    %c0_6 = arith.constant 0 : index
    %10 = vector.load %arg2[%c0_3, %c0_4, %c0_5, %c0_6] : memref<1x16x24x128xbf16, #tpu.memory_space<vmem>>, vector<1x16x24x128xbf16>
    %11 = vector.shape_cast %10 : vector<1x16x24x128xbf16> to vector<16x24x128xbf16>
    %12 = vector.shape_cast %11 : vector<16x24x128xbf16> to vector<384x128xbf16>
    %cst = arith.constant dense<0.000000e+00> : vector<384x128xf32>
    %13 = tpu.matmul %12, %8, %cst {dimension_numbers = #tpu.dot_dimension_numbers<[1], [0], [0], [1], [0, 0, 1, 1], [], []>} : vector<384x128xbf16>, vector<128x128xbf16>, vector<384x128xf32> -> vector<384x128xf32>
    %14 = vector.broadcast %9 : vector<1x128xf32> to vector<384x128xf32>
    %15 = arith.addf %13, %14 : vector<384x128xf32>
    %cst_7 = arith.constant 0.000000e+00 : f32
    %16 = vector.broadcast %cst_7 : f32 to vector<384x128xf32>
    %17 = arith.maximumf %15, %16 : vector<384x128xf32>
    %cst_8 = arith.constant 6.000000e+00 : f32
    %18 = vector.broadcast %cst_8 : f32 to vector<384x128xf32>
    %19 = arith.minimumf %17, %18 : vector<384x128xf32>
    %20 = vector.shape_cast %19 : vector<384x128xf32> to vector<16x24x128xf32>
    %21 = vector.shape_cast %7 : vector<24x1xf32> to vector<1x24x1xf32>
    %22 = vector.broadcast %21 : vector<1x24x1xf32> to vector<16x24x128xf32>
    %23 = arith.mulf %20, %22 : vector<16x24x128xf32>
    %c1 = arith.constant 1 : index
    %c0_9 = arith.constant 0 : index
    %c0_10 = arith.constant 0 : index
    %24 = vector.load %arg11[%c1, %c0_9, %c0_10] : memref<18x24x128xf32, #tpu.memory_space<vmem>>, vector<16x24x128xf32>
    tpu.vector_store %arg11[%c1, %c0_9, %c0_10], %23 {strides = array<i32>} : memref<18x24x128xf32, #tpu.memory_space<vmem>>, vector<16x24x128xf32>,
    %c0_11 = arith.constant 0 : index
    %c0_12 = arith.constant 0 : index
    %c0_13 = arith.constant 0 : index
    %c0_14 = arith.constant 0 : index
    %c0_15 = arith.constant 0 : index
    %25 = vector.load %arg3[%c0_11, %c0_12, %c0_13, %c0_14, %c0_15] : memref<1x1x2x24x128xbf16, #tpu.memory_space<vmem>>, vector<1x1x2x24x128xbf16>
    %26 = vector.shape_cast %25 : vector<1x1x2x24x128xbf16> to vector<2x24x128xbf16>
    %27 = vector.shape_cast %26 : vector<2x24x128xbf16> to vector<48x128xbf16>
    %cst_16 = arith.constant dense<0.000000e+00> : vector<48x128xf32>
    %28 = tpu.matmul %27, %8, %cst_16 {dimension_numbers = #tpu.dot_dimension_numbers<[1], [0], [0], [1], [0, 0, 1, 1], [], []>} : vector<48x128xbf16>, vector<128x128xbf16>, vector<48x128xf32> -> vector<48x128xf32>
    %29 = vector.broadcast %9 : vector<1x128xf32> to vector<48x128xf32>
    %30 = arith.addf %28, %29 : vector<48x128xf32>
    %cst_17 = arith.constant 0.000000e+00 : f32
    %31 = vector.broadcast %cst_17 : f32 to vector<48x128xf32>
    %32 = arith.maximumf %30, %31 : vector<48x128xf32>
    %cst_18 = arith.constant 6.000000e+00 : f32
    %33 = vector.broadcast %cst_18 : f32 to vector<48x128xf32>
    %34 = arith.minimumf %32, %33 : vector<48x128xf32>
    %35 = vector.shape_cast %34 : vector<48x128xf32> to vector<2x24x128xf32>
    %36 = vector.shape_cast %7 : vector<24x1xf32> to vector<1x24x1xf32>
    %37 = vector.broadcast %36 : vector<1x24x1xf32> to vector<2x24x128xf32>
    %38 = arith.mulf %35, %37 : vector<2x24x128xf32>
    %39 = vector.extract_strided_slice %38 {offsets = [0, 0, 0], sizes = [1, 24, 128], strides = [1, 1, 1]} : vector<2x24x128xf32> to vector<1x24x128xf32>
    %c0_19 = arith.constant 0 : index
    %c0_20 = arith.constant 0 : index
    %c0_21 = arith.constant 0 : index
    %40 = vector.load %arg11[%c0_19, %c0_20, %c0_21] : memref<18x24x128xf32, #tpu.memory_space<vmem>>, vector<1x24x128xf32>
    tpu.vector_store %arg11[%c0_19, %c0_20, %c0_21], %39 {strides = array<i32>} : memref<18x24x128xf32, #tpu.memory_space<vmem>>, vector<1x24x128xf32>,
    %41 = vector.extract_strided_slice %38 {offsets = [1, 0, 0], sizes = [1, 24, 128], strides = [1, 1, 1]} : vector<2x24x128xf32> to vector<1x24x128xf32>
    %c17 = arith.constant 17 : index
    %c0_22 = arith.constant 0 : index
    %c0_23 = arith.constant 0 : index
    %42 = vector.load %arg11[%c17, %c0_22, %c0_23] : memref<18x24x128xf32, #tpu.memory_space<vmem>>, vector<1x24x128xf32>
    tpu.vector_store %arg11[%c17, %c0_22, %c0_23], %41 {strides = array<i32>} : memref<18x24x128xf32, #tpu.memory_space<vmem>>, vector<1x24x128xf32>,
    %c0_i32 = arith.constant 0 : i32
    %43 = arith.cmpi eq, %arg1, %c0_i32 : i32
    %44 = arith.extui %43 : i1 to i32
    %c0_i32_24 = arith.constant 0 : i32
    %45 = arith.cmpi ne, %44, %c0_i32_24 : i32
    scf.if %45 {
      %cst_103 = arith.constant 0.000000e+00 : f32
      %191 = vector.broadcast %cst_103 : f32 to vector<1x24x128xf32>
      %c0_104 = arith.constant 0 : index
      %c0_105 = arith.constant 0 : index
      %c0_106 = arith.constant 0 : index
      %192 = vector.load %arg11[%c0_104, %c0_105, %c0_106] : memref<18x24x128xf32, #tpu.memory_space<vmem>>, vector<1x24x128xf32>
      tpu.vector_store %arg11[%c0_104, %c0_105, %c0_106], %191 {strides = array<i32>} : memref<18x24x128xf32, #tpu.memory_space<vmem>>, vector<1x24x128xf32>,
    } else {
    }
    %c0_i32_25 = arith.constant 0 : i32
    %46 = arith.cmpi eq, %arg1, %c0_i32_25 : i32
    %47 = arith.extui %46 : i1 to i32
    %c0_i32_26 = arith.constant 0 : i32
    %48 = arith.cmpi ne, %47, %c0_i32_26 : i32
    scf.if %48 {
      %cst_103 = arith.constant 0.000000e+00 : f32
      %191 = vector.broadcast %cst_103 : f32 to vector<1x24x128xf32>
      %c17_104 = arith.constant 17 : index
      %c0_105 = arith.constant 0 : index
      %c0_106 = arith.constant 0 : index
      %192 = vector.load %arg11[%c17_104, %c0_105, %c0_106] : memref<18x24x128xf32, #tpu.memory_space<vmem>>, vector<1x24x128xf32>
      tpu.vector_store %arg11[%c17_104, %c0_105, %c0_106], %191 {strides = array<i32>} : memref<18x24x128xf32, #tpu.memory_space<vmem>>, vector<1x24x128xf32>,
    } else {
    }
    %c0_27 = arith.constant 0 : index
    %c0_28 = arith.constant 0 : index
    %49 = vector.load %arg6[%c0_27, %c0_28] : memref<9x128xf32, #tpu.memory_space<vmem>>, vector<9x128xf32>
    %c0_29 = arith.constant 0 : index
    %c0_30 = arith.constant 0 : index
    %50 = vector.load %arg7[%c0_29, %c0_30] : memref<1x128xf32, #tpu.memory_space<vmem>>, vector<1x128xf32>
    %51 = vector.extract_strided_slice %49 {offsets = [0, 0], sizes = [1, 128], strides = [1, 1]} : vector<9x128xf32> to vector<1x128xf32>
    %c0_31 = arith.constant 0 : index
    %c0_32 = arith.constant 0 : index
    %c0_33 = arith.constant 0 : index
    %52 = vector.load %arg11[%c0_31, %c0_32, %c0_33] : memref<18x24x128xf32, #tpu.memory_space<vmem>>, vector<8x16x128xf32>
    %53 = vector.shape_cast %51 : vector<1x128xf32> to vector<1x1x128xf32>
    %54 = vector.broadcast %53 : vector<1x1x128xf32> to vector<8x16x128xf32>
    %55 = arith.mulf %52, %54 : vector<8x16x128xf32>
    %56 = vector.extract_strided_slice %49 {offsets = [1, 0], sizes = [1, 128], strides = [1, 1]} : vector<9x128xf32> to vector<1x128xf32>
    %c0_34 = arith.constant 0 : index
    %c1_35 = arith.constant 1 : index
    %c0_36 = arith.constant 0 : index
    %57 = vector.load %arg11[%c0_34, %c1_35, %c0_36] : memref<18x24x128xf32, #tpu.memory_space<vmem>>, vector<8x16x128xf32>
    %58 = vector.shape_cast %56 : vector<1x128xf32> to vector<1x1x128xf32>
    %59 = vector.broadcast %58 : vector<1x1x128xf32> to vector<8x16x128xf32>
    %60 = arith.mulf %57, %59 : vector<8x16x128xf32>
    %61 = arith.addf %55, %60 : vector<8x16x128xf32>
    %62 = vector.extract_strided_slice %49 {offsets = [2, 0], sizes = [1, 128], strides = [1, 1]} : vector<9x128xf32> to vector<1x128xf32>
    %c0_37 = arith.constant 0 : index
    %c2 = arith.constant 2 : index
    %c0_38 = arith.constant 0 : index
    %63 = vector.load %arg11[%c0_37, %c2, %c0_38] : memref<18x24x128xf32, #tpu.memory_space<vmem>>, vector<8x16x128xf32>
    %64 = vector.shape_cast %62 : vector<1x128xf32> to vector<1x1x128xf32>
    %65 = vector.broadcast %64 : vector<1x1x128xf32> to vector<8x16x128xf32>
    %66 = arith.mulf %63, %65 : vector<8x16x128xf32>
    %67 = arith.addf %61, %66 : vector<8x16x128xf32>
    %68 = vector.extract_strided_slice %49 {offsets = [3, 0], sizes = [1, 128], strides = [1, 1]} : vector<9x128xf32> to vector<1x128xf32>
    %c1_39 = arith.constant 1 : index
    %c0_40 = arith.constant 0 : index
    %c0_41 = arith.constant 0 : index
    %69 = vector.load %arg11[%c1_39, %c0_40, %c0_41] : memref<18x24x128xf32, #tpu.memory_space<vmem>>, vector<8x16x128xf32>
    %70 = vector.shape_cast %68 : vector<1x128xf32> to vector<1x1x128xf32>
    %71 = vector.broadcast %70 : vector<1x1x128xf32> to vector<8x16x128xf32>
    %72 = arith.mulf %69, %71 : vector<8x16x128xf32>
    %73 = arith.addf %67, %72 : vector<8x16x128xf32>
    %74 = vector.extract_strided_slice %49 {offsets = [4, 0], sizes = [1, 128], strides = [1, 1]} : vector<9x128xf32> to vector<1x128xf32>
    %c1_42 = arith.constant 1 : index
    %c1_43 = arith.constant 1 : index
    %c0_44 = arith.constant 0 : index
    %75 = vector.load %arg11[%c1_42, %c1_43, %c0_44] : memref<18x24x128xf32, #tpu.memory_space<vmem>>, vector<8x16x128xf32>
    %76 = vector.shape_cast %74 : vector<1x128xf32> to vector<1x1x128xf32>
    %77 = vector.broadcast %76 : vector<1x1x128xf32> to vector<8x16x128xf32>
    %78 = arith.mulf %75, %77 : vector<8x16x128xf32>
    %79 = arith.addf %73, %78 : vector<8x16x128xf32>
    %80 = vector.extract_strided_slice %49 {offsets = [5, 0], sizes = [1, 128], strides = [1, 1]} : vector<9x128xf32> to vector<1x128xf32>
    %c1_45 = arith.constant 1 : index
    %c2_46 = arith.constant 2 : index
    %c0_47 = arith.constant 0 : index
    %81 = vector.load %arg11[%c1_45, %c2_46, %c0_47] : memref<18x24x128xf32, #tpu.memory_space<vmem>>, vector<8x16x128xf32>
    %82 = vector.shape_cast %80 : vector<1x128xf32> to vector<1x1x128xf32>
    %83 = vector.broadcast %82 : vector<1x1x128xf32> to vector<8x16x128xf32>
    %84 = arith.mulf %81, %83 : vector<8x16x128xf32>
    %85 = arith.addf %79, %84 : vector<8x16x128xf32>
    %86 = vector.extract_strided_slice %49 {offsets = [6, 0], sizes = [1, 128], strides = [1, 1]} : vector<9x128xf32> to vector<1x128xf32>
    %c2_48 = arith.constant 2 : index
    %c0_49 = arith.constant 0 : index
    %c0_50 = arith.constant 0 : index
    %87 = vector.load %arg11[%c2_48, %c0_49, %c0_50] : memref<18x24x128xf32, #tpu.memory_space<vmem>>, vector<8x16x128xf32>
    %88 = vector.shape_cast %86 : vector<1x128xf32> to vector<1x1x128xf32>
    %89 = vector.broadcast %88 : vector<1x1x128xf32> to vector<8x16x128xf32>
    %90 = arith.mulf %87, %89 : vector<8x16x128xf32>
    %91 = arith.addf %85, %90 : vector<8x16x128xf32>
    %92 = vector.extract_strided_slice %49 {offsets = [7, 0], sizes = [1, 128], strides = [1, 1]} : vector<9x128xf32> to vector<1x128xf32>
    %c2_51 = arith.constant 2 : index
    %c1_52 = arith.constant 1 : index
    %c0_53 = arith.constant 0 : index
    %93 = vector.load %arg11[%c2_51, %c1_52, %c0_53] : memref<18x24x128xf32, #tpu.memory_space<vmem>>, vector<8x16x128xf32>
    %94 = vector.shape_cast %92 : vector<1x128xf32> to vector<1x1x128xf32>
    %95 = vector.broadcast %94 : vector<1x1x128xf32> to vector<8x16x128xf32>
    %96 = arith.mulf %93, %95 : vector<8x16x128xf32>
    %97 = arith.addf %91, %96 : vector<8x16x128xf32>
    %98 = vector.extract_strided_slice %49 {offsets = [8, 0], sizes = [1, 128], strides = [1, 1]} : vector<9x128xf32> to vector<1x128xf32>
    %c2_54 = arith.constant 2 : index
    %c2_55 = arith.constant 2 : index
    %c0_56 = arith.constant 0 : index
    %99 = vector.load %arg11[%c2_54, %c2_55, %c0_56] : memref<18x24x128xf32, #tpu.memory_space<vmem>>, vector<8x16x128xf32>
    %100 = vector.shape_cast %98 : vector<1x128xf32> to vector<1x1x128xf32>
    %101 = vector.broadcast %100 : vector<1x1x128xf32> to vector<8x16x128xf32>
    %102 = arith.mulf %99, %101 : vector<8x16x128xf32>
    %103 = arith.addf %97, %102 : vector<8x16x128xf32>
    %104 = vector.shape_cast %50 : vector<1x128xf32> to vector<1x1x128xf32>
    %105 = vector.broadcast %104 : vector<1x1x128xf32> to vector<8x16x128xf32>
    %106 = arith.addf %103, %105 : vector<8x16x128xf32>
    %cst_57 = arith.constant 0.000000e+00 : f32
    %107 = vector.broadcast %cst_57 : f32 to vector<8x16x128xf32>
    %108 = arith.maximumf %106, %107 : vector<8x16x128xf32>
    %cst_58 = arith.constant 6.000000e+00 : f32
    %109 = vector.broadcast %cst_58 : f32 to vector<8x16x128xf32>
    %110 = arith.minimumf %108, %109 : vector<8x16x128xf32>
    %111 = vector.shape_cast %110 : vector<8x16x128xf32> to vector<128x128xf32>
    %112 = arith.truncf %111 : vector<128x128xf32> to vector<128x128xbf16>
    %c0_59 = arith.constant 0 : index
    %c0_60 = arith.constant 0 : index
    %113 = vector.load %arg12[%c0_59, %c0_60] : memref<256x128xbf16, #tpu.memory_space<vmem>>, vector<128x128xbf16>
    tpu.vector_store %arg12[%c0_59, %c0_60], %112 {strides = array<i32>} : memref<256x128xbf16, #tpu.memory_space<vmem>>, vector<128x128xbf16>,
    %114 = vector.extract_strided_slice %49 {offsets = [0, 0], sizes = [1, 128], strides = [1, 1]} : vector<9x128xf32> to vector<1x128xf32>
    %c8 = arith.constant 8 : index
    %c0_61 = arith.constant 0 : index
    %c0_62 = arith.constant 0 : index
    %115 = vector.load %arg11[%c8, %c0_61, %c0_62] : memref<18x24x128xf32, #tpu.memory_space<vmem>>, vector<8x16x128xf32>
    %116 = vector.shape_cast %114 : vector<1x128xf32> to vector<1x1x128xf32>
    %117 = vector.broadcast %116 : vector<1x1x128xf32> to vector<8x16x128xf32>
    %118 = arith.mulf %115, %117 : vector<8x16x128xf32>
    %119 = vector.extract_strided_slice %49 {offsets = [1, 0], sizes = [1, 128], strides = [1, 1]} : vector<9x128xf32> to vector<1x128xf32>
    %c8_63 = arith.constant 8 : index
    %c1_64 = arith.constant 1 : index
    %c0_65 = arith.constant 0 : index
    %120 = vector.load %arg11[%c8_63, %c1_64, %c0_65] : memref<18x24x128xf32, #tpu.memory_space<vmem>>, vector<8x16x128xf32>
    %121 = vector.shape_cast %119 : vector<1x128xf32> to vector<1x1x128xf32>
    %122 = vector.broadcast %121 : vector<1x1x128xf32> to vector<8x16x128xf32>
    %123 = arith.mulf %120, %122 : vector<8x16x128xf32>
    %124 = arith.addf %118, %123 : vector<8x16x128xf32>
    %125 = vector.extract_strided_slice %49 {offsets = [2, 0], sizes = [1, 128], strides = [1, 1]} : vector<9x128xf32> to vector<1x128xf32>
    %c8_66 = arith.constant 8 : index
    %c2_67 = arith.constant 2 : index
    %c0_68 = arith.constant 0 : index
    %126 = vector.load %arg11[%c8_66, %c2_67, %c0_68] : memref<18x24x128xf32, #tpu.memory_space<vmem>>, vector<8x16x128xf32>
    %127 = vector.shape_cast %125 : vector<1x128xf32> to vector<1x1x128xf32>
    %128 = vector.broadcast %127 : vector<1x1x128xf32> to vector<8x16x128xf32>
    %129 = arith.mulf %126, %128 : vector<8x16x128xf32>
    %130 = arith.addf %124, %129 : vector<8x16x128xf32>
    %131 = vector.extract_strided_slice %49 {offsets = [3, 0], sizes = [1, 128], strides = [1, 1]} : vector<9x128xf32> to vector<1x128xf32>
    %c9 = arith.constant 9 : index
    %c0_69 = arith.constant 0 : index
    %c0_70 = arith.constant 0 : index
    %132 = vector.load %arg11[%c9, %c0_69, %c0_70] : memref<18x24x128xf32, #tpu.memory_space<vmem>>, vector<8x16x128xf32>
    %133 = vector.shape_cast %131 : vector<1x128xf32> to vector<1x1x128xf32>
    %134 = vector.broadcast %133 : vector<1x1x128xf32> to vector<8x16x128xf32>
    %135 = arith.mulf %132, %134 : vector<8x16x128xf32>
    %136 = arith.addf %130, %135 : vector<8x16x128xf32>
    %137 = vector.extract_strided_slice %49 {offsets = [4, 0], sizes = [1, 128], strides = [1, 1]} : vector<9x128xf32> to vector<1x128xf32>
    %c9_71 = arith.constant 9 : index
    %c1_72 = arith.constant 1 : index
    %c0_73 = arith.constant 0 : index
    %138 = vector.load %arg11[%c9_71, %c1_72, %c0_73] : memref<18x24x128xf32, #tpu.memory_space<vmem>>, vector<8x16x128xf32>
    %139 = vector.shape_cast %137 : vector<1x128xf32> to vector<1x1x128xf32>
    %140 = vector.broadcast %139 : vector<1x1x128xf32> to vector<8x16x128xf32>
    %141 = arith.mulf %138, %140 : vector<8x16x128xf32>
    %142 = arith.addf %136, %141 : vector<8x16x128xf32>
    %143 = vector.extract_strided_slice %49 {offsets = [5, 0], sizes = [1, 128], strides = [1, 1]} : vector<9x128xf32> to vector<1x128xf32>
    %c9_74 = arith.constant 9 : index
    %c2_75 = arith.constant 2 : index
    %c0_76 = arith.constant 0 : index
    %144 = vector.load %arg11[%c9_74, %c2_75, %c0_76] : memref<18x24x128xf32, #tpu.memory_space<vmem>>, vector<8x16x128xf32>
    %145 = vector.shape_cast %143 : vector<1x128xf32> to vector<1x1x128xf32>
    %146 = vector.broadcast %145 : vector<1x1x128xf32> to vector<8x16x128xf32>
    %147 = arith.mulf %144, %146 : vector<8x16x128xf32>
    %148 = arith.addf %142, %147 : vector<8x16x128xf32>
    %149 = vector.extract_strided_slice %49 {offsets = [6, 0], sizes = [1, 128], strides = [1, 1]} : vector<9x128xf32> to vector<1x128xf32>
    %c10 = arith.constant 10 : index
    %c0_77 = arith.constant 0 : index
    %c0_78 = arith.constant 0 : index
    %150 = vector.load %arg11[%c10, %c0_77, %c0_78] : memref<18x24x128xf32, #tpu.memory_space<vmem>>, vector<8x16x128xf32>
    %151 = vector.shape_cast %149 : vector<1x128xf32> to vector<1x1x128xf32>
    %152 = vector.broadcast %151 : vector<1x1x128xf32> to vector<8x16x128xf32>
    %153 = arith.mulf %150, %152 : vector<8x16x128xf32>
    %154 = arith.addf %148, %153 : vector<8x16x128xf32>
    %155 = vector.extract_strided_slice %49 {offsets = [7, 0], sizes = [1, 128], strides = [1, 1]} : vector<9x128xf32> to vector<1x128xf32>
    %c10_79 = arith.constant 10 : index
    %c1_80 = arith.constant 1 : index
    %c0_81 = arith.constant 0 : index
    %156 = vector.load %arg11[%c10_79, %c1_80, %c0_81] : memref<18x24x128xf32, #tpu.memory_space<vmem>>, vector<8x16x128xf32>
    %157 = vector.shape_cast %155 : vector<1x128xf32> to vector<1x1x128xf32>
    %158 = vector.broadcast %157 : vector<1x1x128xf32> to vector<8x16x128xf32>
    %159 = arith.mulf %156, %158 : vector<8x16x128xf32>
    %160 = arith.addf %154, %159 : vector<8x16x128xf32>
    %161 = vector.extract_strided_slice %49 {offsets = [8, 0], sizes = [1, 128], strides = [1, 1]} : vector<9x128xf32> to vector<1x128xf32>
    %c10_82 = arith.constant 10 : index
    %c2_83 = arith.constant 2 : index
    %c0_84 = arith.constant 0 : index
    %162 = vector.load %arg11[%c10_82, %c2_83, %c0_84] : memref<18x24x128xf32, #tpu.memory_space<vmem>>, vector<8x16x128xf32>
    %163 = vector.shape_cast %161 : vector<1x128xf32> to vector<1x1x128xf32>
    %164 = vector.broadcast %163 : vector<1x1x128xf32> to vector<8x16x128xf32>
    %165 = arith.mulf %162, %164 : vector<8x16x128xf32>
    %166 = arith.addf %160, %165 : vector<8x16x128xf32>
    %167 = vector.shape_cast %50 : vector<1x128xf32> to vector<1x1x128xf32>
    %168 = vector.broadcast %167 : vector<1x1x128xf32> to vector<8x16x128xf32>
    %169 = arith.addf %166, %168 : vector<8x16x128xf32>
    %cst_85 = arith.constant 0.000000e+00 : f32
    %170 = vector.broadcast %cst_85 : f32 to vector<8x16x128xf32>
    %171 = arith.maximumf %169, %170 : vector<8x16x128xf32>
    %cst_86 = arith.constant 6.000000e+00 : f32
    %172 = vector.broadcast %cst_86 : f32 to vector<8x16x128xf32>
    %173 = arith.minimumf %171, %172 : vector<8x16x128xf32>
    %174 = vector.shape_cast %173 : vector<8x16x128xf32> to vector<128x128xf32>
    %175 = arith.truncf %174 : vector<128x128xf32> to vector<128x128xbf16>
    %c128 = arith.constant 128 : index
    %c0_87 = arith.constant 0 : index
    %176 = vector.load %arg12[%c128, %c0_87] : memref<256x128xbf16, #tpu.memory_space<vmem>>, vector<128x128xbf16>
    tpu.vector_store %arg12[%c128, %c0_87], %175 {strides = array<i32>} : memref<256x128xbf16, #tpu.memory_space<vmem>>, vector<128x128xbf16>,
    %c0_88 = arith.constant 0 : index
    %c0_89 = arith.constant 0 : index
    %177 = vector.load %arg12[%c0_88, %c0_89] : memref<256x128xbf16, #tpu.memory_space<vmem>>, vector<256x128xbf16>
    %c0_90 = arith.constant 0 : index
    %c0_91 = arith.constant 0 : index
    %178 = vector.load %arg8[%c0_90, %c0_91] : memref<128x128xbf16, #tpu.memory_space<vmem>>, vector<128x128xbf16>
    %cst_92 = arith.constant dense<0.000000e+00> : vector<256x128xf32>
    %179 = tpu.matmul %177, %178, %cst_92 {dimension_numbers = #tpu.dot_dimension_numbers<[1], [0], [0], [1], [0, 0, 1, 1], [], []>} : vector<256x128xbf16>, vector<128x128xbf16>, vector<256x128xf32> -> vector<256x128xf32>
    %c0_93 = arith.constant 0 : index
    %c0_94 = arith.constant 0 : index
    %180 = vector.load %arg9[%c0_93, %c0_94] : memref<1x128xf32, #tpu.memory_space<vmem>>, vector<1x128xf32>
    %181 = vector.broadcast %180 : vector<1x128xf32> to vector<256x128xf32>
    %182 = arith.addf %179, %181 : vector<256x128xf32>
    %c0_95 = arith.constant 0 : index
    %c0_96 = arith.constant 0 : index
    %c1_97 = arith.constant 1 : index
    %c0_98 = arith.constant 0 : index
    %183 = vector.load %arg2[%c0_95, %c0_96, %c1_97, %c0_98] : memref<1x16x24x128xbf16, #tpu.memory_space<vmem>>, vector<1x16x16x128xbf16>
    %184 = vector.shape_cast %183 : vector<1x16x16x128xbf16> to vector<16x16x128xbf16>
    %185 = arith.extf %184 : vector<16x16x128xbf16> to vector<16x16x128xf32>
    %186 = vector.shape_cast %185 : vector<16x16x128xf32> to vector<256x128xf32>
    %187 = arith.addf %182, %186 : vector<256x128xf32>
    %c0_99 = arith.constant 0 : index
    %c0_100 = arith.constant 0 : index
    %c0_101 = arith.constant 0 : index
    %c0_102 = arith.constant 0 : index
    %188 = vector.load %arg10[%c0_99, %c0_100, %c0_101, %c0_102] : memref<1x1x256x128xf32, #tpu.memory_space<vmem>>, vector<1x1x256x128xf32>
    %189 = vector.shape_cast %188 : vector<1x1x256x128xf32> to vector<256x128xf32>
    %190 = vector.shape_cast %187 : vector<256x128xf32> to vector<1x1x256x128xf32>
    tpu.vector_store %arg10[%c0_99, %c0_100, %c0_101, %c0_102], %190 {strides = array<i32>} : memref<1x1x256x128xf32, #tpu.memory_space<vmem>>, vector<1x1x256x128xf32>,
    return
  }
  func.func @transform_0(%arg0: i32, %arg1: i32) -> (i32, i32, i32, i32) {
    %c0_i32 = arith.constant 0 : i32
    %c0_i32_0 = arith.constant 0 : i32
    %c0_i32_1 = arith.constant 0 : i32
    return %arg0, %arg1, %c0_i32, %c0_i32_0 : i32, i32, i32, i32
  }
  func.func @transform_1(%arg0: i32, %arg1: i32) -> (i32, i32, i32, i32, i32) {
    %c0_i32 = arith.constant 0 : i32
    %c0_i32_0 = arith.constant 0 : i32
    %c0_i32_1 = arith.constant 0 : i32
    %c0_i32_2 = arith.constant 0 : i32
    return %arg0, %arg1, %c0_i32, %c0_i32_0, %c0_i32_1 : i32, i32, i32, i32, i32
  }
  func.func @transform_2(%arg0: i32, %arg1: i32) -> (i32, i32) {
    %c0_i32 = arith.constant 0 : i32
    %c0_i32_0 = arith.constant 0 : i32
    %c0_i32_1 = arith.constant 0 : i32
    return %c0_i32, %c0_i32_0 : i32, i32
  }
  func.func @transform_3(%arg0: i32, %arg1: i32) -> (i32, i32) {
    %c0_i32 = arith.constant 0 : i32
    %c0_i32_0 = arith.constant 0 : i32
    %c0_i32_1 = arith.constant 0 : i32
    return %c0_i32, %c0_i32_0 : i32, i32
  }
  func.func @transform_4(%arg0: i32, %arg1: i32) -> (i32, i32) {
    %c0_i32 = arith.constant 0 : i32
    %c0_i32_0 = arith.constant 0 : i32
    %c0_i32_1 = arith.constant 0 : i32
    return %c0_i32, %c0_i32_0 : i32, i32
  }
  func.func @transform_5(%arg0: i32, %arg1: i32) -> (i32, i32) {
    %c0_i32 = arith.constant 0 : i32
    %c0_i32_0 = arith.constant 0 : i32
    %c0_i32_1 = arith.constant 0 : i32
    return %c0_i32, %c0_i32_0 : i32, i32
  }
  func.func @transform_6(%arg0: i32, %arg1: i32) -> (i32, i32) {
    %c0_i32 = arith.constant 0 : i32
    %c0_i32_0 = arith.constant 0 : i32
    %c0_i32_1 = arith.constant 0 : i32
    return %c0_i32, %c0_i32_0 : i32, i32
  }
  func.func @transform_7(%arg0: i32, %arg1: i32) -> (i32, i32) {
    %c0_i32 = arith.constant 0 : i32
    %c0_i32_0 = arith.constant 0 : i32
    %c0_i32_1 = arith.constant 0 : i32
    return %c0_i32, %c0_i32_0 : i32, i32
  }
  func.func @transform_8(%arg0: i32, %arg1: i32) -> (i32, i32, i32, i32) {
    %c0_i32 = arith.constant 0 : i32
    %c0_i32_0 = arith.constant 0 : i32
    %c0_i32_1 = arith.constant 0 : i32
    return %arg0, %arg1, %c0_i32, %c0_i32_0 : i32, i32, i32, i32
  }
}

</mosaic_0001>

<llo_original>
// kernel: tpu_custom_call.1
$region0: #{tpu_custom_call.1}
  #allocation0 [shape = 'u32[]', space=smem, size = 0x4, offset = 0x4, fixed_abs, tag = 'smem constant byte address 0x4 - core index']
  #allocation1 [shape = 'u32[144,128]{1,0:T(1,128)}', space=vmem, size = 0x12000, scoped, tag = 'internal scratch']
  #allocation2 [shape = 'f32[18,24,128]{2,1,0:T(8,128)}', space=vmem, size = 0x36000, scoped, tag = 'scratch operand']
  #allocation3 [shape = 'bf16[256,128]{1,0:T(16,128)(2,1)}', space=vmem, size = 0x10000, scoped, tag = 'scratch operand']
  %s0 = inlined_call_operand.hbm [shape: bf16[2,16,24,128], index: 0, kind: input, shape index: {}]
  %s1 = inlined_call_operand.hbm [shape: bf16[2,1,2,24,128], index: 1, kind: input, shape index: {}]
  %s2 = inlined_call_operand.hbm [shape: bf16[128,128], index: 2, kind: input, shape index: {}]
  %s3 = inlined_call_operand.vmem [shape: f32[1,128], index: 3, kind: input, shape index: {}]
  %s4 = inlined_call_operand.hbm [shape: f32[9,128], index: 4, kind: input, shape index: {}]
  %s5 = inlined_call_operand.vmem [shape: f32[1,128], index: 5, kind: input, shape index: {}]
  %s6 = inlined_call_operand.hbm [shape: bf16[128,128], index: 6, kind: input, shape index: {}]
  %s7 = inlined_call_operand.vmem [shape: f32[1,128], index: 7, kind: input, shape index: {}]
  %s8 = inlined_call_operand.hbm [shape: f32[2,1,256,128], index: 8, kind: output, shape index: {}]
  %s9 = sld [smem:[#allocation0]]
  $region89: #{tpu_custom_call.1} parent=0
    _
  %s11 = ssub.s32 1, %s9
  %s12 = scalar_select 0, %s11, %s9
  $region1: #{tpu_custom_call.1} parent=0
    #allocation4 [shape = 'u8[196608]{0}', space=vmem, size = 0x30000, scoped, tag = 'input window, operand 0']
    #allocation5 [shape = 's32[2]{0}', space=sflag, size = 0x8, scoped, tag = 'scoped memory for tpu_custom_call.1']
    #allocation6 [shape = 's32[2]{0}', space=sflag, size = 0x8, scoped, tag = 'scoped memory for tpu_custom_call.1']
    #allocation7 [shape = 'u8[24576]{0}', space=vmem, size = 0x6000, scoped, tag = 'input window, operand 1']
    #allocation8 [shape = 's32[2]{0}', space=sflag, size = 0x8, scoped, tag = 'scoped memory for tpu_custom_call.1']
    #allocation9 [shape = 'u8[32768]{0}', space=vmem, size = 0x8000, scoped, tag = 'input window, operand 2, single buffered']
    #allocation10 [shape = 'u8[8192]{0}', space=vmem, size = 0x2000, scoped, tag = 'input window, operand 4, single buffered']
    #allocation11 [shape = 's32[1]{0}', space=sflag, size = 0x4, scoped, tag = 'scoped memory for tpu_custom_call.1']
    #allocation12 [shape = 'u8[32768]{0}', space=vmem, size = 0x8000, scoped, tag = 'input window, operand 6, single buffered']
    #allocation13 [shape = 'u8[262144]{0}', space=vmem, size = 0x40000, scoped, tag = 'output window, operand 0']
    %13 = vsyncpa [#allocation5], 0
    %s14 = scalar_lea.sflag [#allocation5], 1
    %15 = vsyncpa %s14, 0
    %16 = vsyncpa [#allocation8], 0
    %s17 = scalar_lea.sflag [#allocation8], 1
    %18 = vsyncpa %s17, 0
    %19 = vsyncpa [#allocation11], 0
    %20 = vsyncpa [#allocation6], 0
    %s21 = scalar_lea.sflag [#allocation6], 1
    %22 = vsyncpa %s21, 0
    loop: start=0, step=1, limit=4
    $region2: #{tpu_custom_call.1} parent=1 // loop_pre_header
      _
    $region3: #{tpu_custom_call.1} parent=1 // loop_header
      %s24 = sphi 0, %s28
      %p25 = scmp.ge.s32.totalorder %s24, 4
      %s31 = sphi 0, %s43
      %s32 = sphi 0, %s39
      %s33 = sphi 0, %s31
      %s34 = sphi 0, %s32
      %s35 = sphi 0, %s33
      %s36 = sphi 0, %s34
      %s48 = sphi 0, %s50
      %s51 = sphi 0, %s48
      %s52 = sphi 0, %s51
      %s68 = sphi 0, %s52
      %s76 = sphi 0, %s78
      %s79 = sphi 0, %s76
      %s80 = sphi 0, %s79
      %s96 = sphi 0, %s80
      %s100 = sphi 0, %s100
      %s102 = sphi 0, %s100
      %s103 = sphi 0, %s102
      %s117 = sphi 0, %s103
      %s121 = sphi 0, %s121
      %s123 = sphi 0, %s121
      %s124 = sphi 0, %s123
      %s138 = sphi 0, %s124
      %s142 = sphi 0, %s142
      %s144 = sphi 0, %s142
      %s145 = sphi 0, %s144
      %s159 = sphi 0, %s145
      %s163 = sphi 0, %s163
      %s165 = sphi 0, %s163
      %s166 = sphi 0, %s165
      %s180 = sphi 0, %s166
      %s184 = sphi 0, %s184
      %s186 = sphi 0, %s184
      %s187 = sphi 0, %s186
      %s201 = sphi 0, %s187
      %s205 = sphi 0, %s205
      %s207 = sphi 0, %s205
      %s208 = sphi 0, %s207
      %s222 = sphi 0, %s208
      %s230 = sphi 0, %s232
      %s233 = sphi 0, %s230
      %s234 = sphi 0, %s233
      %s250 = sphi 0, %s234
    $region4: #{tpu_custom_call.1} parent=1 // loop_header_branch
      %27 = sbr.rel (%p25) target = $region8
    $region5: #{tpu_custom_call.1} parent=1 // loop_body
      %s29 = ssub.s32 %s24, 1
      %s30 = ssub.s32 %s24, 2
      %s37 = sadd.s32 1, %s32
      %p38 = scmp.ge.s32.totalorder %s37, 1
      %s39 = scalar_select %p38, 0, %s37
      %s40 = sadd.s32 1, %s31
      %s41 = scalar_select %p38, %s40, %s31
      %p42 = scmp.ge.s32.totalorder %s41, 2
      %s43 = scalar_select %p42, 0, %s41
      %s44 = ssub.s32 %s31, %s43
      %s45 = ssub.s32 %s32, %s39
      %s46 = sor.u32 %s44, %s45
      %p47 = scmp.eq.s32.totalorder %s46, 0
      %s49 = sadd.s32 %s48, 1
      %s50 = scalar_select %p47, %s48, %s49
      %p53 = pneg %p47
      %p54 = scmp.eq.s32.totalorder %s24, 1
      %p55 = por %p53, %p54
      %p56 = scmp.ne.s32.totalorder %s48, %s51
      %p57 = scmp.eq.s32.totalorder %s24, 0
      %p58 = por %p56, %p57
      %p59 = scmp.ne.s32.totalorder %s48, %s51
      %p60 = scmp.eq.s32.totalorder %s29, 1
      %p61 = por %p59, %p60
      %p62 = scmp.ne.s32.totalorder %s51, %s52
      %p63 = scmp.eq.s32.totalorder %s29, 0
      %p64 = por %p62, %p63
      %p65 = scmp.ne.s32.totalorder %s51, %s52
      %p66 = scmp.eq.s32.totalorder %s30, 1
      %p67 = por %p65, %p66
      %p69 = scmp.ne.s32.totalorder %s52, %s68
      %p70 = scmp.eq.s32.totalorder %s30, 0
      %p71 = por %p69, %p70
      %s72 = ssub.s32 %s31, %s43
      %s73 = ssub.s32 %s32, %s39
      %s74 = sor.u32 %s72, %s73
      %p75 = scmp.eq.s32.totalorder %s74, 0
      %s77 = sadd.s32 %s76, 1
      %s78 = scalar_select %p75, %s76, %s77
      %p81 = pneg %p75
      %p82 = scmp.eq.s32.totalorder %s24, 1
      %p83 = por %p81, %p82
      %p84 = scmp.ne.s32.totalorder %s76, %s79
      %p85 = scmp.eq.s32.totalorder %s24, 0
      %p86 = por %p84, %p85
      %p87 = scmp.ne.s32.totalorder %s76, %s79
      %p88 = scmp.eq.s32.totalorder %s29, 1
      %p89 = por %p87, %p88
      %p90 = scmp.ne.s32.totalorder %s79, %s80
      %p91 = scmp.eq.s32.totalorder %s29, 0
      %p92 = por %p90, %p91
      %p93 = scmp.ne.s32.totalorder %s79, %s80
      %p94 = scmp.eq.s32.totalorder %s30, 1
      %p95 = por %p93, %p94
      %p97 = scmp.ne.s32.totalorder %s80, %s96
      %p98 = scmp.eq.s32.totalorder %s30, 0
      %p99 = por %p97, %p98
      %s101 = sadd.s32 %s100, 1
      %p104 = scmp.eq.s32.totalorder %s24, 1
      %p105 = scmp.ne.s32.totalorder %s100, %s102
      %p106 = scmp.eq.s32.totalorder %s24, 0
      %p107 = por %p105, %p106
      %p108 = scmp.ne.s32.totalorder %s100, %s102
      %p109 = scmp.eq.s32.totalorder %s29, 1
      %p110 = por %p108, %p109
      %p111 = scmp.ne.s32.totalorder %s102, %s103
      %p112 = scmp.eq.s32.totalorder %s29, 0
      %p113 = por %p111, %p112
      %p114 = scmp.ne.s32.totalorder %s102, %s103
      %p115 = scmp.eq.s32.totalorder %s30, 1
      %p116 = por %p114, %p115
      %p118 = scmp.ne.s32.totalorder %s103, %s117
      %p119 = scmp.eq.s32.totalorder %s30, 0
      %p120 = por %p118, %p119
      %s122 = sadd.s32 %s121, 1
      %p125 = scmp.eq.s32.totalorder %s24, 1
      %p126 = scmp.ne.s32.totalorder %s121, %s123
      %p127 = scmp.eq.s32.totalorder %s24, 0
      %p128 = por %p126, %p127
      %p129 = scmp.ne.s32.totalorder %s121, %s123
      %p130 = scmp.eq.s32.totalorder %s29, 1
      %p131 = por %p129, %p130
      %p132 = scmp.ne.s32.totalorder %s123, %s124
      %p133 = scmp.eq.s32.totalorder %s29, 0
      %p134 = por %p132, %p133
      %p135 = scmp.ne.s32.totalorder %s123, %s124
      %p136 = scmp.eq.s32.totalorder %s30, 1
      %p137 = por %p135, %p136
      %p139 = scmp.ne.s32.totalorder %s124, %s138
      %p140 = scmp.eq.s32.totalorder %s30, 0
      %p141 = por %p139, %p140
      %s143 = sadd.s32 %s142, 1
      %p146 = scmp.eq.s32.totalorder %s24, 1
      %p147 = scmp.ne.s32.totalorder %s142, %s144
      %p148 = scmp.eq.s32.totalorder %s24, 0
      %p149 = por %p147, %p148
      %p150 = scmp.ne.s32.totalorder %s142, %s144
      %p151 = scmp.eq.s32.totalorder %s29, 1
      %p152 = por %p150, %p151
      %p153 = scmp.ne.s32.totalorder %s144, %s145
      %p154 = scmp.eq.s32.totalorder %s29, 0
      %p155 = por %p153, %p154
      %p156 = scmp.ne.s32.totalorder %s144, %s145
      %p157 = scmp.eq.s32.totalorder %s30, 1
      %p158 = por %p156, %p157
      %p160 = scmp.ne.s32.totalorder %s145, %s159
      %p161 = scmp.eq.s32.totalorder %s30, 0
      %p162 = por %p160, %p161
      %s164 = sadd.s32 %s163, 1
      %p167 = scmp.eq.s32.totalorder %s24, 1
      %p168 = scmp.ne.s32.totalorder %s163, %s165
      %p169 = scmp.eq.s32.totalorder %s24, 0
      %p170 = por %p168, %p169
      %p171 = scmp.ne.s32.totalorder %s163, %s165
      %p172 = scmp.eq.s32.totalorder %s29, 1
      %p173 = por %p171, %p172
      %p174 = scmp.ne.s32.totalorder %s165, %s166
      %p175 = scmp.eq.s32.totalorder %s29, 0
      %p176 = por %p174, %p175
      %p177 = scmp.ne.s32.totalorder %s165, %s166
      %p178 = scmp.eq.s32.totalorder %s30, 1
      %p179 = por %p177, %p178
      %p181 = scmp.ne.s32.totalorder %s166, %s180
      %p182 = scmp.eq.s32.totalorder %s30, 0
      %p183 = por %p181, %p182
      %s185 = sadd.s32 %s184, 1
      %p188 = scmp.eq.s32.totalorder %s24, 1
      %p189 = scmp.ne.s32.totalorder %s184, %s186
      %p190 = scmp.eq.s32.totalorder %s24, 0
      %p191 = por %p189, %p190
      %p192 = scmp.ne.s32.totalorder %s184, %s186
      %p193 = scmp.eq.s32.totalorder %s29, 1
      %p194 = por %p192, %p193
      %p195 = scmp.ne.s32.totalorder %s186, %s187
      %p196 = scmp.eq.s32.totalorder %s29, 0
      %p197 = por %p195, %p196
      %p198 = scmp.ne.s32.totalorder %s186, %s187
      %p199 = scmp.eq.s32.totalorder %s30, 1
      %p200 = por %p198, %p199
      %p202 = scmp.ne.s32.totalorder %s187, %s201
      %p203 = scmp.eq.s32.totalorder %s30, 0
      %p204 = por %p202, %p203
      %s206 = sadd.s32 %s205, 1
      %p209 = scmp.eq.s32.totalorder %s24, 1
      %p210 = scmp.ne.s32.totalorder %s205, %s207
      %p211 = scmp.eq.s32.totalorder %s24, 0
      %p212 = por %p210, %p211
      %p213 = scmp.ne.s32.totalorder %s205, %s207
      %p214 = scmp.eq.s32.totalorder %s29, 1
      %p215 = por %p213, %p214
      %p216 = scmp.ne.s32.totalorder %s207, %s208
      %p217 = scmp.eq.s32.totalorder %s29, 0
      %p218 = por %p216, %p217
      %p219 = scmp.ne.s32.totalorder %s207, %s208
      %p220 = scmp.eq.s32.totalorder %s30, 1
      %p221 = por %p219, %p220
      %p223 = scmp.ne.s32.totalorder %s208, %s222
      %p224 = scmp.eq.s32.totalorder %s30, 0
      %p225 = por %p223, %p224
      %s226 = ssub.s32 %s31, %s43
      %s227 = ssub.s32 %s32, %s39
      %s228 = sor.u32 %s226, %s227
      %p229 = scmp.eq.s32.totalorder %s228, 0
      %s231 = sadd.s32 %s230, 1
      %s232 = scalar_select %p229, %s230, %s231
      %p235 = pneg %p229
      %p236 = scmp.eq.s32.totalorder %s24, 1
      %p237 = por %p235, %p236
      %p238 = scmp.ne.s32.totalorder %s230, %s233
      %p239 = scmp.eq.s32.totalorder %s24, 0
      %p240 = por %p238, %p239
      %p241 = scmp.ne.s32.totalorder %s230, %s233
      %p242 = scmp.eq.s32.totalorder %s29, 1
      %p243 = por %p241, %p242
      %p244 = scmp.ne.s32.totalorder %s233, %s234
      %p245 = scmp.eq.s32.totalorder %s29, 0
      %p246 = por %p244, %p245
      %p247 = scmp.ne.s32.totalorder %s233, %s234
      %p248 = scmp.eq.s32.totalorder %s30, 1
      %p249 = por %p247, %p248
      %p251 = scmp.ne.s32.totalorder %s234, %s250
      %p252 = scmp.eq.s32.totalorder %s30, 0
      %p253 = por %p251, %p252
      %p254 = scmp.le.s32.totalorder 1, %s24
      %p255 = scmp.lt.s32.totalorder %s24, 3
      %p256 = pnand %p254, %p255
      %p257 = pneg %p256
      // Predicated region
      $region9: #{tpu_custom_call.1} parent=5 // pred_check
        _
      $region10: #{tpu_custom_call.1} parent=5 // pred_check_branch
        %259 = sbr.rel (%p256) target = $region12
      $region11: #{tpu_custom_call.1} parent=5 // pred_region
        %s260 = ssub.s32 %s24, 1
        // Predicated region
        $region13: #{tpu_custom_call.1} parent=11 // pred_check
          %p261 = pneg %p113
        $region14: #{tpu_custom_call.1} parent=11 // pred_check_branch
          %263 = sbr.rel (%p261) target = $region16
        $region15: #{tpu_custom_call.1} parent=11 // pred_region
          %s265 = ssub.s32 1024, 1024
          %266 = vsyncadd [#allocation8], %s265
          %s267 = sshll.u32 [#allocation9], 4
          %s268 = int_to_ptr.vmem [resolvable:$true] %s267
          %273 = dma.hbm_to_vmem [thread:$0]  %s2, 1024, %s268, [#allocation8], 64, 64, 4
        $region16: #{tpu_custom_call.1} parent=11 // pred_fallthru
          _
        // Predicated region
        $region17: #{tpu_custom_call.1} parent=11 // pred_check
          %p274 = pneg %p134
        $region18: #{tpu_custom_call.1} parent=11 // pred_check_branch
          %276 = sbr.rel (%p274) target = $region20
        $region19: #{tpu_custom_call.1} parent=11 // pred_region
          _
        $region20: #{tpu_custom_call.1} parent=11 // pred_fallthru
          _
        // Predicated region
        $region21: #{tpu_custom_call.1} parent=11 // pred_check
          %p277 = pneg %p155
        $region22: #{tpu_custom_call.1} parent=11 // pred_check_branch
          %279 = sbr.rel (%p277) target = $region24
        $region23: #{tpu_custom_call.1} parent=11 // pred_region
          %s281 = ssub.s32 256, 256
          %282 = vsyncadd [#allocation11], %s281
          %s283 = sshll.u32 [#allocation10], 4
          %s284 = int_to_ptr.vmem [resolvable:$true] %s283
          %289 = dma.hbm_to_vmem [thread:$0]  %s4, 256, %s284, [#allocation11], 128, 128, 8
        $region24: #{tpu_custom_call.1} parent=11 // pred_fallthru
          _
        // Predicated region
        $region25: #{tpu_custom_call.1} parent=11 // pred_check
          %p290 = pneg %p176
        $region26: #{tpu_custom_call.1} parent=11 // pred_check_branch
          %292 = sbr.rel (%p290) target = $region28
        $region27: #{tpu_custom_call.1} parent=11 // pred_region
          _
        $region28: #{tpu_custom_call.1} parent=11 // pred_fallthru
          _
        // Predicated region
        $region29: #{tpu_custom_call.1} parent=11 // pred_check
          %p293 = pneg %p197
        $region30: #{tpu_custom_call.1} parent=11 // pred_check_branch
          %295 = sbr.rel (%p293) target = $region32
        $region31: #{tpu_custom_call.1} parent=11 // pred_region
          %s297 = ssub.s32 1024, 1024
          %298 = vsyncadd [#allocation11], %s297
          %s299 = sshll.u32 [#allocation12], 4
          %s300 = int_to_ptr.vmem [resolvable:$true] %s299
          %305 = dma.hbm_to_vmem [thread:$0]  %s6, 1024, %s300, [#allocation11], 64, 64, 4
        $region32: #{tpu_custom_call.1} parent=11 // pred_fallthru
          _
        // Predicated region
        $region33: #{tpu_custom_call.1} parent=11 // pred_check
          %p306 = pneg %p218
        $region34: #{tpu_custom_call.1} parent=11 // pred_check_branch
          %308 = sbr.rel (%p306) target = $region36
        $region35: #{tpu_custom_call.1} parent=11 // pred_region
          _
        $region36: #{tpu_custom_call.1} parent=11 // pred_fallthru
          _
      $region12: #{tpu_custom_call.1} parent=5 // pred_fallthru
        _
      %p309 = scmp.lt.s32.totalorder %s24, 2
      // Predicated region
      $region37: #{tpu_custom_call.1} parent=5 // pred_check
        %p310 = pneg %p309
      $region38: #{tpu_custom_call.1} parent=5 // pred_check_branch
        %312 = sbr.rel (%p310) target = $region40
      $region39: #{tpu_custom_call.1} parent=5 // pred_region
        // Predicated region
        $region41: #{tpu_custom_call.1} parent=39 // pred_check
          %p313 = pneg %p58
        $region42: #{tpu_custom_call.1} parent=39 // pred_check_branch
          %315 = sbr.rel (%p313) target = $region44
        $region43: #{tpu_custom_call.1} parent=39 // pred_region
          %s316 = sand.u32 %s48, 1
          %s317 = scalar_lea.sflag [#allocation5], %s316
          %s318 = sand.u32 %s48, 1
          %s319 = smul.addr %s318, 192
          %s320 = scalar_lea.vmem [#allocation4], %s319
          %s321 = smul.u32 16, %s32
          %s323 = ssub.s32 3072, 3072
          %324 = vsyncadd %s317, %s323
          %s325 = smul.addr %s321, 3
          %s326 = smul.addr %s31, 48
          %s327 = sadd.s32 %s325, %s326
          %s328 = smul.addr %s327, 64
          %s329 = scalar_lea.hbm %s0, %s328
          %s330 = sshll.u32 %s320, 4
          %s331 = int_to_ptr.vmem [resolvable:$true] %s330
          %336 = dma.hbm_to_vmem [thread:$0]  %s329, 3072, %s331, %s317, 64, 64, 4
        $region44: #{tpu_custom_call.1} parent=39 // pred_fallthru
          _
        // Predicated region
        $region45: #{tpu_custom_call.1} parent=39 // pred_check
          %p337 = pneg %p86
        $region46: #{tpu_custom_call.1} parent=39 // pred_check_branch
          %339 = sbr.rel (%p337) target = $region48
        $region47: #{tpu_custom_call.1} parent=39 // pred_region
          %s340 = sand.u32 %s24, 1
          %s341 = scalar_lea.sflag [#allocation8], %s340
          %s342 = sand.u32 %s76, 1
          %s343 = smul.addr %s342, 24
          %s344 = scalar_lea.vmem [#allocation7], %s343
          %s346 = ssub.s32 384, 384
          %347 = vsyncadd %s341, %s346
          %s348 = smul.addr %s32, 6
          %s349 = smul.addr %s31, 6
          %s350 = sadd.s32 %s348, %s349
          %s351 = smul.addr %s350, 64
          %s352 = scalar_lea.hbm %s1, %s351
          %s353 = sshll.u32 %s344, 4
          %s354 = int_to_ptr.vmem [resolvable:$true] %s353
          %359 = dma.hbm_to_vmem [thread:$0]  %s352, 384, %s354, %s341, 64, 64, 4
        $region48: #{tpu_custom_call.1} parent=39 // pred_fallthru
          _
      $region40: #{tpu_custom_call.1} parent=5 // pred_fallthru
        _
      %p360 = scmp.le.s32.totalorder 1, %s24
      %p361 = scmp.lt.s32.totalorder %s24, 3
      %p362 = pnand %p360, %p361
      %p363 = pneg %p362
      // Predicated region
      $region49: #{tpu_custom_call.1} parent=5 // pred_check
        _
      $region50: #{tpu_custom_call.1} parent=5 // pred_check_branch
        %365 = sbr.rel (%p362) target = $region52
      $region51: #{tpu_custom_call.1} parent=5 // pred_region
        %s366 = ssub.s32 %s24, 1
        %s367 = sand.u32 %s51, 1
        %s368 = scalar_lea.sflag [#allocation5], %s367
        %s369 = sand.u32 %s51, 1
        %s370 = smul.addr %s369, 192
        %s371 = scalar_lea.vmem [#allocation4], %s370
        // Predicated region
        $region53: #{tpu_custom_call.1} parent=51 // pred_check
          %p372 = pneg %p64
        $region54: #{tpu_custom_call.1} parent=51 // pred_check_branch
          %374 = sbr.rel (%p372) target = $region56
        $region55: #{tpu_custom_call.1} parent=51 // pred_region
          %375 = dma.done %s368, 3072
        $region56: #{tpu_custom_call.1} parent=51 // pred_fallthru
          _
        %s376 = sand.u32 %s29, 1
        %s377 = scalar_lea.sflag [#allocation8], %s376
        %s378 = sand.u32 %s79, 1
        %s379 = smul.addr %s378, 24
        %s380 = scalar_lea.vmem [#allocation7], %s379
        // Predicated region
        $region57: #{tpu_custom_call.1} parent=51 // pred_check
          %p381 = pneg %p92
        $region58: #{tpu_custom_call.1} parent=51 // pred_check_branch
          %383 = sbr.rel (%p381) target = $region60
        $region59: #{tpu_custom_call.1} parent=51 // pred_region
          %384 = dma.done %s377, 384
        $region60: #{tpu_custom_call.1} parent=51 // pred_fallthru
          _
        // Predicated region
        $region61: #{tpu_custom_call.1} parent=51 // pred_check
          %p385 = pneg %p113
        $region62: #{tpu_custom_call.1} parent=51 // pred_check_branch
          %387 = sbr.rel (%p385) target = $region64
        $region63: #{tpu_custom_call.1} parent=51 // pred_region
          %388 = dma.done [#allocation8], 1024
        $region64: #{tpu_custom_call.1} parent=51 // pred_fallthru
          _
        // Predicated region
        $region65: #{tpu_custom_call.1} parent=51 // pred_check
          %p389 = pneg %p155
        $region66: #{tpu_custom_call.1} parent=51 // pred_check_branch
          %391 = sbr.rel (%p389) target = $region68
        $region67: #{tpu_custom_call.1} parent=51 // pred_region
          %392 = dma.done [#allocation11], 256
        $region68: #{tpu_custom_call.1} parent=51 // pred_fallthru
          _
        // Predicated region
        $region69: #{tpu_custom_call.1} parent=51 // pred_check
          %p393 = pneg %p197
        $region70: #{tpu_custom_call.1} parent=51 // pred_check_branch
          %395 = sbr.rel (%p393) target = $region72
        $region71: #{tpu_custom_call.1} parent=51 // pred_region
          %396 = dma.done [#allocation11], 1024
        $region72: #{tpu_custom_call.1} parent=51 // pred_fallthru
          _
        %s397 = sand.u32 %s51, 1
        %s398 = scalar_lea.sflag [#allocation5], %s397
        %s399 = sand.u32 %s51, 1
        %s400 = smul.addr %s399, 192
        %s401 = scalar_lea.vmem [#allocation4], %s400
        %p402 = pneg %p64
        %p403 = pneg %p61
        %s404 = sand.u32 %s29, 1
        %s405 = scalar_lea.sflag [#allocation8], %s404
        %s406 = sand.u32 %s79, 1
        %s407 = smul.addr %s406, 24
        %s408 = scalar_lea.vmem [#allocation7], %s407
        %p409 = pneg %p92
        %p410 = pneg %p89
        %p411 = pneg %p113
        %p412 = pneg %p110
        %p413 = pneg %p134
        %p414 = pneg %p131
        %p415 = pneg %p155
        %p416 = pneg %p152
        %p417 = pneg %p176
        %p418 = pneg %p173
        %p419 = pneg %p197
        %p420 = pneg %p194
        %p421 = pneg %p218
        %p422 = pneg %p215
        %p423 = pneg %p246
        %p424 = pneg %p243
        %s425 = sand.u32 %s233, 1
        %s426 = scalar_lea.sflag [#allocation6], %s425
        %s427 = sand.u32 %s233, 1
        %s428 = smul.addr %s427, 256
        %s429 = scalar_lea.vmem [#allocation13], %s428
        %s430 = smul.u32 16, %s34
        %v432 = vlaneseq
        %v433 = vshrl.u32 %v432, 7
        %v434 = vadd.s32 %v433, 8
        %v435 = vadd.s32 %v433, 16
        %vm436 = vcmp.ge.s32.totalorder %v433, 1
        %vm437 = vcmp.ge.s32.totalorder %v434, 1
        %vm438 = vcmp.ge.s32.totalorder %v435, 1
        %vm439 = vcmp.le.s32.totalorder %v433, 16
        %vm440 = vcmp.le.s32.totalorder %v434, 16
        %vm441 = vcmp.le.s32.totalorder %v435, 16
        %vm442 = vmand %vm436, %vm439
        %vm443 = vmand %vm437, %vm440
        %vm444 = vmand %vm438, %vm441
        %v445 = vsel %vm442, 1, 0
        %v446 = vsel %vm443, 1, 0
        %v447 = vsel %vm444, 1, 0
        %v448 = vcvt.s32.f32 %v445
        %v449 = vcvt.s32.f32 %v446
        %v450 = vcvt.s32.f32 %v447
        %v451 = vld [vmem:[#allocation9] sm:$0xf]
        %v452 = vld [vmem:[#allocation9 + $0x4] sm:$0xf]
        %v453 = vld [vmem:[#allocation9 + $0x8] sm:$0xf]
        %v454 = vld [vmem:[#allocation9 + $0xc] sm:$0xf]
        %v455 = vld [vmem:[#allocation9 + $0x10] sm:$0xf]
        %v456 = vld [vmem:[#allocation9 + $0x14] sm:$0xf]
        %v457 = vld [vmem:[#allocation9 + $0x18] sm:$0xf]
        %v458 = vld [vmem:[#allocation9 + $0x1c] sm:$0xf]
        %v459 = vld [vmem:[#allocation9 + $0x20] sm:$0xf]
        %v460 = vld [vmem:[#allocation9 + $0x24] sm:$0xf]
        %v461 = vld [vmem:[#allocation9 + $0x28] sm:$0xf]
        %v462 = vld [vmem:[#allocation9 + $0x2c] sm:$0xf]
        %v463 = vld [vmem:[#allocation9 + $0x30] sm:$0xf]
        %v464 = vld [vmem:[#allocation9 + $0x34] sm:$0xf]
        %v465 = vld [vmem:[#allocation9 + $0x38] sm:$0xf]
        %v466 = vld [vmem:[#allocation9 + $0x3c] sm:$0xf]
        %v467 = vld [vmem:[%s3] sm:$0x1]
        %v468 = vld [vmem:[%s371] sm:$0xf]
        %v469 = vld [vmem:[%s371 + $0x4] sm:$0xf]
        %v470 = vld [vmem:[%s371 + $0x8] sm:$0xf]
        %v471 = vld [vmem:[%s371 + $0xc] sm:$0xf]
        %v472 = vld [vmem:[%s371 + $0x10] sm:$0xf]
        %v473 = vld [vmem:[%s371 + $0x14] sm:$0xf]
        %v474 = vld [vmem:[%s371 + $0x18] sm:$0xf]
        %v475 = vld [vmem:[%s371 + $0x1c] sm:$0xf]
        %v476 = vld [vmem:[%s371 + $0x20] sm:$0xf]
        %v477 = vld [vmem:[%s371 + $0x24] sm:$0xf]
        %v478 = vld [vmem:[%s371 + $0x28] sm:$0xf]
        %v479 = vld [vmem:[%s371 + $0x2c] sm:$0xf]
        %v480 = vld [vmem:[%s371 + $0x30] sm:$0xf]
        %v481 = vld [vmem:[%s371 + $0x34] sm:$0xf]
        %v482 = vld [vmem:[%s371 + $0x38] sm:$0xf]
        %v483 = vld [vmem:[%s371 + $0x3c] sm:$0xf]
        %v484 = vld [vmem:[%s371 + $0x40] sm:$0xf]
        %v485 = vld [vmem:[%s371 + $0x44] sm:$0xf]
        %v486 = vld [vmem:[%s371 + $0x48] sm:$0xf]
        %v487 = vld [vmem:[%s371 + $0x4c] sm:$0xf]
        %v488 = vld [vmem:[%s371 + $0x50] sm:$0xf]
        %v489 = vld [vmem:[%s371 + $0x54] sm:$0xf]
        %v490 = vld [vmem:[%s371 + $0x58] sm:$0xf]
        %v491 = vld [vmem:[%s371 + $0x5c] sm:$0xf]
        %v492 = vld [vmem:[%s371 + $0x60] sm:$0xf]
        %v493 = vld [vmem:[%s371 + $0x64] sm:$0xf]
        %v494 = vld [vmem:[%s371 + $0x68] sm:$0xf]
        %v495 = vld [vmem:[%s371 + $0x6c] sm:$0xf]
        %v496 = vld [vmem:[%s371 + $0x70] sm:$0xf]
        %v497 = vld [vmem:[%s371 + $0x74] sm:$0xf]
        %v498 = vld [vmem:[%s371 + $0x78] sm:$0xf]
        %v499 = vld [vmem:[%s371 + $0x7c] sm:$0xf]
        %v500 = vld [vmem:[%s371 + $0x80] sm:$0xf]
        %v501 = vld [vmem:[%s371 + $0x84] sm:$0xf]
        %v502 = vld [vmem:[%s371 + $0x88] sm:$0xf]
        %v503 = vld [vmem:[%s371 + $0x8c] sm:$0xf]
        %v504 = vld [vmem:[%s371 + $0x90] sm:$0xf]
        %v505 = vld [vmem:[%s371 + $0x94] sm:$0xf]
        %v506 = vld [vmem:[%s371 + $0x98] sm:$0xf]
        %v507 = vld [vmem:[%s371 + $0x9c] sm:$0xf]
        %v508 = vld [vmem:[%s371 + $0xa0] sm:$0xf]
        %v509 = vld [vmem:[%s371 + $0xa4] sm:$0xf]
        %v510 = vld [vmem:[%s371 + $0xa8] sm:$0xf]
        %v511 = vld [vmem:[%s371 + $0xac] sm:$0xf]
        %v512 = vld [vmem:[%s371 + $0xb0] sm:$0xf]
        %v513 = vld [vmem:[%s371 + $0xb4] sm:$0xf]
        %v514 = vld [vmem:[%s371 + $0xb8] sm:$0xf]
        %v515 = vld [vmem:[%s371 + $0xbc] sm:$0xf]
        %v517 = vlaneseq
        %v518 = vshrl.u32 %v517, 7
        %v519 = vsub.s32 0, %v518
        %v520 = vrot.slane %v467, %v519
        %v570 = vunpack.c.l.b16 %v468
        %v571 = vunpack.c.l.b16 %v469
        %v572 = vunpack.c.l.b16 %v470
        %v573 = vunpack.c.l.b16 %v471
        %v574 = vunpack.c.l.b16 %v472
        %v575 = vunpack.c.l.b16 %v473
        %v576 = vunpack.c.l.b16 %v474
        %v577 = vunpack.c.l.b16 %v475
        %v578 = vunpack.c.l.b16 %v476
        %v579 = vunpack.c.l.b16 %v477
        %v580 = vunpack.c.l.b16 %v478
        %v581 = vunpack.c.l.b16 %v479
        %v582 = vunpack.c.l.b16 %v480
        %v583 = vunpack.c.l.b16 %v481
        %v584 = vunpack.c.l.b16 %v482
        %v585 = vunpack.c.l.b16 %v483
        %v586 = vunpack.c.l.b16 %v484
        %v587 = vunpack.c.l.b16 %v485
        %v588 = vunpack.c.l.b16 %v486
        %v589 = vunpack.c.l.b16 %v487
        %v590 = vunpack.c.l.b16 %v488
        %v591 = vunpack.c.l.b16 %v489
        %v592 = vunpack.c.l.b16 %v490
        %v593 = vunpack.c.l.b16 %v491
        %v594 = vunpack.c.l.b16 %v492
        %v595 = vunpack.c.l.b16 %v493
        %v596 = vunpack.c.l.b16 %v494
        %v597 = vunpack.c.l.b16 %v495
        %v598 = vunpack.c.l.b16 %v496
        %v599 = vunpack.c.l.b16 %v497
        %v600 = vunpack.c.l.b16 %v498
        %v601 = vunpack.c.l.b16 %v499
        %v602 = vunpack.c.l.b16 %v500
        %v603 = vunpack.c.l.b16 %v501
        %v604 = vunpack.c.l.b16 %v502
        %v605 = vunpack.c.l.b16 %v503
        %v606 = vunpack.c.l.b16 %v504
        %v607 = vunpack.c.l.b16 %v505
        %v608 = vunpack.c.l.b16 %v506
        %v609 = vunpack.c.l.b16 %v507
        %v610 = vunpack.c.l.b16 %v508
        %v611 = vunpack.c.l.b16 %v509
        %v612 = vunpack.c.l.b16 %v510
        %v613 = vunpack.c.l.b16 %v511
        %v614 = vunpack.c.l.b16 %v512
        %v615 = vunpack.c.l.b16 %v513
        %v616 = vunpack.c.l.b16 %v514
        %v617 = vunpack.c.l.b16 %v515
        %v618 = vpack.c.b16 %v571, %v570
        %v619 = vpack.c.b16 %v573, %v572
        %v620 = vpack.c.b16 %v575, %v574
        %v621 = vpack.c.b16 %v577, %v576
        %v622 = vpack.c.b16 %v579, %v578
        %v623 = vpack.c.b16 %v581, %v580
        %v624 = vpack.c.b16 %v583, %v582
        %v625 = vpack.c.b16 %v585, %v584
        %v626 = vpack.c.b16 %v587, %v586
        %v627 = vpack.c.b16 %v589, %v588
        %v628 = vpack.c.b16 %v591, %v590
        %v629 = vpack.c.b16 %v593, %v592
        %v630 = vpack.c.b16 %v595, %v594
        %v631 = vpack.c.b16 %v597, %v596
        %v632 = vpack.c.b16 %v599, %v598
        %v633 = vpack.c.b16 %v601, %v600
        %v634 = vpack.c.b16 %v603, %v602
        %v635 = vpack.c.b16 %v605, %v604
        %v636 = vpack.c.b16 %v607, %v606
        %v637 = vpack.c.b16 %v609, %v608
        %v638 = vpack.c.b16 %v611, %v610
        %v639 = vpack.c.b16 %v613, %v612
        %v640 = vpack.c.b16 %v615, %v614
        %v641 = vpack.c.b16 %v617, %v616
        %v682 = vunpack.c.l.b16 %v451
        %v683 = vunpack.c.l.b16 %v452
        %v684 = vunpack.c.l.b16 %v453
        %v685 = vunpack.c.l.b16 %v454
        %v686 = vunpack.c.l.b16 %v455
        %v687 = vunpack.c.l.b16 %v456
        %v688 = vunpack.c.l.b16 %v457
        %v689 = vunpack.c.l.b16 %v458
        %v690 = vunpack.c.l.b16 %v459
        %v691 = vunpack.c.l.b16 %v460
        %v692 = vunpack.c.l.b16 %v461
        %v693 = vunpack.c.l.b16 %v462
        %v694 = vunpack.c.l.b16 %v463
        %v695 = vunpack.c.l.b16 %v464
        %v696 = vunpack.c.l.b16 %v465
        %v697 = vunpack.c.l.b16 %v466
        %v698 = vpack.c.b16 %v683, %v682
        %v699 = vpack.c.b16 %v685, %v684
        %v700 = vpack.c.b16 %v687, %v686
        %v701 = vpack.c.b16 %v689, %v688
        %v702 = vpack.c.b16 %v691, %v690
        %v703 = vpack.c.b16 %v693, %v692
        %v704 = vpack.c.b16 %v695, %v694
        %v705 = vpack.c.b16 %v697, %v696
        %714 = vmatprep.subr.bf16.mxu0 0
        %715 = vmatpush1.bf16.msra.mxu0 %v698
        %716 = vmatprep.subr.bf16.mxu0 0
        %717 = vmatpush1.bf16.msra.mxu0 %v699
        %718 = vmatprep.subr.bf16.mxu0 0
        %719 = vmatpush1.bf16.msra.mxu0 %v700
        %720 = vmatprep.subr.bf16.mxu0 0
        %721 = vmatpush1.bf16.msra.mxu0 %v701
        %722 = vmatprep.subr.bf16.mxu0 0
        %723 = vmatpush1.bf16.msra.mxu0 %v702
        %724 = vmatprep.subr.bf16.mxu0 0
        %725 = vmatpush1.bf16.msra.mxu0 %v703
        %726 = vmatprep.subr.bf16.mxu0 0
        %727 = vmatpush1.bf16.msra.mxu0 %v704
        %728 = vmatprep.subr.bf16.mxu0 0
        %729 = vmatpush1.bf16.msra.mxu0 %v705
        %730 = vmatprep.subr.bf16.mxu0 0
        %731 = vmatpush1.bf16.msra.mxu0 0
        %732 = vmatprep.subr.bf16.mxu0 0
        %733 = vmatpush1.bf16.msra.mxu0 0
        %734 = vmatprep.subr.bf16.mxu0 0
        %735 = vmatpush1.bf16.msra.mxu0 0
        %736 = vmatprep.subr.bf16.mxu0 0
        %737 = vmatpush1.bf16.msra.mxu0 0
        %738 = vmatprep.subr.bf16.mxu0 0
        %739 = vmatpush1.bf16.msra.mxu0 0
        %740 = vmatprep.subr.bf16.mxu0 0
        %741 = vmatpush1.bf16.msra.mxu0 0
        %742 = vmatprep.subr.bf16.mxu0 0
        %743 = vmatpush1.bf16.msra.mxu0 0
        %744 = vmatprep.subr.bf16.mxu0 0
        %745 = vmatpush1.bf16.msra.mxu0 0
        %746 = vmatprep.mubr.bf16.mxu0 0
        %747 = vmatmul.mubr.bf16.gmra.mrb[0].mxu0 %v618
        %v748 = vpop.f32.mrb[0].mxu0
        %v749 = vadd.f32 %v520, %v748
        %v750 = vpop.f32.mrb[0].mxu0
        %v751 = vpop.f32.mrb[0].mxu0
        %v752 = vadd.f32 %v520, %v751
        %v753 = vpop.f32.mrb[0].mxu0
        %754 = vmatprep.mubr.bf16.mxu0 0
        %755 = vmatmul.mubr.bf16.gmra.mrb[0].mxu0 %v619
        %v756 = vpop.f32.mrb[0].mxu0
        %v757 = vadd.f32 %v520, %v756
        %v758 = vpop.f32.mrb[0].mxu0
        %v759 = vpop.f32.mrb[0].mxu0
        %v760 = vadd.f32 %v520, %v759
        %v761 = vpop.f32.mrb[0].mxu0
        %762 = vmatprep.mubr.bf16.mxu0 0
        %763 = vmatmul.mubr.bf16.gmra.mrb[0].mxu0 %v620
        %v764 = vpop.f32.mrb[0].mxu0
        %v765 = vadd.f32 %v520, %v764
        %v766 = vpop.f32.mrb[0].mxu0
        %v767 = vpop.f32.mrb[0].mxu0
        %v768 = vadd.f32 %v520, %v767
        %v769 = vpop.f32.mrb[0].mxu0
        %770 = vmatprep.mubr.bf16.mxu0 0
        %771 = vmatmul.mubr.bf16.gmra.mrb[0].mxu0 %v621
        %v772 = vpop.f32.mrb[0].mxu0
        %v773 = vadd.f32 %v520, %v772
        %v774 = vpop.f32.mrb[0].mxu0
        %v775 = vpop.f32.mrb[0].mxu0
        %v776 = vadd.f32 %v520, %v775
        %v777 = vpop.f32.mrb[0].mxu0
        %778 = vmatprep.mubr.bf16.mxu0 0
        %779 = vmatmul.mubr.bf16.gmra.mrb[0].mxu0 %v622
        %v780 = vpop.f32.mrb[0].mxu0
        %v781 = vadd.f32 %v520, %v780
        %v782 = vpop.f32.mrb[0].mxu0
        %v783 = vpop.f32.mrb[0].mxu0
        %v784 = vadd.f32 %v520, %v783
        %v785 = vpop.f32.mrb[0].mxu0
        %786 = vmatprep.mubr.bf16.mxu0 0
        %787 = vmatmul.mubr.bf16.gmra.mrb[0].mxu0 %v623
        %v788 = vpop.f32.mrb[0].mxu0
        %v789 = vadd.f32 %v520, %v788
        %v790 = vpop.f32.mrb[0].mxu0
        %v791 = vpop.f32.mrb[0].mxu0
        %v792 = vadd.f32 %v520, %v791
        %v793 = vpop.f32.mrb[0].mxu0
        %794 = vmatprep.mubr.bf16.mxu0 0
        %795 = vmatmul.mubr.bf16.gmra.mrb[0].mxu0 %v624
        %v796 = vpop.f32.mrb[0].mxu0
        %v797 = vadd.f32 %v520, %v796
        %v798 = vpop.f32.mrb[0].mxu0
        %v799 = vpop.f32.mrb[0].mxu0
        %v800 = vadd.f32 %v520, %v799
        %v801 = vpop.f32.mrb[0].mxu0
        %802 = vmatprep.mubr.bf16.mxu0 0
        %803 = vmatmul.mubr.bf16.gmra.mrb[0].mxu0 %v625
        %v804 = vpop.f32.mrb[0].mxu0
        %v805 = vadd.f32 %v520, %v804
        %v806 = vpop.f32.mrb[0].mxu0
        %v807 = vpop.f32.mrb[0].mxu0
        %v808 = vadd.f32 %v520, %v807
        %v809 = vpop.f32.mrb[0].mxu0
        %810 = vmatprep.mubr.bf16.mxu0 0
        %811 = vmatmul.mubr.bf16.gmra.mrb[0].mxu0 %v626
        %v812 = vpop.f32.mrb[0].mxu0
        %v813 = vadd.f32 %v520, %v812
        %v814 = vpop.f32.mrb[0].mxu0
        %v815 = vpop.f32.mrb[0].mxu0
        %v816 = vadd.f32 %v520, %v815
        %v817 = vpop.f32.mrb[0].mxu0
        %818 = vmatprep.mubr.bf16.mxu0 0
        %819 = vmatmul.mubr.bf16.gmra.mrb[0].mxu0 %v627
        %v820 = vpop.f32.mrb[0].mxu0
        %v821 = vadd.f32 %v520, %v820
        %v822 = vpop.f32.mrb[0].mxu0
        %v823 = vpop.f32.mrb[0].mxu0
        %v824 = vadd.f32 %v520, %v823
        %v825 = vpop.f32.mrb[0].mxu0
        %826 = vmatprep.mubr.bf16.mxu0 0
        %827 = vmatmul.mubr.bf16.gmra.mrb[0].mxu0 %v628
        %v828 = vpop.f32.mrb[0].mxu0
        %v829 = vadd.f32 %v520, %v828
        %v830 = vpop.f32.mrb[0].mxu0
        %v831 = vpop.f32.mrb[0].mxu0
        %v832 = vadd.f32 %v520, %v831
        %v833 = vpop.f32.mrb[0].mxu0
        %834 = vmatprep.mubr.bf16.mxu0 0
        %835 = vmatmul.mubr.bf16.gmra.mrb[0].mxu0 %v629
        %v836 = vpop.f32.mrb[0].mxu0
        %v837 = vadd.f32 %v520, %v836
        %v838 = vpop.f32.mrb[0].mxu0
        %v839 = vpop.f32.mrb[0].mxu0
        %v840 = vadd.f32 %v520, %v839
        %v841 = vpop.f32.mrb[0].mxu0
        %842 = vmatprep.mubr.bf16.mxu0 0
        %843 = vmatmul.mubr.bf16.gmra.mrb[0].mxu0 %v630
        %v844 = vpop.f32.mrb[0].mxu0
        %v845 = vadd.f32 %v520, %v844
        %v846 = vpop.f32.mrb[0].mxu0
        %v847 = vpop.f32.mrb[0].mxu0
        %v848 = vadd.f32 %v520, %v847
        %v849 = vpop.f32.mrb[0].mxu0
        %850 = vmatprep.mubr.bf16.mxu0 0
        %851 = vmatmul.mubr.bf16.gmra.mrb[0].mxu0 %v631
        %v852 = vpop.f32.mrb[0].mxu0
        %v853 = vadd.f32 %v520, %v852
        %v854 = vpop.f32.mrb[0].mxu0
        %v855 = vpop.f32.mrb[0].mxu0
        %v856 = vadd.f32 %v520, %v855
        %v857 = vpop.f32.mrb[0].mxu0
        %858 = vmatprep.mubr.bf16.mxu0 0
        %859 = vmatmul.mubr.bf16.gmra.mrb[0].mxu0 %v632
        %v860 = vpop.f32.mrb[0].mxu0
        %v861 = vadd.f32 %v520, %v860
        %v862 = vpop.f32.mrb[0].mxu0
        %v863 = vpop.f32.mrb[0].mxu0
        %v864 = vadd.f32 %v520, %v863
        %v865 = vpop.f32.mrb[0].mxu0
        %866 = vmatprep.mubr.bf16.mxu0 0
        %867 = vmatmul.mubr.bf16.gmra.mrb[0].mxu0 %v633
        %v868 = vpop.f32.mrb[0].mxu0
        %v869 = vadd.f32 %v520, %v868
        %v870 = vpop.f32.mrb[0].mxu0
        %v871 = vpop.f32.mrb[0].mxu0
        %v872 = vadd.f32 %v520, %v871
        %v873 = vpop.f32.mrb[0].mxu0
        %874 = vmatprep.mubr.bf16.mxu0 0
        %875 = vmatmul.mubr.bf16.gmra.mrb[0].mxu0 %v634
        %v876 = vpop.f32.mrb[0].mxu0
        %v877 = vadd.f32 %v520, %v876
        %v878 = vpop.f32.mrb[0].mxu0
        %v879 = vpop.f32.mrb[0].mxu0
        %v880 = vadd.f32 %v520, %v879
        %v881 = vpop.f32.mrb[0].mxu0
        %882 = vmatprep.mubr.bf16.mxu0 0
        %883 = vmatmul.mubr.bf16.gmra.mrb[0].mxu0 %v635
        %v884 = vpop.f32.mrb[0].mxu0
        %v885 = vadd.f32 %v520, %v884
        %v886 = vpop.f32.mrb[0].mxu0
        %v887 = vpop.f32.mrb[0].mxu0
        %v888 = vadd.f32 %v520, %v887
        %v889 = vpop.f32.mrb[0].mxu0
        %890 = vmatprep.mubr.bf16.mxu0 0
        %891 = vmatmul.mubr.bf16.gmra.mrb[0].mxu0 %v636
        %v892 = vpop.f32.mrb[0].mxu0
        %v893 = vadd.f32 %v520, %v892
        %v894 = vpop.f32.mrb[0].mxu0
        %v895 = vpop.f32.mrb[0].mxu0
        %v896 = vadd.f32 %v520, %v895
        %v897 = vpop.f32.mrb[0].mxu0
        %898 = vmatprep.mubr.bf16.mxu0 0
        %899 = vmatmul.mubr.bf16.gmra.mrb[0].mxu0 %v637
        %v900 = vpop.f32.mrb[0].mxu0
        %v901 = vadd.f32 %v520, %v900
        %v902 = vpop.f32.mrb[0].mxu0
        %v903 = vpop.f32.mrb[0].mxu0
        %v904 = vadd.f32 %v520, %v903
        %v905 = vpop.f32.mrb[0].mxu0
        %906 = vmatprep.mubr.bf16.mxu0 0
        %907 = vmatmul.mubr.bf16.gmra.mrb[0].mxu0 %v638
        %v908 = vpop.f32.mrb[0].mxu0
        %v909 = vadd.f32 %v520, %v908
        %v910 = vpop.f32.mrb[0].mxu0
        %v911 = vpop.f32.mrb[0].mxu0
        %v912 = vadd.f32 %v520, %v911
        %v913 = vpop.f32.mrb[0].mxu0
        %914 = vmatprep.mubr.bf16.mxu0 0
        %915 = vmatmul.mubr.bf16.gmra.mrb[0].mxu0 %v639
        %v916 = vpop.f32.mrb[0].mxu0
        %v917 = vadd.f32 %v520, %v916
        %v918 = vpop.f32.mrb[0].mxu0
        %v919 = vpop.f32.mrb[0].mxu0
        %v920 = vadd.f32 %v520, %v919
        %v921 = vpop.f32.mrb[0].mxu0
        %922 = vmatprep.mubr.bf16.mxu0 0
        %923 = vmatmul.mubr.bf16.gmra.mrb[0].mxu0 %v640
        %v924 = vpop.f32.mrb[0].mxu0
        %v925 = vadd.f32 %v520, %v924
        %v926 = vpop.f32.mrb[0].mxu0
        %v927 = vpop.f32.mrb[0].mxu0
        %v928 = vadd.f32 %v520, %v927
        %v929 = vpop.f32.mrb[0].mxu0
        %930 = vmatprep.mubr.bf16.mxu0 0
        %931 = vmatmul.mubr.bf16.gmra.mrb[0].mxu0 %v641
        %v932 = vpop.f32.mrb[0].mxu0
        %v933 = vadd.f32 %v520, %v932
        %v934 = vpop.f32.mrb[0].mxu0
        %v935 = vpop.f32.mrb[0].mxu0
        %v936 = vadd.f32 %v520, %v935
        %v937 = vpop.f32.mrb[0].mxu0
        %938 = vdwg.mxu0
        %v939 = vmax.f32 %v749, 0.0
        %v940 = vmax.f32 %v752, 0.0
        %v941 = vmax.f32 %v757, 0.0
        %v942 = vmax.f32 %v760, 0.0
        %v943 = vmax.f32 %v765, 0.0
        %v944 = vmax.f32 %v768, 0.0
        %v945 = vmax.f32 %v773, 0.0
        %v946 = vmax.f32 %v776, 0.0
        %v947 = vmax.f32 %v781, 0.0
        %v948 = vmax.f32 %v784, 0.0
        %v949 = vmax.f32 %v789, 0.0
        %v950 = vmax.f32 %v792, 0.0
        %v951 = vmax.f32 %v797, 0.0
        %v952 = vmax.f32 %v800, 0.0
        %v953 = vmax.f32 %v805, 0.0
        %v954 = vmax.f32 %v808, 0.0
        %v955 = vmax.f32 %v813, 0.0
        %v956 = vmax.f32 %v816, 0.0
        %v957 = vmax.f32 %v821, 0.0
        %v958 = vmax.f32 %v824, 0.0
        %v959 = vmax.f32 %v829, 0.0
        %v960 = vmax.f32 %v832, 0.0
        %v961 = vmax.f32 %v837, 0.0
        %v962 = vmax.f32 %v840, 0.0
        %v963 = vmax.f32 %v845, 0.0
        %v964 = vmax.f32 %v848, 0.0
        %v965 = vmax.f32 %v853, 0.0
        %v966 = vmax.f32 %v856, 0.0
        %v967 = vmax.f32 %v861, 0.0
        %v968 = vmax.f32 %v864, 0.0
        %v969 = vmax.f32 %v869, 0.0
        %v970 = vmax.f32 %v872, 0.0
        %v971 = vmax.f32 %v877, 0.0
        %v972 = vmax.f32 %v880, 0.0
        %v973 = vmax.f32 %v885, 0.0
        %v974 = vmax.f32 %v888, 0.0
        %v975 = vmax.f32 %v893, 0.0
        %v976 = vmax.f32 %v896, 0.0
        %v977 = vmax.f32 %v901, 0.0
        %v978 = vmax.f32 %v904, 0.0
        %v979 = vmax.f32 %v909, 0.0
        %v980 = vmax.f32 %v912, 0.0
        %v981 = vmax.f32 %v917, 0.0
        %v982 = vmax.f32 %v920, 0.0
        %v983 = vmax.f32 %v925, 0.0
        %v984 = vmax.f32 %v928, 0.0
        %v985 = vmax.f32 %v933, 0.0
        %v986 = vmax.f32 %v936, 0.0
        %v987 = vmin.f32 %v939, 6.0
        %v988 = vmin.f32 %v940, 6.0
        %v989 = vmin.f32 %v941, 6.0
        %v990 = vmin.f32 %v942, 6.0
        %v991 = vmin.f32 %v943, 6.0
        %v992 = vmin.f32 %v944, 6.0
        %v993 = vmin.f32 %v945, 6.0
        %v994 = vmin.f32 %v946, 6.0
        %v995 = vmin.f32 %v947, 6.0
        %v996 = vmin.f32 %v948, 6.0
        %v997 = vmin.f32 %v949, 6.0
        %v998 = vmin.f32 %v950, 6.0
        %v999 = vmin.f32 %v951, 6.0
        %v1000 = vmin.f32 %v952, 6.0
        %v1001 = vmin.f32 %v953, 6.0
        %v1002 = vmin.f32 %v954, 6.0
        %v1003 = vmin.f32 %v955, 6.0
        %v1004 = vmin.f32 %v956, 6.0
        %v1005 = vmin.f32 %v957, 6.0
        %v1006 = vmin.f32 %v958, 6.0
        %v1007 = vmin.f32 %v959, 6.0
        %v1008 = vmin.f32 %v960, 6.0
        %v1009 = vmin.f32 %v961, 6.0
        %v1010 = vmin.f32 %v962, 6.0
        %v1011 = vmin.f32 %v963, 6.0
        %v1012 = vmin.f32 %v964, 6.0
        %v1013 = vmin.f32 %v965, 6.0
        %v1014 = vmin.f32 %v966, 6.0
        %v1015 = vmin.f32 %v967, 6.0
        %v1016 = vmin.f32 %v968, 6.0
        %v1017 = vmin.f32 %v969, 6.0
        %v1018 = vmin.f32 %v970, 6.0
        %v1019 = vmin.f32 %v971, 6.0
        %v1020 = vmin.f32 %v972, 6.0
        %v1021 = vmin.f32 %v973, 6.0
        %v1022 = vmin.f32 %v974, 6.0
        %v1023 = vmin.f32 %v975, 6.0
        %v1024 = vmin.f32 %v976, 6.0
        %v1025 = vmin.f32 %v977, 6.0
        %v1026 = vmin.f32 %v978, 6.0
        %v1027 = vmin.f32 %v979, 6.0
        %v1028 = vmin.f32 %v980, 6.0
        %v1029 = vmin.f32 %v981, 6.0
        %v1030 = vmin.f32 %v982, 6.0
        %v1031 = vmin.f32 %v983, 6.0
        %v1032 = vmin.f32 %v984, 6.0
        %v1033 = vmin.f32 %v985, 6.0
        %v1034 = vmin.f32 %v986, 6.0
        %v1035 = vmul.f32 %v987, %v448
        %v1036 = vmul.f32 %v988, %v449
        %v1037 = vmul.f32 %v989, %v450
        %v1038 = vmul.f32 %v990, %v448
        %v1039 = vmul.f32 %v991, %v449
        %v1040 = vmul.f32 %v992, %v450
        %v1041 = vmul.f32 %v993, %v448
        %v1042 = vmul.f32 %v994, %v449
        %v1043 = vmul.f32 %v995, %v450
        %v1044 = vmul.f32 %v996, %v448
        %v1045 = vmul.f32 %v997, %v449
        %v1046 = vmul.f32 %v998, %v450
        %v1047 = vmul.f32 %v999, %v448
        %v1048 = vmul.f32 %v1000, %v449
        %v1049 = vmul.f32 %v1001, %v450
        %v1050 = vmul.f32 %v1002, %v448
        %v1051 = vmul.f32 %v1003, %v449
        %v1052 = vmul.f32 %v1004, %v450
        %v1053 = vmul.f32 %v1005, %v448
        %v1054 = vmul.f32 %v1006, %v449
        %v1055 = vmul.f32 %v1007, %v450
        %v1056 = vmul.f32 %v1008, %v448
        %v1057 = vmul.f32 %v1009, %v449
        %v1058 = vmul.f32 %v1010, %v450
        %v1059 = vmul.f32 %v1011, %v448
        %v1060 = vmul.f32 %v1012, %v449
        %v1061 = vmul.f32 %v1013, %v450
        %v1062 = vmul.f32 %v1014, %v448
        %v1063 = vmul.f32 %v1015, %v449
        %v1064 = vmul.f32 %v1016, %v450
        %v1065 = vmul.f32 %v1017, %v448
        %v1066 = vmul.f32 %v1018, %v449
        %v1067 = vmul.f32 %v1019, %v450
        %v1068 = vmul.f32 %v1020, %v448
        %v1069 = vmul.f32 %v1021, %v449
        %v1070 = vmul.f32 %v1022, %v450
        %v1071 = vmul.f32 %v1023, %v448
        %v1072 = vmul.f32 %v1024, %v449
        %v1073 = vmul.f32 %v1025, %v450
        %v1074 = vmul.f32 %v1026, %v448
        %v1075 = vmul.f32 %v1027, %v449
        %v1076 = vmul.f32 %v1028, %v450
        %v1077 = vmul.f32 %v1029, %v448
        %v1078 = vmul.f32 %v1030, %v449
        %v1079 = vmul.f32 %v1031, %v450
        %v1080 = vmul.f32 %v1032, %v448
        %v1081 = vmul.f32 %v1033, %v449
        %v1082 = vmul.f32 %v1034, %v450
        %s1083 = scalar_lea.vmem [#allocation2], 24
        %1084 = vst [vmem:[%s1083] sm:$0xff] %v1035
        %1085 = vst [vmem:[%s1083 + $0x8] sm:$0xff] %v1036
        %1086 = vst [vmem:[%s1083 + $0x10] sm:$0xff] %v1037
        %1087 = vst [vmem:[%s1083 + $0x18] sm:$0xff] %v1038
        %1088 = vst [vmem:[%s1083 + $0x20] sm:$0xff] %v1039
        %1089 = vst [vmem:[%s1083 + $0x28] sm:$0xff] %v1040
        %1090 = vst [vmem:[%s1083 + $0x30] sm:$0xff] %v1041
        %1091 = vst [vmem:[%s1083 + $0x38] sm:$0xff] %v1042
        %1092 = vst [vmem:[%s1083 + $0x40] sm:$0xff] %v1043
        %1093 = vst [vmem:[%s1083 + $0x48] sm:$0xff] %v1044
        %1094 = vst [vmem:[%s1083 + $0x50] sm:$0xff] %v1045
        %1095 = vst [vmem:[%s1083 + $0x58] sm:$0xff] %v1046
        %1096 = vst [vmem:[%s1083 + $0x60] sm:$0xff] %v1047
        %1097 = vst [vmem:[%s1083 + $0x68] sm:$0xff] %v1048
        %1098 = vst [vmem:[%s1083 + $0x70] sm:$0xff] %v1049
        %1099 = vst [vmem:[%s1083 + $0x78] sm:$0xff] %v1050
        %1100 = vst [vmem:[%s1083 + $0x80] sm:$0xff] %v1051
        %1101 = vst [vmem:[%s1083 + $0x88] sm:$0xff] %v1052
        %1102 = vst [vmem:[%s1083 + $0x90] sm:$0xff] %v1053
        %1103 = vst [vmem:[%s1083 + $0x98] sm:$0xff] %v1054
        %1104 = vst [vmem:[%s1083 + $0xa0] sm:$0xff] %v1055
        %1105 = vst [vmem:[%s1083 + $0xa8] sm:$0xff] %v1056
        %1106 = vst [vmem:[%s1083 + $0xb0] sm:$0xff] %v1057
        %1107 = vst [vmem:[%s1083 + $0xb8] sm:$0xff] %v1058
        %1108 = vst [vmem:[%s1083 + $0xc0] sm:$0xff] %v1059
        %1109 = vst [vmem:[%s1083 + $0xc8] sm:$0xff] %v1060
        %1110 = vst [vmem:[%s1083 + $0xd0] sm:$0xff] %v1061
        %1111 = vst [vmem:[%s1083 + $0xd8] sm:$0xff] %v1062
        %1112 = vst [vmem:[%s1083 + $0xe0] sm:$0xff] %v1063
        %1113 = vst [vmem:[%s1083 + $0xe8] sm:$0xff] %v1064
        %1114 = vst [vmem:[%s1083 + $0xf0] sm:$0xff] %v1065
        %1115 = vst [vmem:[%s1083 + $0xf8] sm:$0xff] %v1066
        %1116 = vst [vmem:[%s1083 + $0x100] sm:$0xff] %v1067
        %1117 = vst [vmem:[%s1083 + $0x108] sm:$0xff] %v1068
        %1118 = vst [vmem:[%s1083 + $0x110] sm:$0xff] %v1069
        %1119 = vst [vmem:[%s1083 + $0x118] sm:$0xff] %v1070
        %1120 = vst [vmem:[%s1083 + $0x120] sm:$0xff] %v1071
        %1121 = vst [vmem:[%s1083 + $0x128] sm:$0xff] %v1072
        %1122 = vst [vmem:[%s1083 + $0x130] sm:$0xff] %v1073
        %1123 = vst [vmem:[%s1083 + $0x138] sm:$0xff] %v1074
        %1124 = vst [vmem:[%s1083 + $0x140] sm:$0xff] %v1075
        %1125 = vst [vmem:[%s1083 + $0x148] sm:$0xff] %v1076
        %1126 = vst [vmem:[%s1083 + $0x150] sm:$0xff] %v1077
        %1127 = vst [vmem:[%s1083 + $0x158] sm:$0xff] %v1078
        %1128 = vst [vmem:[%s1083 + $0x160] sm:$0xff] %v1079
        %1129 = vst [vmem:[%s1083 + $0x168] sm:$0xff] %v1080
        %1130 = vst [vmem:[%s1083 + $0x170] sm:$0xff] %v1081
        %1131 = vst [vmem:[%s1083 + $0x178] sm:$0xff] %v1082
        %v1132 = vld [vmem:[%s380] sm:$0xf]
        %v1133 = vld [vmem:[%s380 + $0x4] sm:$0xf]
        %v1134 = vld [vmem:[%s380 + $0x8] sm:$0xf]
        %v1135 = vld [vmem:[%s380 + $0xc] sm:$0xf]
        %v1136 = vld [vmem:[%s380 + $0x10] sm:$0xf]
        %v1137 = vld [vmem:[%s380 + $0x14] sm:$0xf]
        %v1144 = vunpack.c.l.b16 %v1132
        %v1145 = vunpack.c.l.b16 %v1133
        %v1146 = vunpack.c.l.b16 %v1134
        %v1147 = vunpack.c.l.b16 %v1135
        %v1148 = vunpack.c.l.b16 %v1136
        %v1149 = vunpack.c.l.b16 %v1137
        %v1150 = vpack.c.b16 %v1145, %v1144
        %v1151 = vpack.c.b16 %v1147, %v1146
        %v1152 = vpack.c.b16 %v1149, %v1148
        %1156 = vmatprep.subr.bf16.mxu0 0
        %1157 = vmatpush1.bf16.msra.mxu0 %v698
        %1158 = vmatprep.subr.bf16.mxu0 0
        %1159 = vmatpush1.bf16.msra.mxu0 %v699
        %1160 = vmatprep.subr.bf16.mxu0 0
        %1161 = vmatpush1.bf16.msra.mxu0 %v700
        %1162 = vmatprep.subr.bf16.mxu0 0
        %1163 = vmatpush1.bf16.msra.mxu0 %v701
        %1164 = vmatprep.subr.bf16.mxu0 0
        %1165 = vmatpush1.bf16.msra.mxu0 %v702
        %1166 = vmatprep.subr.bf16.mxu0 0
        %1167 = vmatpush1.bf16.msra.mxu0 %v703
        %1168 = vmatprep.subr.bf16.mxu0 0
        %1169 = vmatpush1.bf16.msra.mxu0 %v704
        %1170 = vmatprep.subr.bf16.mxu0 0
        %1171 = vmatpush1.bf16.msra.mxu0 %v705
        %1172 = vmatprep.subr.bf16.mxu0 0
        %1173 = vmatpush1.bf16.msra.mxu0 0
        %1174 = vmatprep.subr.bf16.mxu0 0
        %1175 = vmatpush1.bf16.msra.mxu0 0
        %1176 = vmatprep.subr.bf16.mxu0 0
        %1177 = vmatpush1.bf16.msra.mxu0 0
        %1178 = vmatprep.subr.bf16.mxu0 0
        %1179 = vmatpush1.bf16.msra.mxu0 0
        %1180 = vmatprep.subr.bf16.mxu0 0
        %1181 = vmatpush1.bf16.msra.mxu0 0
        %1182 = vmatprep.subr.bf16.mxu0 0
        %1183 = vmatpush1.bf16.msra.mxu0 0
        %1184 = vmatprep.subr.bf16.mxu0 0
        %1185 = vmatpush1.bf16.msra.mxu0 0
        %1186 = vmatprep.subr.bf16.mxu0 0
        %1187 = vmatpush1.bf16.msra.mxu0 0
        %1188 = vmatprep.mubr.bf16.mxu0 0
        %1189 = vmatmul.mubr.bf16.gmra.mrb[0].mxu0 %v1150
        %v1190 = vpop.f32.mrb[0].mxu0
        %v1191 = vadd.f32 %v520, %v1190
        %v1192 = vpop.f32.mrb[0].mxu0
        %v1193 = vpop.f32.mrb[0].mxu0
        %v1194 = vadd.f32 %v520, %v1193
        %v1195 = vpop.f32.mrb[0].mxu0
        %1196 = vmatprep.mubr.bf16.mxu0 0
        %1197 = vmatmul.mubr.bf16.gmra.mrb[0].mxu0 %v1151
        %v1198 = vpop.f32.mrb[0].mxu0
        %v1199 = vadd.f32 %v520, %v1198
        %v1200 = vpop.f32.mrb[0].mxu0
        %v1201 = vpop.f32.mrb[0].mxu0
        %v1202 = vadd.f32 %v520, %v1201
        %v1203 = vpop.f32.mrb[0].mxu0
        %1204 = vmatprep.mubr.bf16.mxu0 0
        %1205 = vmatmul.mubr.bf16.gmra.mrb[0].mxu0 %v1152
        %v1206 = vpop.f32.mrb[0].mxu0
        %v1207 = vadd.f32 %v520, %v1206
        %v1208 = vpop.f32.mrb[0].mxu0
        %v1209 = vpop.f32.mrb[0].mxu0
        %v1210 = vadd.f32 %v520, %v1209
        %v1211 = vpop.f32.mrb[0].mxu0
        %1212 = vdwg.mxu0
        %v1213 = vmax.f32 %v1191, 0.0
        %v1214 = vmax.f32 %v1194, 0.0
        %v1215 = vmax.f32 %v1199, 0.0
        %v1216 = vmax.f32 %v1202, 0.0
        %v1217 = vmax.f32 %v1207, 0.0
        %v1218 = vmax.f32 %v1210, 0.0
        %v1219 = vmin.f32 %v1213, 6.0
        %v1220 = vmin.f32 %v1214, 6.0
        %v1221 = vmin.f32 %v1215, 6.0
        %v1222 = vmin.f32 %v1216, 6.0
        %v1223 = vmin.f32 %v1217, 6.0
        %v1224 = vmin.f32 %v1218, 6.0
        %v1225 = vmul.f32 %v1219, %v448
        %v1226 = vmul.f32 %v1220, %v449
        %v1227 = vmul.f32 %v1221, %v450
        %v1228 = vmul.f32 %v1222, %v448
        %v1229 = vmul.f32 %v1223, %v449
        %v1230 = vmul.f32 %v1224, %v450
        %1231 = vst [vmem:[#allocation2] sm:$0xff] %v1225
        %1232 = vst [vmem:[#allocation2 + $0x8] sm:$0xff] %v1226
        %1233 = vst [vmem:[#allocation2 + $0x10] sm:$0xff] %v1227
        %s1234 = scalar_lea.vmem [#allocation2], 408
        %1235 = vst [vmem:[%s1234] sm:$0xff] %v1228
        %1236 = vst [vmem:[%s1234 + $0x8] sm:$0xff] %v1229
        %1237 = vst [vmem:[%s1234 + $0x10] sm:$0xff] %v1230
        %p1238 = scmp.eq.s32.totalorder %s34, 0
        // Predicated region
        $region73: #{tpu_custom_call.1} parent=51 // pred_check
          %p1239 = pneg %p1238
        $region74: #{tpu_custom_call.1} parent=51 // pred_check_branch
          %1241 = sbr.rel (%p1239) target = $region76
        $region75: #{tpu_custom_call.1} parent=51 // pred_region
          %1242 = vst [vmem:[#allocation2] sm:$0xff] 0.0
          %1243 = vst [vmem:[#allocation2 + $0x8] sm:$0xff] 0.0
          %1244 = vst [vmem:[#allocation2 + $0x10] sm:$0xff] 0.0
          %1245 = vst [vmem:[%s1234] sm:$0xff] 0.0
          %1246 = vst [vmem:[%s1234 + $0x8] sm:$0xff] 0.0
          %1247 = vst [vmem:[%s1234 + $0x10] sm:$0xff] 0.0
        $region76: #{tpu_custom_call.1} parent=51 // pred_fallthru
          _
        %v1248 = vld [vmem:[#allocation10] sm:$0xff]
        %v1249 = vld [vmem:[#allocation10 + $0x8] sm:$0x1]
        %v1250 = vld [vmem:[%s5] sm:$0x1]
        %v1251 = vld [vmem:[#allocation2] sm:$0xff]
        %v1252 = vld [vmem:[#allocation2 + $0x8] sm:$0xff]
        %v1253 = vld [vmem:[#allocation2 + $0x18] sm:$0xff]
        %v1254 = vld [vmem:[#allocation2 + $0x20] sm:$0xff]
        %v1255 = vld [vmem:[#allocation2 + $0x30] sm:$0xff]
        %v1256 = vld [vmem:[#allocation2 + $0x38] sm:$0xff]
        %v1257 = vld [vmem:[#allocation2 + $0x48] sm:$0xff]
        %v1258 = vld [vmem:[#allocation2 + $0x50] sm:$0xff]
        %v1259 = vld [vmem:[#allocation2 + $0x60] sm:$0xff]
        %v1260 = vld [vmem:[#allocation2 + $0x68] sm:$0xff]
        %v1261 = vld [vmem:[#allocation2 + $0x78] sm:$0xff]
        %v1262 = vld [vmem:[#allocation2 + $0x80] sm:$0xff]
        %v1263 = vld [vmem:[#allocation2 + $0x90] sm:$0xff]
        %v1264 = vld [vmem:[#allocation2 + $0x98] sm:$0xff]
        %v1265 = vld [vmem:[#allocation2 + $0xa8] sm:$0xff]
        %v1266 = vld [vmem:[#allocation2 + $0xb0] sm:$0xff]
        %v1267 = vlaneseq
        %v1268 = vshrl.u32 %v1267, 7
        %v1269 = vsub.s32 0, %v1268
        %v1270 = vrot.slane %v1248, %v1269
        %v1271 = vmul.f32 %v1251, %v1270
        %v1272 = vmul.f32 %v1252, %v1270
        %v1273 = vmul.f32 %v1253, %v1270
        %v1274 = vmul.f32 %v1254, %v1270
        %v1275 = vmul.f32 %v1255, %v1270
        %v1276 = vmul.f32 %v1256, %v1270
        %v1277 = vmul.f32 %v1257, %v1270
        %v1278 = vmul.f32 %v1258, %v1270
        %v1279 = vmul.f32 %v1259, %v1270
        %v1280 = vmul.f32 %v1260, %v1270
        %v1281 = vmul.f32 %v1261, %v1270
        %v1282 = vmul.f32 %v1262, %v1270
        %v1283 = vmul.f32 %v1263, %v1270
        %v1284 = vmul.f32 %v1264, %v1270
        %v1285 = vmul.f32 %v1265, %v1270
        %v1286 = vmul.f32 %v1266, %v1270
        %v1287 = vld [vmem:[#allocation2 + $0x1] sm:$0xff]
        %v1288 = vld [vmem:[#allocation2 + $0x9] sm:$0xff]
        %v1289 = vld [vmem:[#allocation2 + $0x19] sm:$0xff]
        %v1290 = vld [vmem:[#allocation2 + $0x21] sm:$0xff]
        %v1291 = vld [vmem:[#allocation2 + $0x31] sm:$0xff]
        %v1292 = vld [vmem:[#allocation2 + $0x39] sm:$0xff]
        %v1293 = vld [vmem:[#allocation2 + $0x49] sm:$0xff]
        %v1294 = vld [vmem:[#allocation2 + $0x51] sm:$0xff]
        %v1295 = vld [vmem:[#allocation2 + $0x61] sm:$0xff]
        %v1296 = vld [vmem:[#allocation2 + $0x69] sm:$0xff]
        %v1297 = vld [vmem:[#allocation2 + $0x79] sm:$0xff]
        %v1298 = vld [vmem:[#allocation2 + $0x81] sm:$0xff]
        %v1299 = vld [vmem:[#allocation2 + $0x91] sm:$0xff]
        %v1300 = vld [vmem:[#allocation2 + $0x99] sm:$0xff]
        %v1301 = vld [vmem:[#allocation2 + $0xa9] sm:$0xff]
        %v1302 = vld [vmem:[#allocation2 + $0xb1] sm:$0xff]
        %v1303 = vlaneseq
        %v1304 = vshrl.u32 %v1303, 7
        %v1305 = vsub.s32 1, %v1304
        %v1306 = vrot.slane %v1248, %v1305
        %v1307 = vmul.f32 %v1287, %v1306
        %v1308 = vmul.f32 %v1288, %v1306
        %v1309 = vmul.f32 %v1289, %v1306
        %v1310 = vmul.f32 %v1290, %v1306
        %v1311 = vmul.f32 %v1291, %v1306
        %v1312 = vmul.f32 %v1292, %v1306
        %v1313 = vmul.f32 %v1293, %v1306
        %v1314 = vmul.f32 %v1294, %v1306
        %v1315 = vmul.f32 %v1295, %v1306
        %v1316 = vmul.f32 %v1296, %v1306
        %v1317 = vmul.f32 %v1297, %v1306
        %v1318 = vmul.f32 %v1298, %v1306
        %v1319 = vmul.f32 %v1299, %v1306
        %v1320 = vmul.f32 %v1300, %v1306
        %v1321 = vmul.f32 %v1301, %v1306
        %v1322 = vmul.f32 %v1302, %v1306
        %v1323 = vadd.f32 %v1271, %v1307
        %v1324 = vadd.f32 %v1272, %v1308
        %v1325 = vadd.f32 %v1273, %v1309
        %v1326 = vadd.f32 %v1274, %v1310
        %v1327 = vadd.f32 %v1275, %v1311
        %v1328 = vadd.f32 %v1276, %v1312
        %v1329 = vadd.f32 %v1277, %v1313
        %v1330 = vadd.f32 %v1278, %v1314
        %v1331 = vadd.f32 %v1279, %v1315
        %v1332 = vadd.f32 %v1280, %v1316
        %v1333 = vadd.f32 %v1281, %v1317
        %v1334 = vadd.f32 %v1282, %v1318
        %v1335 = vadd.f32 %v1283, %v1319
        %v1336 = vadd.f32 %v1284, %v1320
        %v1337 = vadd.f32 %v1285, %v1321
        %v1338 = vadd.f32 %v1286, %v1322
        %v1339 = vld [vmem:[#allocation2 + $0x2] sm:$0xff]
        %v1340 = vld [vmem:[#allocation2 + $0xa] sm:$0xff]
        %v1341 = vld [vmem:[#allocation2 + $0x1a] sm:$0xff]
        %v1342 = vld [vmem:[#allocation2 + $0x22] sm:$0xff]
        %v1343 = vld [vmem:[#allocation2 + $0x32] sm:$0xff]
        %v1344 = vld [vmem:[#allocation2 + $0x3a] sm:$0xff]
        %v1345 = vld [vmem:[#allocation2 + $0x4a] sm:$0xff]
        %v1346 = vld [vmem:[#allocation2 + $0x52] sm:$0xff]
        %v1347 = vld [vmem:[#allocation2 + $0x62] sm:$0xff]
        %v1348 = vld [vmem:[#allocation2 + $0x6a] sm:$0xff]
        %v1349 = vld [vmem:[#allocation2 + $0x7a] sm:$0xff]
        %v1350 = vld [vmem:[#allocation2 + $0x82] sm:$0xff]
        %v1351 = vld [vmem:[#allocation2 + $0x92] sm:$0xff]
        %v1352 = vld [vmem:[#allocation2 + $0x9a] sm:$0xff]
        %v1353 = vld [vmem:[#allocation2 + $0xaa] sm:$0xff]
        %v1354 = vld [vmem:[#allocation2 + $0xb2] sm:$0xff]
        %v1355 = vlaneseq
        %v1356 = vshrl.u32 %v1355, 7
        %v1357 = vsub.s32 2, %v1356
        %v1358 = vrot.slane %v1248, %v1357
        %v1359 = vmul.f32 %v1339, %v1358
        %v1360 = vmul.f32 %v1340, %v1358
        %v1361 = vmul.f32 %v1341, %v1358
        %v1362 = vmul.f32 %v1342, %v1358
        %v1363 = vmul.f32 %v1343, %v1358
        %v1364 = vmul.f32 %v1344, %v1358
        %v1365 = vmul.f32 %v1345, %v1358
        %v1366 = vmul.f32 %v1346, %v1358
        %v1367 = vmul.f32 %v1347, %v1358
        %v1368 = vmul.f32 %v1348, %v1358
        %v1369 = vmul.f32 %v1349, %v1358
        %v1370 = vmul.f32 %v1350, %v1358
        %v1371 = vmul.f32 %v1351, %v1358
        %v1372 = vmul.f32 %v1352, %v1358
        %v1373 = vmul.f32 %v1353, %v1358
        %v1374 = vmul.f32 %v1354, %v1358
        %v1375 = vadd.f32 %v1323, %v1359
        %v1376 = vadd.f32 %v1324, %v1360
        %v1377 = vadd.f32 %v1325, %v1361
        %v1378 = vadd.f32 %v1326, %v1362
        %v1379 = vadd.f32 %v1327, %v1363
        %v1380 = vadd.f32 %v1328, %v1364
        %v1381 = vadd.f32 %v1329, %v1365
        %v1382 = vadd.f32 %v1330, %v1366
        %v1383 = vadd.f32 %v1331, %v1367
        %v1384 = vadd.f32 %v1332, %v1368
        %v1385 = vadd.f32 %v1333, %v1369
        %v1386 = vadd.f32 %v1334, %v1370
        %v1387 = vadd.f32 %v1335, %v1371
        %v1388 = vadd.f32 %v1336, %v1372
        %v1389 = vadd.f32 %v1337, %v1373
        %v1390 = vadd.f32 %v1338, %v1374
        %v1391 = vld [vmem:[%s1083] sm:$0xff]
        %v1392 = vld [vmem:[%s1083 + $0x8] sm:$0xff]
        %v1393 = vld [vmem:[%s1083 + $0x18] sm:$0xff]
        %v1394 = vld [vmem:[%s1083 + $0x20] sm:$0xff]
        %v1395 = vld [vmem:[%s1083 + $0x30] sm:$0xff]
        %v1396 = vld [vmem:[%s1083 + $0x38] sm:$0xff]
        %v1397 = vld [vmem:[%s1083 + $0x48] sm:$0xff]
        %v1398 = vld [vmem:[%s1083 + $0x50] sm:$0xff]
        %v1399 = vld [vmem:[%s1083 + $0x60] sm:$0xff]
        %v1400 = vld [vmem:[%s1083 + $0x68] sm:$0xff]
        %v1401 = vld [vmem:[%s1083 + $0x78] sm:$0xff]
        %v1402 = vld [vmem:[%s1083 + $0x80] sm:$0xff]
        %v1403 = vld [vmem:[%s1083 + $0x90] sm:$0xff]
        %v1404 = vld [vmem:[%s1083 + $0x98] sm:$0xff]
        %v1405 = vld [vmem:[%s1083 + $0xa8] sm:$0xff]
        %v1406 = vld [vmem:[%s1083 + $0xb0] sm:$0xff]
        %v1407 = vlaneseq
        %v1408 = vshrl.u32 %v1407, 7
        %v1409 = vsub.s32 3, %v1408
        %v1410 = vrot.slane %v1248, %v1409
        %v1411 = vmul.f32 %v1391, %v1410
        %v1412 = vmul.f32 %v1392, %v1410
        %v1413 = vmul.f32 %v1393, %v1410
        %v1414 = vmul.f32 %v1394, %v1410
        %v1415 = vmul.f32 %v1395, %v1410
        %v1416 = vmul.f32 %v1396, %v1410
        %v1417 = vmul.f32 %v1397, %v1410
        %v1418 = vmul.f32 %v1398, %v1410
        %v1419 = vmul.f32 %v1399, %v1410
        %v1420 = vmul.f32 %v1400, %v1410
        %v1421 = vmul.f32 %v1401, %v1410
        %v1422 = vmul.f32 %v1402, %v1410
        %v1423 = vmul.f32 %v1403, %v1410
        %v1424 = vmul.f32 %v1404, %v1410
        %v1425 = vmul.f32 %v1405, %v1410
        %v1426 = vmul.f32 %v1406, %v1410
        %v1427 = vadd.f32 %v1375, %v1411
        %v1428 = vadd.f32 %v1376, %v1412
        %v1429 = vadd.f32 %v1377, %v1413
        %v1430 = vadd.f32 %v1378, %v1414
        %v1431 = vadd.f32 %v1379, %v1415
        %v1432 = vadd.f32 %v1380, %v1416
        %v1433 = vadd.f32 %v1381, %v1417
        %v1434 = vadd.f32 %v1382, %v1418
        %v1435 = vadd.f32 %v1383, %v1419
        %v1436 = vadd.f32 %v1384, %v1420
        %v1437 = vadd.f32 %v1385, %v1421
        %v1438 = vadd.f32 %v1386, %v1422
        %v1439 = vadd.f32 %v1387, %v1423
        %v1440 = vadd.f32 %v1388, %v1424
        %v1441 = vadd.f32 %v1389, %v1425
        %v1442 = vadd.f32 %v1390, %v1426
        %v1443 = vld [vmem:[%s1083 + $0x1] sm:$0xff]
        %v1444 = vld [vmem:[%s1083 + $0x9] sm:$0xff]
        %v1445 = vld [vmem:[%s1083 + $0x19] sm:$0xff]
        %v1446 = vld [vmem:[%s1083 + $0x21] sm:$0xff]
        %v1447 = vld [vmem:[%s1083 + $0x31] sm:$0xff]
        %v1448 = vld [vmem:[%s1083 + $0x39] sm:$0xff]
        %v1449 = vld [vmem:[%s1083 + $0x49] sm:$0xff]
        %v1450 = vld [vmem:[%s1083 + $0x51] sm:$0xff]
        %v1451 = vld [vmem:[%s1083 + $0x61] sm:$0xff]
        %v1452 = vld [vmem:[%s1083 + $0x69] sm:$0xff]
        %v1453 = vld [vmem:[%s1083 + $0x79] sm:$0xff]
        %v1454 = vld [vmem:[%s1083 + $0x81] sm:$0xff]
        %v1455 = vld [vmem:[%s1083 + $0x91] sm:$0xff]
        %v1456 = vld [vmem:[%s1083 + $0x99] sm:$0xff]
        %v1457 = vld [vmem:[%s1083 + $0xa9] sm:$0xff]
        %v1458 = vld [vmem:[%s1083 + $0xb1] sm:$0xff]
        %v1459 = vlaneseq
        %v1460 = vshrl.u32 %v1459, 7
        %v1461 = vsub.s32 4, %v1460
        %v1462 = vrot.slane %v1248, %v1461
        %v1463 = vmul.f32 %v1443, %v1462
        %v1464 = vmul.f32 %v1444, %v1462
        %v1465 = vmul.f32 %v1445, %v1462
        %v1466 = vmul.f32 %v1446, %v1462
        %v1467 = vmul.f32 %v1447, %v1462
        %v1468 = vmul.f32 %v1448, %v1462
        %v1469 = vmul.f32 %v1449, %v1462
        %v1470 = vmul.f32 %v1450, %v1462
        %v1471 = vmul.f32 %v1451, %v1462
        %v1472 = vmul.f32 %v1452, %v1462
        %v1473 = vmul.f32 %v1453, %v1462
        %v1474 = vmul.f32 %v1454, %v1462
        %v1475 = vmul.f32 %v1455, %v1462
        %v1476 = vmul.f32 %v1456, %v1462
        %v1477 = vmul.f32 %v1457, %v1462
        %v1478 = vmul.f32 %v1458, %v1462
        %v1479 = vadd.f32 %v1427, %v1463
        %v1480 = vadd.f32 %v1428, %v1464
        %v1481 = vadd.f32 %v1429, %v1465
        %v1482 = vadd.f32 %v1430, %v1466
        %v1483 = vadd.f32 %v1431, %v1467
        %v1484 = vadd.f32 %v1432, %v1468
        %v1485 = vadd.f32 %v1433, %v1469
        %v1486 = vadd.f32 %v1434, %v1470
        %v1487 = vadd.f32 %v1435, %v1471
        %v1488 = vadd.f32 %v1436, %v1472
        %v1489 = vadd.f32 %v1437, %v1473
        %v1490 = vadd.f32 %v1438, %v1474
        %v1491 = vadd.f32 %v1439, %v1475
        %v1492 = vadd.f32 %v1440, %v1476
        %v1493 = vadd.f32 %v1441, %v1477
        %v1494 = vadd.f32 %v1442, %v1478
        %v1495 = vld [vmem:[%s1083 + $0x2] sm:$0xff]
        %v1496 = vld [vmem:[%s1083 + $0xa] sm:$0xff]
        %v1497 = vld [vmem:[%s1083 + $0x1a] sm:$0xff]
        %v1498 = vld [vmem:[%s1083 + $0x22] sm:$0xff]
        %v1499 = vld [vmem:[%s1083 + $0x32] sm:$0xff]
        %v1500 = vld [vmem:[%s1083 + $0x3a] sm:$0xff]
        %v1501 = vld [vmem:[%s1083 + $0x4a] sm:$0xff]
        %v1502 = vld [vmem:[%s1083 + $0x52] sm:$0xff]
        %v1503 = vld [vmem:[%s1083 + $0x62] sm:$0xff]
        %v1504 = vld [vmem:[%s1083 + $0x6a] sm:$0xff]
        %v1505 = vld [vmem:[%s1083 + $0x7a] sm:$0xff]
        %v1506 = vld [vmem:[%s1083 + $0x82] sm:$0xff]
        %v1507 = vld [vmem:[%s1083 + $0x92] sm:$0xff]
        %v1508 = vld [vmem:[%s1083 + $0x9a] sm:$0xff]
        %v1509 = vld [vmem:[%s1083 + $0xaa] sm:$0xff]
        %v1510 = vld [vmem:[%s1083 + $0xb2] sm:$0xff]
        %v1511 = vlaneseq
        %v1512 = vshrl.u32 %v1511, 7
        %v1513 = vsub.s32 5, %v1512
        %v1514 = vrot.slane %v1248, %v1513
        %v1515 = vmul.f32 %v1495, %v1514
        %v1516 = vmul.f32 %v1496, %v1514
        %v1517 = vmul.f32 %v1497, %v1514
        %v1518 = vmul.f32 %v1498, %v1514
        %v1519 = vmul.f32 %v1499, %v1514
        %v1520 = vmul.f32 %v1500, %v1514
        %v1521 = vmul.f32 %v1501, %v1514
        %v1522 = vmul.f32 %v1502, %v1514
        %v1523 = vmul.f32 %v1503, %v1514
        %v1524 = vmul.f32 %v1504, %v1514
        %v1525 = vmul.f32 %v1505, %v1514
        %v1526 = vmul.f32 %v1506, %v1514
        %v1527 = vmul.f32 %v1507, %v1514
        %v1528 = vmul.f32 %v1508, %v1514
        %v1529 = vmul.f32 %v1509, %v1514
        %v1530 = vmul.f32 %v1510, %v1514
        %v1531 = vadd.f32 %v1479, %v1515
        %v1532 = vadd.f32 %v1480, %v1516
        %v1533 = vadd.f32 %v1481, %v1517
        %v1534 = vadd.f32 %v1482, %v1518
        %v1535 = vadd.f32 %v1483, %v1519
        %v1536 = vadd.f32 %v1484, %v1520
        %v1537 = vadd.f32 %v1485, %v1521
        %v1538 = vadd.f32 %v1486, %v1522
        %v1539 = vadd.f32 %v1487, %v1523
        %v1540 = vadd.f32 %v1488, %v1524
        %v1541 = vadd.f32 %v1489, %v1525
        %v1542 = vadd.f32 %v1490, %v1526
        %v1543 = vadd.f32 %v1491, %v1527
        %v1544 = vadd.f32 %v1492, %v1528
        %v1545 = vadd.f32 %v1493, %v1529
        %v1546 = vadd.f32 %v1494, %v1530
        %s1547 = scalar_lea.vmem [#allocation2], 48
        %v1548 = vld [vmem:[%s1547] sm:$0xff]
        %v1549 = vld [vmem:[%s1547 + $0x8] sm:$0xff]
        %v1550 = vld [vmem:[%s1547 + $0x18] sm:$0xff]
        %v1551 = vld [vmem:[%s1547 + $0x20] sm:$0xff]
        %v1552 = vld [vmem:[%s1547 + $0x30] sm:$0xff]
        %v1553 = vld [vmem:[%s1547 + $0x38] sm:$0xff]
        %v1554 = vld [vmem:[%s1547 + $0x48] sm:$0xff]
        %v1555 = vld [vmem:[%s1547 + $0x50] sm:$0xff]
        %v1556 = vld [vmem:[%s1547 + $0x60] sm:$0xff]
        %v1557 = vld [vmem:[%s1547 + $0x68] sm:$0xff]
        %v1558 = vld [vmem:[%s1547 + $0x78] sm:$0xff]
        %v1559 = vld [vmem:[%s1547 + $0x80] sm:$0xff]
        %v1560 = vld [vmem:[%s1547 + $0x90] sm:$0xff]
        %v1561 = vld [vmem:[%s1547 + $0x98] sm:$0xff]
        %v1562 = vld [vmem:[%s1547 + $0xa8] sm:$0xff]
        %v1563 = vld [vmem:[%s1547 + $0xb0] sm:$0xff]
        %v1564 = vlaneseq
        %v1565 = vshrl.u32 %v1564, 7
        %v1566 = vsub.s32 6, %v1565
        %v1567 = vrot.slane %v1248, %v1566
        %v1568 = vmul.f32 %v1548, %v1567
        %v1569 = vmul.f32 %v1549, %v1567
        %v1570 = vmul.f32 %v1550, %v1567
        %v1571 = vmul.f32 %v1551, %v1567
        %v1572 = vmul.f32 %v1552, %v1567
        %v1573 = vmul.f32 %v1553, %v1567
        %v1574 = vmul.f32 %v1554, %v1567
        %v1575 = vmul.f32 %v1555, %v1567
        %v1576 = vmul.f32 %v1556, %v1567
        %v1577 = vmul.f32 %v1557, %v1567
        %v1578 = vmul.f32 %v1558, %v1567
        %v1579 = vmul.f32 %v1559, %v1567
        %v1580 = vmul.f32 %v1560, %v1567
        %v1581 = vmul.f32 %v1561, %v1567
        %v1582 = vmul.f32 %v1562, %v1567
        %v1583 = vmul.f32 %v1563, %v1567
        %v1584 = vadd.f32 %v1531, %v1568
        %v1585 = vadd.f32 %v1532, %v1569
        %v1586 = vadd.f32 %v1533, %v1570
        %v1587 = vadd.f32 %v1534, %v1571
        %v1588 = vadd.f32 %v1535, %v1572
        %v1589 = vadd.f32 %v1536, %v1573
        %v1590 = vadd.f32 %v1537, %v1574
        %v1591 = vadd.f32 %v1538, %v1575
        %v1592 = vadd.f32 %v1539, %v1576
        %v1593 = vadd.f32 %v1540, %v1577
        %v1594 = vadd.f32 %v1541, %v1578
        %v1595 = vadd.f32 %v1542, %v1579
        %v1596 = vadd.f32 %v1543, %v1580
        %v1597 = vadd.f32 %v1544, %v1581
        %v1598 = vadd.f32 %v1545, %v1582
        %v1599 = vadd.f32 %v1546, %v1583
        %v1600 = vld [vmem:[%s1547 + $0x1] sm:$0xff]
        %v1601 = vld [vmem:[%s1547 + $0x9] sm:$0xff]
        %v1602 = vld [vmem:[%s1547 + $0x19] sm:$0xff]
        %v1603 = vld [vmem:[%s1547 + $0x21] sm:$0xff]
        %v1604 = vld [vmem:[%s1547 + $0x31] sm:$0xff]
        %v1605 = vld [vmem:[%s1547 + $0x39] sm:$0xff]
        %v1606 = vld [vmem:[%s1547 + $0x49] sm:$0xff]
        %v1607 = vld [vmem:[%s1547 + $0x51] sm:$0xff]
        %v1608 = vld [vmem:[%s1547 + $0x61] sm:$0xff]
        %v1609 = vld [vmem:[%s1547 + $0x69] sm:$0xff]
        %v1610 = vld [vmem:[%s1547 + $0x79] sm:$0xff]
        %v1611 = vld [vmem:[%s1547 + $0x81] sm:$0xff]
        %v1612 = vld [vmem:[%s1547 + $0x91] sm:$0xff]
        %v1613 = vld [vmem:[%s1547 + $0x99] sm:$0xff]
        %v1614 = vld [vmem:[%s1547 + $0xa9] sm:$0xff]
        %v1615 = vld [vmem:[%s1547 + $0xb1] sm:$0xff]
        %v1616 = vlaneseq
        %v1617 = vshrl.u32 %v1616, 7
        %v1618 = vsub.s32 7, %v1617
        %v1619 = vrot.slane %v1248, %v1618
        %v1620 = vmul.f32 %v1600, %v1619
        %v1621 = vmul.f32 %v1601, %v1619
        %v1622 = vmul.f32 %v1602, %v1619
        %v1623 = vmul.f32 %v1603, %v1619
        %v1624 = vmul.f32 %v1604, %v1619
        %v1625 = vmul.f32 %v1605, %v1619
        %v1626 = vmul.f32 %v1606, %v1619
        %v1627 = vmul.f32 %v1607, %v1619
        %v1628 = vmul.f32 %v1608, %v1619
        %v1629 = vmul.f32 %v1609, %v1619
        %v1630 = vmul.f32 %v1610, %v1619
        %v1631 = vmul.f32 %v1611, %v1619
        %v1632 = vmul.f32 %v1612, %v1619
        %v1633 = vmul.f32 %v1613, %v1619
        %v1634 = vmul.f32 %v1614, %v1619
        %v1635 = vmul.f32 %v1615, %v1619
        %v1636 = vadd.f32 %v1584, %v1620
        %v1637 = vadd.f32 %v1585, %v1621
        %v1638 = vadd.f32 %v1586, %v1622
        %v1639 = vadd.f32 %v1587, %v1623
        %v1640 = vadd.f32 %v1588, %v1624
        %v1641 = vadd.f32 %v1589, %v1625
        %v1642 = vadd.f32 %v1590, %v1626
        %v1643 = vadd.f32 %v1591, %v1627
        %v1644 = vadd.f32 %v1592, %v1628
        %v1645 = vadd.f32 %v1593, %v1629
        %v1646 = vadd.f32 %v1594, %v1630
        %v1647 = vadd.f32 %v1595, %v1631
        %v1648 = vadd.f32 %v1596, %v1632
        %v1649 = vadd.f32 %v1597, %v1633
        %v1650 = vadd.f32 %v1598, %v1634
        %v1651 = vadd.f32 %v1599, %v1635
        %v1652 = vld [vmem:[%s1547 + $0x2] sm:$0xff]
        %v1653 = vld [vmem:[%s1547 + $0xa] sm:$0xff]
        %v1654 = vld [vmem:[%s1547 + $0x1a] sm:$0xff]
        %v1655 = vld [vmem:[%s1547 + $0x22] sm:$0xff]
        %v1656 = vld [vmem:[%s1547 + $0x32] sm:$0xff]
        %v1657 = vld [vmem:[%s1547 + $0x3a] sm:$0xff]
        %v1658 = vld [vmem:[%s1547 + $0x4a] sm:$0xff]
        %v1659 = vld [vmem:[%s1547 + $0x52] sm:$0xff]
        %v1660 = vld [vmem:[%s1547 + $0x62] sm:$0xff]
        %v1661 = vld [vmem:[%s1547 + $0x6a] sm:$0xff]
        %v1662 = vld [vmem:[%s1547 + $0x7a] sm:$0xff]
        %v1663 = vld [vmem:[%s1547 + $0x82] sm:$0xff]
        %v1664 = vld [vmem:[%s1547 + $0x92] sm:$0xff]
        %v1665 = vld [vmem:[%s1547 + $0x9a] sm:$0xff]
        %v1666 = vld [vmem:[%s1547 + $0xaa] sm:$0xff]
        %v1667 = vld [vmem:[%s1547 + $0xb2] sm:$0xff]
        %v1668 = vlaneseq
        %v1669 = vshrl.u32 %v1668, 7
        %v1670 = vsub.s32 0, %v1669
        %v1671 = vrot.slane %v1249, %v1670
        %v1672 = vmul.f32 %v1652, %v1671
        %v1673 = vmul.f32 %v1653, %v1671
        %v1674 = vmul.f32 %v1654, %v1671
        %v1675 = vmul.f32 %v1655, %v1671
        %v1676 = vmul.f32 %v1656, %v1671
        %v1677 = vmul.f32 %v1657, %v1671
        %v1678 = vmul.f32 %v1658, %v1671
        %v1679 = vmul.f32 %v1659, %v1671
        %v1680 = vmul.f32 %v1660, %v1671
        %v1681 = vmul.f32 %v1661, %v1671
        %v1682 = vmul.f32 %v1662, %v1671
        %v1683 = vmul.f32 %v1663, %v1671
        %v1684 = vmul.f32 %v1664, %v1671
        %v1685 = vmul.f32 %v1665, %v1671
        %v1686 = vmul.f32 %v1666, %v1671
        %v1687 = vmul.f32 %v1667, %v1671
        %v1688 = vadd.f32 %v1636, %v1672
        %v1689 = vadd.f32 %v1637, %v1673
        %v1690 = vadd.f32 %v1638, %v1674
        %v1691 = vadd.f32 %v1639, %v1675
        %v1692 = vadd.f32 %v1640, %v1676
        %v1693 = vadd.f32 %v1641, %v1677
        %v1694 = vadd.f32 %v1642, %v1678
        %v1695 = vadd.f32 %v1643, %v1679
        %v1696 = vadd.f32 %v1644, %v1680
        %v1697 = vadd.f32 %v1645, %v1681
        %v1698 = vadd.f32 %v1646, %v1682
        %v1699 = vadd.f32 %v1647, %v1683
        %v1700 = vadd.f32 %v1648, %v1684
        %v1701 = vadd.f32 %v1649, %v1685
        %v1702 = vadd.f32 %v1650, %v1686
        %v1703 = vadd.f32 %v1651, %v1687
        %v1705 = vlaneseq
        %v1706 = vshrl.u32 %v1705, 7
        %v1707 = vsub.s32 0, %v1706
        %v1708 = vrot.slane %v1250, %v1707
        %v1710 = vadd.f32 %v1688, %v1708
        %v1711 = vadd.f32 %v1689, %v1708
        %v1712 = vadd.f32 %v1690, %v1708
        %v1713 = vadd.f32 %v1691, %v1708
        %v1714 = vadd.f32 %v1692, %v1708
        %v1715 = vadd.f32 %v1693, %v1708
        %v1716 = vadd.f32 %v1694, %v1708
        %v1717 = vadd.f32 %v1695, %v1708
        %v1718 = vadd.f32 %v1696, %v1708
        %v1719 = vadd.f32 %v1697, %v1708
        %v1720 = vadd.f32 %v1698, %v1708
        %v1721 = vadd.f32 %v1699, %v1708
        %v1722 = vadd.f32 %v1700, %v1708
        %v1723 = vadd.f32 %v1701, %v1708
        %v1724 = vadd.f32 %v1702, %v1708
        %v1725 = vadd.f32 %v1703, %v1708
        %v1726 = vmax.f32 %v1710, 0.0
        %v1727 = vmax.f32 %v1711, 0.0
        %v1728 = vmax.f32 %v1712, 0.0
        %v1729 = vmax.f32 %v1713, 0.0
        %v1730 = vmax.f32 %v1714, 0.0
        %v1731 = vmax.f32 %v1715, 0.0
        %v1732 = vmax.f32 %v1716, 0.0
        %v1733 = vmax.f32 %v1717, 0.0
        %v1734 = vmax.f32 %v1718, 0.0
        %v1735 = vmax.f32 %v1719, 0.0
        %v1736 = vmax.f32 %v1720, 0.0
        %v1737 = vmax.f32 %v1721, 0.0
        %v1738 = vmax.f32 %v1722, 0.0
        %v1739 = vmax.f32 %v1723, 0.0
        %v1740 = vmax.f32 %v1724, 0.0
        %v1741 = vmax.f32 %v1725, 0.0
        %v1742 = vmin.f32 %v1726, 6.0
        %v1743 = vmin.f32 %v1727, 6.0
        %v1744 = vmin.f32 %v1728, 6.0
        %v1745 = vmin.f32 %v1729, 6.0
        %v1746 = vmin.f32 %v1730, 6.0
        %v1747 = vmin.f32 %v1731, 6.0
        %v1748 = vmin.f32 %v1732, 6.0
        %v1749 = vmin.f32 %v1733, 6.0
        %v1750 = vmin.f32 %v1734, 6.0
        %v1751 = vmin.f32 %v1735, 6.0
        %v1752 = vmin.f32 %v1736, 6.0
        %v1753 = vmin.f32 %v1737, 6.0
        %v1754 = vmin.f32 %v1738, 6.0
        %v1755 = vmin.f32 %v1739, 6.0
        %v1756 = vmin.f32 %v1740, 6.0
        %v1757 = vmin.f32 %v1741, 6.0
        %v1758 = vpack.c.bf16 %v1743, %v1742
        %v1759 = vpack.c.bf16 %v1745, %v1744
        %v1760 = vpack.c.bf16 %v1747, %v1746
        %v1761 = vpack.c.bf16 %v1749, %v1748
        %v1762 = vpack.c.bf16 %v1751, %v1750
        %v1763 = vpack.c.bf16 %v1753, %v1752
        %v1764 = vpack.c.bf16 %v1755, %v1754
        %v1765 = vpack.c.bf16 %v1757, %v1756
        %1766 = vst [vmem:[#allocation3] sm:$0xff] %v1758
        %1767 = vst [vmem:[#allocation3 + $0x8] sm:$0xff] %v1759
        %1768 = vst [vmem:[#allocation3 + $0x10] sm:$0xff] %v1760
        %1769 = vst [vmem:[#allocation3 + $0x18] sm:$0xff] %v1761
        %1770 = vst [vmem:[#allocation3 + $0x20] sm:$0xff] %v1762
        %1771 = vst [vmem:[#allocation3 + $0x28] sm:$0xff] %v1763
        %1772 = vst [vmem:[#allocation3 + $0x30] sm:$0xff] %v1764
        %1773 = vst [vmem:[#allocation3 + $0x38] sm:$0xff] %v1765
        %s1774 = scalar_lea.vmem [#allocation2], 192
        %v1775 = vld [vmem:[%s1774] sm:$0xff]
        %v1776 = vld [vmem:[%s1774 + $0x8] sm:$0xff]
        %v1777 = vld [vmem:[%s1774 + $0x18] sm:$0xff]
        %v1778 = vld [vmem:[%s1774 + $0x20] sm:$0xff]
        %v1779 = vld [vmem:[%s1774 + $0x30] sm:$0xff]
        %v1780 = vld [vmem:[%s1774 + $0x38] sm:$0xff]
        %v1781 = vld [vmem:[%s1774 + $0x48] sm:$0xff]
        %v1782 = vld [vmem:[%s1774 + $0x50] sm:$0xff]
        %v1783 = vld [vmem:[%s1774 + $0x60] sm:$0xff]
        %v1784 = vld [vmem:[%s1774 + $0x68] sm:$0xff]
        %v1785 = vld [vmem:[%s1774 + $0x78] sm:$0xff]
        %v1786 = vld [vmem:[%s1774 + $0x80] sm:$0xff]
        %v1787 = vld [vmem:[%s1774 + $0x90] sm:$0xff]
        %v1788 = vld [vmem:[%s1774 + $0x98] sm:$0xff]
        %v1789 = vld [vmem:[%s1774 + $0xa8] sm:$0xff]
        %v1790 = vld [vmem:[%s1774 + $0xb0] sm:$0xff]
        %v1791 = vmul.f32 %v1775, %v1270
        %v1792 = vmul.f32 %v1776, %v1270
        %v1793 = vmul.f32 %v1777, %v1270
        %v1794 = vmul.f32 %v1778, %v1270
        %v1795 = vmul.f32 %v1779, %v1270
        %v1796 = vmul.f32 %v1780, %v1270
        %v1797 = vmul.f32 %v1781, %v1270
        %v1798 = vmul.f32 %v1782, %v1270
        %v1799 = vmul.f32 %v1783, %v1270
        %v1800 = vmul.f32 %v1784, %v1270
        %v1801 = vmul.f32 %v1785, %v1270
        %v1802 = vmul.f32 %v1786, %v1270
        %v1803 = vmul.f32 %v1787, %v1270
        %v1804 = vmul.f32 %v1788, %v1270
        %v1805 = vmul.f32 %v1789, %v1270
        %v1806 = vmul.f32 %v1790, %v1270
        %v1807 = vld [vmem:[%s1774 + $0x1] sm:$0xff]
        %v1808 = vld [vmem:[%s1774 + $0x9] sm:$0xff]
        %v1809 = vld [vmem:[%s1774 + $0x19] sm:$0xff]
        %v1810 = vld [vmem:[%s1774 + $0x21] sm:$0xff]
        %v1811 = vld [vmem:[%s1774 + $0x31] sm:$0xff]
        %v1812 = vld [vmem:[%s1774 + $0x39] sm:$0xff]
        %v1813 = vld [vmem:[%s1774 + $0x49] sm:$0xff]
        %v1814 = vld [vmem:[%s1774 + $0x51] sm:$0xff]
        %v1815 = vld [vmem:[%s1774 + $0x61] sm:$0xff]
        %v1816 = vld [vmem:[%s1774 + $0x69] sm:$0xff]
        %v1817 = vld [vmem:[%s1774 + $0x79] sm:$0xff]
        %v1818 = vld [vmem:[%s1774 + $0x81] sm:$0xff]
        %v1819 = vld [vmem:[%s1774 + $0x91] sm:$0xff]
        %v1820 = vld [vmem:[%s1774 + $0x99] sm:$0xff]
        %v1821 = vld [vmem:[%s1774 + $0xa9] sm:$0xff]
        %v1822 = vld [vmem:[%s1774 + $0xb1] sm:$0xff]
        %v1823 = vmul.f32 %v1807, %v1306
        %v1824 = vmul.f32 %v1808, %v1306
        %v1825 = vmul.f32 %v1809, %v1306
        %v1826 = vmul.f32 %v1810, %v1306
        %v1827 = vmul.f32 %v1811, %v1306
        %v1828 = vmul.f32 %v1812, %v1306
        %v1829 = vmul.f32 %v1813, %v1306
        %v1830 = vmul.f32 %v1814, %v1306
        %v1831 = vmul.f32 %v1815, %v1306
        %v1832 = vmul.f32 %v1816, %v1306
        %v1833 = vmul.f32 %v1817, %v1306
        %v1834 = vmul.f32 %v1818, %v1306
        %v1835 = vmul.f32 %v1819, %v1306
        %v1836 = vmul.f32 %v1820, %v1306
        %v1837 = vmul.f32 %v1821, %v1306
        %v1838 = vmul.f32 %v1822, %v1306
        %v1839 = vadd.f32 %v1791, %v1823
        %v1840 = vadd.f32 %v1792, %v1824
        %v1841 = vadd.f32 %v1793, %v1825
        %v1842 = vadd.f32 %v1794, %v1826
        %v1843 = vadd.f32 %v1795, %v1827
        %v1844 = vadd.f32 %v1796, %v1828
        %v1845 = vadd.f32 %v1797, %v1829
        %v1846 = vadd.f32 %v1798, %v1830
        %v1847 = vadd.f32 %v1799, %v1831
        %v1848 = vadd.f32 %v1800, %v1832
        %v1849 = vadd.f32 %v1801, %v1833
        %v1850 = vadd.f32 %v1802, %v1834
        %v1851 = vadd.f32 %v1803, %v1835
        %v1852 = vadd.f32 %v1804, %v1836
        %v1853 = vadd.f32 %v1805, %v1837
        %v1854 = vadd.f32 %v1806, %v1838
        %v1855 = vld [vmem:[%s1774 + $0x2] sm:$0xff]
        %v1856 = vld [vmem:[%s1774 + $0xa] sm:$0xff]
        %v1857 = vld [vmem:[%s1774 + $0x1a] sm:$0xff]
        %v1858 = vld [vmem:[%s1774 + $0x22] sm:$0xff]
        %v1859 = vld [vmem:[%s1774 + $0x32] sm:$0xff]
        %v1860 = vld [vmem:[%s1774 + $0x3a] sm:$0xff]
        %v1861 = vld [vmem:[%s1774 + $0x4a] sm:$0xff]
        %v1862 = vld [vmem:[%s1774 + $0x52] sm:$0xff]
        %v1863 = vld [vmem:[%s1774 + $0x62] sm:$0xff]
        %v1864 = vld [vmem:[%s1774 + $0x6a] sm:$0xff]
        %v1865 = vld [vmem:[%s1774 + $0x7a] sm:$0xff]
        %v1866 = vld [vmem:[%s1774 + $0x82] sm:$0xff]
        %v1867 = vld [vmem:[%s1774 + $0x92] sm:$0xff]
        %v1868 = vld [vmem:[%s1774 + $0x9a] sm:$0xff]
        %v1869 = vld [vmem:[%s1774 + $0xaa] sm:$0xff]
        %v1870 = vld [vmem:[%s1774 + $0xb2] sm:$0xff]
        %v1871 = vmul.f32 %v1855, %v1358
        %v1872 = vmul.f32 %v1856, %v1358
        %v1873 = vmul.f32 %v1857, %v1358
        %v1874 = vmul.f32 %v1858, %v1358
        %v1875 = vmul.f32 %v1859, %v1358
        %v1876 = vmul.f32 %v1860, %v1358
        %v1877 = vmul.f32 %v1861, %v1358
        %v1878 = vmul.f32 %v1862, %v1358
        %v1879 = vmul.f32 %v1863, %v1358
        %v1880 = vmul.f32 %v1864, %v1358
        %v1881 = vmul.f32 %v1865, %v1358
        %v1882 = vmul.f32 %v1866, %v1358
        %v1883 = vmul.f32 %v1867, %v1358
        %v1884 = vmul.f32 %v1868, %v1358
        %v1885 = vmul.f32 %v1869, %v1358
        %v1886 = vmul.f32 %v1870, %v1358
        %v1887 = vadd.f32 %v1839, %v1871
        %v1888 = vadd.f32 %v1840, %v1872
        %v1889 = vadd.f32 %v1841, %v1873
        %v1890 = vadd.f32 %v1842, %v1874
        %v1891 = vadd.f32 %v1843, %v1875
        %v1892 = vadd.f32 %v1844, %v1876
        %v1893 = vadd.f32 %v1845, %v1877
        %v1894 = vadd.f32 %v1846, %v1878
        %v1895 = vadd.f32 %v1847, %v1879
        %v1896 = vadd.f32 %v1848, %v1880
        %v1897 = vadd.f32 %v1849, %v1881
        %v1898 = vadd.f32 %v1850, %v1882
        %v1899 = vadd.f32 %v1851, %v1883
        %v1900 = vadd.f32 %v1852, %v1884
        %v1901 = vadd.f32 %v1853, %v1885
        %v1902 = vadd.f32 %v1854, %v1886
        %s1903 = scalar_lea.vmem [#allocation2], 216
        %v1904 = vld [vmem:[%s1903] sm:$0xff]
        %v1905 = vld [vmem:[%s1903 + $0x8] sm:$0xff]
        %v1906 = vld [vmem:[%s1903 + $0x18] sm:$0xff]
        %v1907 = vld [vmem:[%s1903 + $0x20] sm:$0xff]
        %v1908 = vld [vmem:[%s1903 + $0x30] sm:$0xff]
        %v1909 = vld [vmem:[%s1903 + $0x38] sm:$0xff]
        %v1910 = vld [vmem:[%s1903 + $0x48] sm:$0xff]
        %v1911 = vld [vmem:[%s1903 + $0x50] sm:$0xff]
        %v1912 = vld [vmem:[%s1903 + $0x60] sm:$0xff]
        %v1913 = vld [vmem:[%s1903 + $0x68] sm:$0xff]
        %v1914 = vld [vmem:[%s1903 + $0x78] sm:$0xff]
        %v1915 = vld [vmem:[%s1903 + $0x80] sm:$0xff]
        %v1916 = vld [vmem:[%s1903 + $0x90] sm:$0xff]
        %v1917 = vld [vmem:[%s1903 + $0x98] sm:$0xff]
        %v1918 = vld [vmem:[%s1903 + $0xa8] sm:$0xff]
        %v1919 = vld [vmem:[%s1903 + $0xb0] sm:$0xff]
        %v1920 = vmul.f32 %v1904, %v1410
        %v1921 = vmul.f32 %v1905, %v1410
        %v1922 = vmul.f32 %v1906, %v1410
        %v1923 = vmul.f32 %v1907, %v1410
        %v1924 = vmul.f32 %v1908, %v1410
        %v1925 = vmul.f32 %v1909, %v1410
        %v1926 = vmul.f32 %v1910, %v1410
        %v1927 = vmul.f32 %v1911, %v1410
        %v1928 = vmul.f32 %v1912, %v1410
        %v1929 = vmul.f32 %v1913, %v1410
        %v1930 = vmul.f32 %v1914, %v1410
        %v1931 = vmul.f32 %v1915, %v1410
        %v1932 = vmul.f32 %v1916, %v1410
        %v1933 = vmul.f32 %v1917, %v1410
        %v1934 = vmul.f32 %v1918, %v1410
        %v1935 = vmul.f32 %v1919, %v1410
        %v1936 = vadd.f32 %v1887, %v1920
        %v1937 = vadd.f32 %v1888, %v1921
        %v1938 = vadd.f32 %v1889, %v1922
        %v1939 = vadd.f32 %v1890, %v1923
        %v1940 = vadd.f32 %v1891, %v1924
        %v1941 = vadd.f32 %v1892, %v1925
        %v1942 = vadd.f32 %v1893, %v1926
        %v1943 = vadd.f32 %v1894, %v1927
        %v1944 = vadd.f32 %v1895, %v1928
        %v1945 = vadd.f32 %v1896, %v1929
        %v1946 = vadd.f32 %v1897, %v1930
        %v1947 = vadd.f32 %v1898, %v1931
        %v1948 = vadd.f32 %v1899, %v1932
        %v1949 = vadd.f32 %v1900, %v1933
        %v1950 = vadd.f32 %v1901, %v1934
        %v1951 = vadd.f32 %v1902, %v1935
        %v1952 = vld [vmem:[%s1903 + $0x1] sm:$0xff]
        %v1953 = vld [vmem:[%s1903 + $0x9] sm:$0xff]
        %v1954 = vld [vmem:[%s1903 + $0x19] sm:$0xff]
        %v1955 = vld [vmem:[%s1903 + $0x21] sm:$0xff]
        %v1956 = vld [vmem:[%s1903 + $0x31] sm:$0xff]
        %v1957 = vld [vmem:[%s1903 + $0x39] sm:$0xff]
        %v1958 = vld [vmem:[%s1903 + $0x49] sm:$0xff]
        %v1959 = vld [vmem:[%s1903 + $0x51] sm:$0xff]
        %v1960 = vld [vmem:[%s1903 + $0x61] sm:$0xff]
        %v1961 = vld [vmem:[%s1903 + $0x69] sm:$0xff]
        %v1962 = vld [vmem:[%s1903 + $0x79] sm:$0xff]
        %v1963 = vld [vmem:[%s1903 + $0x81] sm:$0xff]
        %v1964 = vld [vmem:[%s1903 + $0x91] sm:$0xff]
        %v1965 = vld [vmem:[%s1903 + $0x99] sm:$0xff]
        %v1966 = vld [vmem:[%s1903 + $0xa9] sm:$0xff]
        %v1967 = vld [vmem:[%s1903 + $0xb1] sm:$0xff]
        %v1968 = vmul.f32 %v1952, %v1462
        %v1969 = vmul.f32 %v1953, %v1462
        %v1970 = vmul.f32 %v1954, %v1462
        %v1971 = vmul.f32 %v1955, %v1462
        %v1972 = vmul.f32 %v1956, %v1462
        %v1973 = vmul.f32 %v1957, %v1462
        %v1974 = vmul.f32 %v1958, %v1462
        %v1975 = vmul.f32 %v1959, %v1462
        %v1976 = vmul.f32 %v1960, %v1462
        %v1977 = vmul.f32 %v1961, %v1462
        %v1978 = vmul.f32 %v1962, %v1462
        %v1979 = vmul.f32 %v1963, %v1462
        %v1980 = vmul.f32 %v1964, %v1462
        %v1981 = vmul.f32 %v1965, %v1462
        %v1982 = vmul.f32 %v1966, %v1462
        %v1983 = vmul.f32 %v1967, %v1462
        %v1984 = vadd.f32 %v1936, %v1968
        %v1985 = vadd.f32 %v1937, %v1969
        %v1986 = vadd.f32 %v1938, %v1970
        %v1987 = vadd.f32 %v1939, %v1971
        %v1988 = vadd.f32 %v1940, %v1972
        %v1989 = vadd.f32 %v1941, %v1973
        %v1990 = vadd.f32 %v1942, %v1974
        %v1991 = vadd.f32 %v1943, %v1975
        %v1992 = vadd.f32 %v1944, %v1976
        %v1993 = vadd.f32 %v1945, %v1977
        %v1994 = vadd.f32 %v1946, %v1978
        %v1995 = vadd.f32 %v1947, %v1979
        %v1996 = vadd.f32 %v1948, %v1980
        %v1997 = vadd.f32 %v1949, %v1981
        %v1998 = vadd.f32 %v1950, %v1982
        %v1999 = vadd.f32 %v1951, %v1983
        %v2000 = vld [vmem:[%s1903 + $0x2] sm:$0xff]
        %v2001 = vld [vmem:[%s1903 + $0xa] sm:$0xff]
        %v2002 = vld [vmem:[%s1903 + $0x1a] sm:$0xff]
        %v2003 = vld [vmem:[%s1903 + $0x22] sm:$0xff]
        %v2004 = vld [vmem:[%s1903 + $0x32] sm:$0xff]
        %v2005 = vld [vmem:[%s1903 + $0x3a] sm:$0xff]
        %v2006 = vld [vmem:[%s1903 + $0x4a] sm:$0xff]
        %v2007 = vld [vmem:[%s1903 + $0x52] sm:$0xff]
        %v2008 = vld [vmem:[%s1903 + $0x62] sm:$0xff]
        %v2009 = vld [vmem:[%s1903 + $0x6a] sm:$0xff]
        %v2010 = vld [vmem:[%s1903 + $0x7a] sm:$0xff]
        %v2011 = vld [vmem:[%s1903 + $0x82] sm:$0xff]
        %v2012 = vld [vmem:[%s1903 + $0x92] sm:$0xff]
        %v2013 = vld [vmem:[%s1903 + $0x9a] sm:$0xff]
        %v2014 = vld [vmem:[%s1903 + $0xaa] sm:$0xff]
        %v2015 = vld [vmem:[%s1903 + $0xb2] sm:$0xff]
        %v2016 = vmul.f32 %v2000, %v1514
        %v2017 = vmul.f32 %v2001, %v1514
        %v2018 = vmul.f32 %v2002, %v1514
        %v2019 = vmul.f32 %v2003, %v1514
        %v2020 = vmul.f32 %v2004, %v1514
        %v2021 = vmul.f32 %v2005, %v1514
        %v2022 = vmul.f32 %v2006, %v1514
        %v2023 = vmul.f32 %v2007, %v1514
        %v2024 = vmul.f32 %v2008, %v1514
        %v2025 = vmul.f32 %v2009, %v1514
        %v2026 = vmul.f32 %v2010, %v1514
        %v2027 = vmul.f32 %v2011, %v1514
        %v2028 = vmul.f32 %v2012, %v1514
        %v2029 = vmul.f32 %v2013, %v1514
        %v2030 = vmul.f32 %v2014, %v1514
        %v2031 = vmul.f32 %v2015, %v1514
        %v2032 = vadd.f32 %v1984, %v2016
        %v2033 = vadd.f32 %v1985, %v2017
        %v2034 = vadd.f32 %v1986, %v2018
        %v2035 = vadd.f32 %v1987, %v2019
        %v2036 = vadd.f32 %v1988, %v2020
        %v2037 = vadd.f32 %v1989, %v2021
        %v2038 = vadd.f32 %v1990, %v2022
        %v2039 = vadd.f32 %v1991, %v2023
        %v2040 = vadd.f32 %v1992, %v2024
        %v2041 = vadd.f32 %v1993, %v2025
        %v2042 = vadd.f32 %v1994, %v2026
        %v2043 = vadd.f32 %v1995, %v2027
        %v2044 = vadd.f32 %v1996, %v2028
        %v2045 = vadd.f32 %v1997, %v2029
        %v2046 = vadd.f32 %v1998, %v2030
        %v2047 = vadd.f32 %v1999, %v2031
        %s2048 = scalar_lea.vmem [#allocation2], 240
        %v2049 = vld [vmem:[%s2048] sm:$0xff]
        %v2050 = vld [vmem:[%s2048 + $0x8] sm:$0xff]
        %v2051 = vld [vmem:[%s2048 + $0x18] sm:$0xff]
        %v2052 = vld [vmem:[%s2048 + $0x20] sm:$0xff]
        %v2053 = vld [vmem:[%s2048 + $0x30] sm:$0xff]
        %v2054 = vld [vmem:[%s2048 + $0x38] sm:$0xff]
        %v2055 = vld [vmem:[%s2048 + $0x48] sm:$0xff]
        %v2056 = vld [vmem:[%s2048 + $0x50] sm:$0xff]
        %v2057 = vld [vmem:[%s2048 + $0x60] sm:$0xff]
        %v2058 = vld [vmem:[%s2048 + $0x68] sm:$0xff]
        %v2059 = vld [vmem:[%s2048 + $0x78] sm:$0xff]
        %v2060 = vld [vmem:[%s2048 + $0x80] sm:$0xff]
        %v2061 = vld [vmem:[%s2048 + $0x90] sm:$0xff]
        %v2062 = vld [vmem:[%s2048 + $0x98] sm:$0xff]
        %v2063 = vld [vmem:[%s2048 + $0xa8] sm:$0xff]
        %v2064 = vld [vmem:[%s2048 + $0xb0] sm:$0xff]
        %v2065 = vmul.f32 %v2049, %v1567
        %v2066 = vmul.f32 %v2050, %v1567
        %v2067 = vmul.f32 %v2051, %v1567
        %v2068 = vmul.f32 %v2052, %v1567
        %v2069 = vmul.f32 %v2053, %v1567
        %v2070 = vmul.f32 %v2054, %v1567
        %v2071 = vmul.f32 %v2055, %v1567
        %v2072 = vmul.f32 %v2056, %v1567
        %v2073 = vmul.f32 %v2057, %v1567
        %v2074 = vmul.f32 %v2058, %v1567
        %v2075 = vmul.f32 %v2059, %v1567
        %v2076 = vmul.f32 %v2060, %v1567
        %v2077 = vmul.f32 %v2061, %v1567
        %v2078 = vmul.f32 %v2062, %v1567
        %v2079 = vmul.f32 %v2063, %v1567
        %v2080 = vmul.f32 %v2064, %v1567
        %v2081 = vadd.f32 %v2032, %v2065
        %v2082 = vadd.f32 %v2033, %v2066
        %v2083 = vadd.f32 %v2034, %v2067
        %v2084 = vadd.f32 %v2035, %v2068
        %v2085 = vadd.f32 %v2036, %v2069
        %v2086 = vadd.f32 %v2037, %v2070
        %v2087 = vadd.f32 %v2038, %v2071
        %v2088 = vadd.f32 %v2039, %v2072
        %v2089 = vadd.f32 %v2040, %v2073
        %v2090 = vadd.f32 %v2041, %v2074
        %v2091 = vadd.f32 %v2042, %v2075
        %v2092 = vadd.f32 %v2043, %v2076
        %v2093 = vadd.f32 %v2044, %v2077
        %v2094 = vadd.f32 %v2045, %v2078
        %v2095 = vadd.f32 %v2046, %v2079
        %v2096 = vadd.f32 %v2047, %v2080
        %v2097 = vld [vmem:[%s2048 + $0x1] sm:$0xff]
        %v2098 = vld [vmem:[%s2048 + $0x9] sm:$0xff]
        %v2099 = vld [vmem:[%s2048 + $0x19] sm:$0xff]
        %v2100 = vld [vmem:[%s2048 + $0x21] sm:$0xff]
        %v2101 = vld [vmem:[%s2048 + $0x31] sm:$0xff]
        %v2102 = vld [vmem:[%s2048 + $0x39] sm:$0xff]
        %v2103 = vld [vmem:[%s2048 + $0x49] sm:$0xff]
        %v2104 = vld [vmem:[%s2048 + $0x51] sm:$0xff]
        %v2105 = vld [vmem:[%s2048 + $0x61] sm:$0xff]
        %v2106 = vld [vmem:[%s2048 + $0x69] sm:$0xff]
        %v2107 = vld [vmem:[%s2048 + $0x79] sm:$0xff]
        %v2108 = vld [vmem:[%s2048 + $0x81] sm:$0xff]
        %v2109 = vld [vmem:[%s2048 + $0x91] sm:$0xff]
        %v2110 = vld [vmem:[%s2048 + $0x99] sm:$0xff]
        %v2111 = vld [vmem:[%s2048 + $0xa9] sm:$0xff]
        %v2112 = vld [vmem:[%s2048 + $0xb1] sm:$0xff]
        %v2113 = vmul.f32 %v2097, %v1619
        %v2114 = vmul.f32 %v2098, %v1619
        %v2115 = vmul.f32 %v2099, %v1619
        %v2116 = vmul.f32 %v2100, %v1619
        %v2117 = vmul.f32 %v2101, %v1619
        %v2118 = vmul.f32 %v2102, %v1619
        %v2119 = vmul.f32 %v2103, %v1619
        %v2120 = vmul.f32 %v2104, %v1619
        %v2121 = vmul.f32 %v2105, %v1619
        %v2122 = vmul.f32 %v2106, %v1619
        %v2123 = vmul.f32 %v2107, %v1619
        %v2124 = vmul.f32 %v2108, %v1619
        %v2125 = vmul.f32 %v2109, %v1619
        %v2126 = vmul.f32 %v2110, %v1619
        %v2127 = vmul.f32 %v2111, %v1619
        %v2128 = vmul.f32 %v2112, %v1619
        %v2129 = vadd.f32 %v2081, %v2113
        %v2130 = vadd.f32 %v2082, %v2114
        %v2131 = vadd.f32 %v2083, %v2115
        %v2132 = vadd.f32 %v2084, %v2116
        %v2133 = vadd.f32 %v2085, %v2117
        %v2134 = vadd.f32 %v2086, %v2118
        %v2135 = vadd.f32 %v2087, %v2119
        %v2136 = vadd.f32 %v2088, %v2120
        %v2137 = vadd.f32 %v2089, %v2121
        %v2138 = vadd.f32 %v2090, %v2122
        %v2139 = vadd.f32 %v2091, %v2123
        %v2140 = vadd.f32 %v2092, %v2124
        %v2141 = vadd.f32 %v2093, %v2125
        %v2142 = vadd.f32 %v2094, %v2126
        %v2143 = vadd.f32 %v2095, %v2127
        %v2144 = vadd.f32 %v2096, %v2128
        %v2145 = vld [vmem:[%s2048 + $0x2] sm:$0xff]
        %v2146 = vld [vmem:[%s2048 + $0xa] sm:$0xff]
        %v2147 = vld [vmem:[%s2048 + $0x1a] sm:$0xff]
        %v2148 = vld [vmem:[%s2048 + $0x22] sm:$0xff]
        %v2149 = vld [vmem:[%s2048 + $0x32] sm:$0xff]
        %v2150 = vld [vmem:[%s2048 + $0x3a] sm:$0xff]
        %v2151 = vld [vmem:[%s2048 + $0x4a] sm:$0xff]
        %v2152 = vld [vmem:[%s2048 + $0x52] sm:$0xff]
        %v2153 = vld [vmem:[%s2048 + $0x62] sm:$0xff]
        %v2154 = vld [vmem:[%s2048 + $0x6a] sm:$0xff]
        %v2155 = vld [vmem:[%s2048 + $0x7a] sm:$0xff]
        %v2156 = vld [vmem:[%s2048 + $0x82] sm:$0xff]
        %v2157 = vld [vmem:[%s2048 + $0x92] sm:$0xff]
        %v2158 = vld [vmem:[%s2048 + $0x9a] sm:$0xff]
        %v2159 = vld [vmem:[%s2048 + $0xaa] sm:$0xff]
        %v2160 = vld [vmem:[%s2048 + $0xb2] sm:$0xff]
        %v2161 = vmul.f32 %v2145, %v1671
        %v2162 = vmul.f32 %v2146, %v1671
        %v2163 = vmul.f32 %v2147, %v1671
        %v2164 = vmul.f32 %v2148, %v1671
        %v2165 = vmul.f32 %v2149, %v1671
        %v2166 = vmul.f32 %v2150, %v1671
        %v2167 = vmul.f32 %v2151, %v1671
        %v2168 = vmul.f32 %v2152, %v1671
        %v2169 = vmul.f32 %v2153, %v1671
        %v2170 = vmul.f32 %v2154, %v1671
        %v2171 = vmul.f32 %v2155, %v1671
        %v2172 = vmul.f32 %v2156, %v1671
        %v2173 = vmul.f32 %v2157, %v1671
        %v2174 = vmul.f32 %v2158, %v1671
        %v2175 = vmul.f32 %v2159, %v1671
        %v2176 = vmul.f32 %v2160, %v1671
        %v2177 = vadd.f32 %v2129, %v2161
        %v2178 = vadd.f32 %v2130, %v2162
        %v2179 = vadd.f32 %v2131, %v2163
        %v2180 = vadd.f32 %v2132, %v2164
        %v2181 = vadd.f32 %v2133, %v2165
        %v2182 = vadd.f32 %v2134, %v2166
        %v2183 = vadd.f32 %v2135, %v2167
        %v2184 = vadd.f32 %v2136, %v2168
        %v2185 = vadd.f32 %v2137, %v2169
        %v2186 = vadd.f32 %v2138, %v2170
        %v2187 = vadd.f32 %v2139, %v2171
        %v2188 = vadd.f32 %v2140, %v2172
        %v2189 = vadd.f32 %v2141, %v2173
        %v2190 = vadd.f32 %v2142, %v2174
        %v2191 = vadd.f32 %v2143, %v2175
        %v2192 = vadd.f32 %v2144, %v2176
        %v2193 = vadd.f32 %v2177, %v1708
        %v2194 = vadd.f32 %v2178, %v1708
        %v2195 = vadd.f32 %v2179, %v1708
        %v2196 = vadd.f32 %v2180, %v1708
        %v2197 = vadd.f32 %v2181, %v1708
        %v2198 = vadd.f32 %v2182, %v1708
        %v2199 = vadd.f32 %v2183, %v1708
        %v2200 = vadd.f32 %v2184, %v1708
        %v2201 = vadd.f32 %v2185, %v1708
        %v2202 = vadd.f32 %v2186, %v1708
        %v2203 = vadd.f32 %v2187, %v1708
        %v2204 = vadd.f32 %v2188, %v1708
        %v2205 = vadd.f32 %v2189, %v1708
        %v2206 = vadd.f32 %v2190, %v1708
        %v2207 = vadd.f32 %v2191, %v1708
        %v2208 = vadd.f32 %v2192, %v1708
        %v2209 = vmax.f32 %v2193, 0.0
        %v2210 = vmax.f32 %v2194, 0.0
        %v2211 = vmax.f32 %v2195, 0.0
        %v2212 = vmax.f32 %v2196, 0.0
        %v2213 = vmax.f32 %v2197, 0.0
        %v2214 = vmax.f32 %v2198, 0.0
        %v2215 = vmax.f32 %v2199, 0.0
        %v2216 = vmax.f32 %v2200, 0.0
        %v2217 = vmax.f32 %v2201, 0.0
        %v2218 = vmax.f32 %v2202, 0.0
        %v2219 = vmax.f32 %v2203, 0.0
        %v2220 = vmax.f32 %v2204, 0.0
        %v2221 = vmax.f32 %v2205, 0.0
        %v2222 = vmax.f32 %v2206, 0.0
        %v2223 = vmax.f32 %v2207, 0.0
        %v2224 = vmax.f32 %v2208, 0.0
        %v2225 = vmin.f32 %v2209, 6.0
        %v2226 = vmin.f32 %v2210, 6.0
        %v2227 = vmin.f32 %v2211, 6.0
        %v2228 = vmin.f32 %v2212, 6.0
        %v2229 = vmin.f32 %v2213, 6.0
        %v2230 = vmin.f32 %v2214, 6.0
        %v2231 = vmin.f32 %v2215, 6.0
        %v2232 = vmin.f32 %v2216, 6.0
        %v2233 = vmin.f32 %v2217, 6.0
        %v2234 = vmin.f32 %v2218, 6.0
        %v2235 = vmin.f32 %v2219, 6.0
        %v2236 = vmin.f32 %v2220, 6.0
        %v2237 = vmin.f32 %v2221, 6.0
        %v2238 = vmin.f32 %v2222, 6.0
        %v2239 = vmin.f32 %v2223, 6.0
        %v2240 = vmin.f32 %v2224, 6.0
        %v2241 = vpack.c.bf16 %v2226, %v2225
        %v2242 = vpack.c.bf16 %v2228, %v2227
        %v2243 = vpack.c.bf16 %v2230, %v2229
        %v2244 = vpack.c.bf16 %v2232, %v2231
        %v2245 = vpack.c.bf16 %v2234, %v2233
        %v2246 = vpack.c.bf16 %v2236, %v2235
        %v2247 = vpack.c.bf16 %v2238, %v2237
        %v2248 = vpack.c.bf16 %v2240, %v2239
        %2249 = vst [vmem:[#allocation3 + $0x40] sm:$0xff] %v2241
        %2250 = vst [vmem:[#allocation3 + $0x48] sm:$0xff] %v2242
        %2251 = vst [vmem:[#allocation3 + $0x50] sm:$0xff] %v2243
        %2252 = vst [vmem:[#allocation3 + $0x58] sm:$0xff] %v2244
        %2253 = vst [vmem:[#allocation3 + $0x60] sm:$0xff] %v2245
        %2254 = vst [vmem:[#allocation3 + $0x68] sm:$0xff] %v2246
        %2255 = vst [vmem:[#allocation3 + $0x70] sm:$0xff] %v2247
        %2256 = vst [vmem:[#allocation3 + $0x78] sm:$0xff] %v2248
        %v2257 = vld [vmem:[#allocation3] sm:$0xff]
        %v2258 = vld [vmem:[#allocation3 + $0x8] sm:$0xff]
        %v2259 = vld [vmem:[#allocation3 + $0x10] sm:$0xff]
        %v2260 = vld [vmem:[#allocation3 + $0x18] sm:$0xff]
        %v2261 = vld [vmem:[#allocation3 + $0x20] sm:$0xff]
        %v2262 = vld [vmem:[#allocation3 + $0x28] sm:$0xff]
        %v2263 = vld [vmem:[#allocation3 + $0x30] sm:$0xff]
        %v2264 = vld [vmem:[#allocation3 + $0x38] sm:$0xff]
        %v2265 = vld [vmem:[#allocation3 + $0x40] sm:$0xff]
        %v2266 = vld [vmem:[#allocation3 + $0x48] sm:$0xff]
        %v2267 = vld [vmem:[#allocation3 + $0x50] sm:$0xff]
        %v2268 = vld [vmem:[#allocation3 + $0x58] sm:$0xff]
        %v2269 = vld [vmem:[#allocation3 + $0x60] sm:$0xff]
        %v2270 = vld [vmem:[#allocation3 + $0x68] sm:$0xff]
        %v2271 = vld [vmem:[#allocation3 + $0x70] sm:$0xff]
        %v2272 = vld [vmem:[#allocation3 + $0x78] sm:$0xff]
        %v2273 = vld [vmem:[#allocation12] sm:$0xf]
        %v2274 = vld [vmem:[#allocation12 + $0x4] sm:$0xf]
        %v2275 = vld [vmem:[#allocation12 + $0x8] sm:$0xf]
        %v2276 = vld [vmem:[#allocation12 + $0xc] sm:$0xf]
        %v2277 = vld [vmem:[#allocation12 + $0x10] sm:$0xf]
        %v2278 = vld [vmem:[#allocation12 + $0x14] sm:$0xf]
        %v2279 = vld [vmem:[#allocation12 + $0x18] sm:$0xf]
        %v2280 = vld [vmem:[#allocation12 + $0x1c] sm:$0xf]
        %v2281 = vld [vmem:[#allocation12 + $0x20] sm:$0xf]
        %v2282 = vld [vmem:[#allocation12 + $0x24] sm:$0xf]
        %v2283 = vld [vmem:[#allocation12 + $0x28] sm:$0xf]
        %v2284 = vld [vmem:[#allocation12 + $0x2c] sm:$0xf]
        %v2285 = vld [vmem:[#allocation12 + $0x30] sm:$0xf]
        %v2286 = vld [vmem:[#allocation12 + $0x34] sm:$0xf]
        %v2287 = vld [vmem:[#allocation12 + $0x38] sm:$0xf]
        %v2288 = vld [vmem:[#allocation12 + $0x3c] sm:$0xf]
        %v2289 = vld [vmem:[%s7] sm:$0x1]
        %v2291 = vlaneseq
        %v2292 = vshrl.u32 %v2291, 7
        %v2293 = vsub.s32 0, %v2292
        %v2294 = vrot.slane %v2289, %v2293
        %v2312 = vunpack.c.l.b16 %v2273
        %v2313 = vunpack.c.l.b16 %v2274
        %v2314 = vunpack.c.l.b16 %v2275
        %v2315 = vunpack.c.l.b16 %v2276
        %v2316 = vunpack.c.l.b16 %v2277
        %v2317 = vunpack.c.l.b16 %v2278
        %v2318 = vunpack.c.l.b16 %v2279
        %v2319 = vunpack.c.l.b16 %v2280
        %v2320 = vunpack.c.l.b16 %v2281
        %v2321 = vunpack.c.l.b16 %v2282
        %v2322 = vunpack.c.l.b16 %v2283
        %v2323 = vunpack.c.l.b16 %v2284
        %v2324 = vunpack.c.l.b16 %v2285
        %v2325 = vunpack.c.l.b16 %v2286
        %v2326 = vunpack.c.l.b16 %v2287
        %v2327 = vunpack.c.l.b16 %v2288
        %v2328 = vpack.c.b16 %v2313, %v2312
        %v2329 = vpack.c.b16 %v2315, %v2314
        %v2330 = vpack.c.b16 %v2317, %v2316
        %v2331 = vpack.c.b16 %v2319, %v2318
        %v2332 = vpack.c.b16 %v2321, %v2320
        %v2333 = vpack.c.b16 %v2323, %v2322
        %v2334 = vpack.c.b16 %v2325, %v2324
        %v2335 = vpack.c.b16 %v2327, %v2326
        %2344 = vmatprep.subr.bf16.mxu0 0
        %2345 = vmatpush1.bf16.msra.mxu0 %v2328
        %2346 = vmatprep.subr.bf16.mxu0 0
        %2347 = vmatpush1.bf16.msra.mxu0 %v2329
        %2348 = vmatprep.subr.bf16.mxu0 0
        %2349 = vmatpush1.bf16.msra.mxu0 %v2330
        %2350 = vmatprep.subr.bf16.mxu0 0
        %2351 = vmatpush1.bf16.msra.mxu0 %v2331
        %2352 = vmatprep.subr.bf16.mxu0 0
        %2353 = vmatpush1.bf16.msra.mxu0 %v2332
        %2354 = vmatprep.subr.bf16.mxu0 0
        %2355 = vmatpush1.bf16.msra.mxu0 %v2333
        %2356 = vmatprep.subr.bf16.mxu0 0
        %2357 = vmatpush1.bf16.msra.mxu0 %v2334
        %2358 = vmatprep.subr.bf16.mxu0 0
        %2359 = vmatpush1.bf16.msra.mxu0 %v2335
        %2360 = vmatprep.subr.bf16.mxu0 0
        %2361 = vmatpush1.bf16.msra.mxu0 0
        %2362 = vmatprep.subr.bf16.mxu0 0
        %2363 = vmatpush1.bf16.msra.mxu0 0
        %2364 = vmatprep.subr.bf16.mxu0 0
        %2365 = vmatpush1.bf16.msra.mxu0 0
        %2366 = vmatprep.subr.bf16.mxu0 0
        %2367 = vmatpush1.bf16.msra.mxu0 0
        %2368 = vmatprep.subr.bf16.mxu0 0
        %2369 = vmatpush1.bf16.msra.mxu0 0
        %2370 = vmatprep.subr.bf16.mxu0 0
        %2371 = vmatpush1.bf16.msra.mxu0 0
        %2372 = vmatprep.subr.bf16.mxu0 0
        %2373 = vmatpush1.bf16.msra.mxu0 0
        %2374 = vmatprep.subr.bf16.mxu0 0
        %2375 = vmatpush1.bf16.msra.mxu0 0
        %2376 = vmatprep.mubr.bf16.mxu0 0
        %2377 = vmatmul.mubr.bf16.gmra.mrb[0].mxu0 %v2257
        %v2378 = vpop.f32.mrb[0].mxu0
        %v2379 = vadd.f32 %v2294, %v2378
        %v2380 = vpop.f32.mrb[0].mxu0
        %v2381 = vpop.f32.mrb[0].mxu0
        %v2382 = vadd.f32 %v2294, %v2381
        %v2383 = vpop.f32.mrb[0].mxu0
        %2384 = vmatprep.mubr.bf16.mxu0 0
        %2385 = vmatmul.mubr.bf16.gmra.mrb[0].mxu0 %v2258
        %v2386 = vpop.f32.mrb[0].mxu0
        %v2387 = vadd.f32 %v2294, %v2386
        %v2388 = vpop.f32.mrb[0].mxu0
        %v2389 = vpop.f32.mrb[0].mxu0
        %v2390 = vadd.f32 %v2294, %v2389
        %v2391 = vpop.f32.mrb[0].mxu0
        %2392 = vmatprep.mubr.bf16.mxu0 0
        %2393 = vmatmul.mubr.bf16.gmra.mrb[0].mxu0 %v2259
        %v2394 = vpop.f32.mrb[0].mxu0
        %v2395 = vadd.f32 %v2294, %v2394
        %v2396 = vpop.f32.mrb[0].mxu0
        %v2397 = vpop.f32.mrb[0].mxu0
        %v2398 = vadd.f32 %v2294, %v2397
        %v2399 = vpop.f32.mrb[0].mxu0
        %2400 = vmatprep.mubr.bf16.mxu0 0
        %2401 = vmatmul.mubr.bf16.gmra.mrb[0].mxu0 %v2260
        %v2402 = vpop.f32.mrb[0].mxu0
        %v2403 = vadd.f32 %v2294, %v2402
        %v2404 = vpop.f32.mrb[0].mxu0
        %v2405 = vpop.f32.mrb[0].mxu0
        %v2406 = vadd.f32 %v2294, %v2405
        %v2407 = vpop.f32.mrb[0].mxu0
        %2408 = vmatprep.mubr.bf16.mxu0 0
        %2409 = vmatmul.mubr.bf16.gmra.mrb[0].mxu0 %v2261
        %v2410 = vpop.f32.mrb[0].mxu0
        %v2411 = vadd.f32 %v2294, %v2410
        %v2412 = vpop.f32.mrb[0].mxu0
        %v2413 = vpop.f32.mrb[0].mxu0
        %v2414 = vadd.f32 %v2294, %v2413
        %v2415 = vpop.f32.mrb[0].mxu0
        %2416 = vmatprep.mubr.bf16.mxu0 0
        %2417 = vmatmul.mubr.bf16.gmra.mrb[0].mxu0 %v2262
        %v2418 = vpop.f32.mrb[0].mxu0
        %v2419 = vadd.f32 %v2294, %v2418
        %v2420 = vpop.f32.mrb[0].mxu0
        %v2421 = vpop.f32.mrb[0].mxu0
        %v2422 = vadd.f32 %v2294, %v2421
        %v2423 = vpop.f32.mrb[0].mxu0
        %2424 = vmatprep.mubr.bf16.mxu0 0
        %2425 = vmatmul.mubr.bf16.gmra.mrb[0].mxu0 %v2263
        %v2426 = vpop.f32.mrb[0].mxu0
        %v2427 = vadd.f32 %v2294, %v2426
        %v2428 = vpop.f32.mrb[0].mxu0
        %v2429 = vpop.f32.mrb[0].mxu0
        %v2430 = vadd.f32 %v2294, %v2429
        %v2431 = vpop.f32.mrb[0].mxu0
        %2432 = vmatprep.mubr.bf16.mxu0 0
        %2433 = vmatmul.mubr.bf16.gmra.mrb[0].mxu0 %v2264
        %v2434 = vpop.f32.mrb[0].mxu0
        %v2435 = vadd.f32 %v2294, %v2434
        %v2436 = vpop.f32.mrb[0].mxu0
        %v2437 = vpop.f32.mrb[0].mxu0
        %v2438 = vadd.f32 %v2294, %v2437
        %v2439 = vpop.f32.mrb[0].mxu0
        %2440 = vmatprep.mubr.bf16.mxu0 0
        %2441 = vmatmul.mubr.bf16.gmra.mrb[0].mxu0 %v2265
        %v2442 = vpop.f32.mrb[0].mxu0
        %v2443 = vadd.f32 %v2294, %v2442
        %v2444 = vpop.f32.mrb[0].mxu0
        %v2445 = vpop.f32.mrb[0].mxu0
        %v2446 = vadd.f32 %v2294, %v2445
        %v2447 = vpop.f32.mrb[0].mxu0
        %2448 = vmatprep.mubr.bf16.mxu0 0
        %2449 = vmatmul.mubr.bf16.gmra.mrb[0].mxu0 %v2266
        %v2450 = vpop.f32.mrb[0].mxu0
        %v2451 = vadd.f32 %v2294, %v2450
        %v2452 = vpop.f32.mrb[0].mxu0
        %v2453 = vpop.f32.mrb[0].mxu0
        %v2454 = vadd.f32 %v2294, %v2453
        %v2455 = vpop.f32.mrb[0].mxu0
        %2456 = vmatprep.mubr.bf16.mxu0 0
        %2457 = vmatmul.mubr.bf16.gmra.mrb[0].mxu0 %v2267
        %v2458 = vpop.f32.mrb[0].mxu0
        %v2459 = vadd.f32 %v2294, %v2458
        %v2460 = vpop.f32.mrb[0].mxu0
        %v2461 = vpop.f32.mrb[0].mxu0
        %v2462 = vadd.f32 %v2294, %v2461
        %v2463 = vpop.f32.mrb[0].mxu0
        %2464 = vmatprep.mubr.bf16.mxu0 0
        %2465 = vmatmul.mubr.bf16.gmra.mrb[0].mxu0 %v2268
        %v2466 = vpop.f32.mrb[0].mxu0
        %v2467 = vadd.f32 %v2294, %v2466
        %v2468 = vpop.f32.mrb[0].mxu0
        %v2469 = vpop.f32.mrb[0].mxu0
        %v2470 = vadd.f32 %v2294, %v2469
        %v2471 = vpop.f32.mrb[0].mxu0
        %2472 = vmatprep.mubr.bf16.mxu0 0
        %2473 = vmatmul.mubr.bf16.gmra.mrb[0].mxu0 %v2269
        %v2474 = vpop.f32.mrb[0].mxu0
        %v2475 = vadd.f32 %v2294, %v2474
        %v2476 = vpop.f32.mrb[0].mxu0
        %v2477 = vpop.f32.mrb[0].mxu0
        %v2478 = vadd.f32 %v2294, %v2477
        %v2479 = vpop.f32.mrb[0].mxu0
        %2480 = vmatprep.mubr.bf16.mxu0 0
        %2481 = vmatmul.mubr.bf16.gmra.mrb[0].mxu0 %v2270
        %v2482 = vpop.f32.mrb[0].mxu0
        %v2483 = vadd.f32 %v2294, %v2482
        %v2484 = vpop.f32.mrb[0].mxu0
        %v2485 = vpop.f32.mrb[0].mxu0
        %v2486 = vadd.f32 %v2294, %v2485
        %v2487 = vpop.f32.mrb[0].mxu0
        %2488 = vmatprep.mubr.bf16.mxu0 0
        %2489 = vmatmul.mubr.bf16.gmra.mrb[0].mxu0 %v2271
        %v2490 = vpop.f32.mrb[0].mxu0
        %v2491 = vadd.f32 %v2294, %v2490
        %v2492 = vpop.f32.mrb[0].mxu0
        %v2493 = vpop.f32.mrb[0].mxu0
        %v2494 = vadd.f32 %v2294, %v2493
        %v2495 = vpop.f32.mrb[0].mxu0
        %2496 = vmatprep.mubr.bf16.mxu0 0
        %2497 = vmatmul.mubr.bf16.gmra.mrb[0].mxu0 %v2272
        %v2498 = vpop.f32.mrb[0].mxu0
        %v2499 = vadd.f32 %v2294, %v2498
        %v2500 = vpop.f32.mrb[0].mxu0
        %v2501 = vpop.f32.mrb[0].mxu0
        %v2502 = vadd.f32 %v2294, %v2501
        %v2503 = vpop.f32.mrb[0].mxu0
        %2504 = vdwg.mxu0
        %v2505 = vld [vmem:[%s371] sm:$0xf]
        %v2506 = vld [vmem:[%s371 + $0x4] sm:$0xf]
        %v2507 = vld [vmem:[%s371 + $0x8] sm:$0x1]
        %v2508 = vld [vmem:[%s371 + $0xc] sm:$0xf]
        %v2509 = vld [vmem:[%s371 + $0x10] sm:$0xf]
        %v2510 = vld [vmem:[%s371 + $0x14] sm:$0x1]
        %v2511 = vld [vmem:[%s371 + $0x18] sm:$0xf]
        %v2512 = vld [vmem:[%s371 + $0x1c] sm:$0xf]
        %v2513 = vld [vmem:[%s371 + $0x20] sm:$0x1]
        %v2514 = vld [vmem:[%s371 + $0x24] sm:$0xf]
        %v2515 = vld [vmem:[%s371 + $0x28] sm:$0xf]
        %v2516 = vld [vmem:[%s371 + $0x2c] sm:$0x1]
        %v2517 = vld [vmem:[%s371 + $0x30] sm:$0xf]
        %v2518 = vld [vmem:[%s371 + $0x34] sm:$0xf]
        %v2519 = vld [vmem:[%s371 + $0x38] sm:$0x1]
        %v2520 = vld [vmem:[%s371 + $0x3c] sm:$0xf]
        %v2521 = vld [vmem:[%s371 + $0x40] sm:$0xf]
        %v2522 = vld [vmem:[%s371 + $0x44] sm:$0x1]
        %v2523 = vld [vmem:[%s371 + $0x48] sm:$0xf]
        %v2524 = vld [vmem:[%s371 + $0x4c] sm:$0xf]
        %v2525 = vld [vmem:[%s371 + $0x50] sm:$0x1]
        %v2526 = vld [vmem:[%s371 + $0x54] sm:$0xf]
        %v2527 = vld [vmem:[%s371 + $0x58] sm:$0xf]
        %v2528 = vld [vmem:[%s371 + $0x5c] sm:$0x1]
        %v2529 = vld [vmem:[%s371 + $0x60] sm:$0xf]
        %v2530 = vld [vmem:[%s371 + $0x64] sm:$0xf]
        %v2531 = vld [vmem:[%s371 + $0x68] sm:$0x1]
        %v2532 = vld [vmem:[%s371 + $0x6c] sm:$0xf]
        %v2533 = vld [vmem:[%s371 + $0x70] sm:$0xf]
        %v2534 = vld [vmem:[%s371 + $0x74] sm:$0x1]
        %v2535 = vld [vmem:[%s371 + $0x78] sm:$0xf]
        %v2536 = vld [vmem:[%s371 + $0x7c] sm:$0xf]
        %v2537 = vld [vmem:[%s371 + $0x80] sm:$0x1]
        %v2538 = vld [vmem:[%s371 + $0x84] sm:$0xf]
        %v2539 = vld [vmem:[%s371 + $0x88] sm:$0xf]
        %v2540 = vld [vmem:[%s371 + $0x8c] sm:$0x1]
        %v2541 = vld [vmem:[%s371 + $0x90] sm:$0xf]
        %v2542 = vld [vmem:[%s371 + $0x94] sm:$0xf]
        %v2543 = vld [vmem:[%s371 + $0x98] sm:$0x1]
        %v2544 = vld [vmem:[%s371 + $0x9c] sm:$0xf]
        %v2545 = vld [vmem:[%s371 + $0xa0] sm:$0xf]
        %v2546 = vld [vmem:[%s371 + $0xa4] sm:$0x1]
        %v2547 = vld [vmem:[%s371 + $0xa8] sm:$0xf]
        %v2548 = vld [vmem:[%s371 + $0xac] sm:$0xf]
        %v2549 = vld [vmem:[%s371 + $0xb0] sm:$0x1]
        %v2550 = vld [vmem:[%s371 + $0xb4] sm:$0xf]
        %v2551 = vld [vmem:[%s371 + $0xb8] sm:$0xf]
        %v2552 = vld [vmem:[%s371 + $0xbc] sm:$0x1]
        %v2553 = vunpack.c.l.bf16 %v2505
        %v2554 = vunpack.c.l.bf16 %v2506
        %v2555 = vunpack.c.l.bf16 %v2507
        %v2556 = vunpack.c.l.bf16 %v2508
        %v2557 = vunpack.c.l.bf16 %v2509
        %v2558 = vunpack.c.l.bf16 %v2510
        %v2559 = vunpack.c.l.bf16 %v2511
        %v2560 = vunpack.c.l.bf16 %v2512
        %v2561 = vunpack.c.l.bf16 %v2513
        %v2562 = vunpack.c.l.bf16 %v2514
        %v2563 = vunpack.c.l.bf16 %v2515
        %v2564 = vunpack.c.l.bf16 %v2516
        %v2565 = vunpack.c.l.bf16 %v2517
        %v2566 = vunpack.c.l.bf16 %v2518
        %v2567 = vunpack.c.l.bf16 %v2519
        %v2568 = vunpack.c.l.bf16 %v2520
        %v2569 = vunpack.c.l.bf16 %v2521
        %v2570 = vunpack.c.l.bf16 %v2522
        %v2571 = vunpack.c.l.bf16 %v2523
        %v2572 = vunpack.c.l.bf16 %v2524
        %v2573 = vunpack.c.l.bf16 %v2525
        %v2574 = vunpack.c.l.bf16 %v2526
        %v2575 = vunpack.c.l.bf16 %v2527
        %v2576 = vunpack.c.l.bf16 %v2528
        %v2577 = vunpack.c.l.bf16 %v2529
        %v2578 = vunpack.c.l.bf16 %v2530
        %v2579 = vunpack.c.l.bf16 %v2531
        %v2580 = vunpack.c.l.bf16 %v2532
        %v2581 = vunpack.c.l.bf16 %v2533
        %v2582 = vunpack.c.l.bf16 %v2534
        %v2583 = vunpack.c.l.bf16 %v2535
        %v2584 = vunpack.c.l.bf16 %v2536
        %v2585 = vunpack.c.l.bf16 %v2537
        %v2586 = vunpack.c.l.bf16 %v2538
        %v2587 = vunpack.c.l.bf16 %v2539
        %v2588 = vunpack.c.l.bf16 %v2540
        %v2589 = vunpack.c.l.bf16 %v2541
        %v2590 = vunpack.c.l.bf16 %v2542
        %v2591 = vunpack.c.l.bf16 %v2543
        %v2592 = vunpack.c.l.bf16 %v2544
        %v2593 = vunpack.c.l.bf16 %v2545
        %v2594 = vunpack.c.l.bf16 %v2546
        %v2595 = vunpack.c.l.bf16 %v2547
        %v2596 = vunpack.c.l.bf16 %v2548
        %v2597 = vunpack.c.l.bf16 %v2549
        %v2598 = vunpack.c.l.bf16 %v2550
        %v2599 = vunpack.c.l.bf16 %v2551
        %v2600 = vunpack.c.l.bf16 %v2552
        %vm2649 = vcmask 1046528
        %v2650 = vrot.slane %v2553, 1
        %v2651 = vrot.slane %v2554, 1
        %v2652 = vsel %vm2649, %v2650, %v2651
        %v2653 = vrot.slane %v2555, 1
        %v2654 = vsel %vm2649, %v2651, %v2653
        %v2655 = vrot.slane %v2556, 1
        %v2656 = vrot.slane %v2557, 1
        %v2657 = vsel %vm2649, %v2655, %v2656
        %v2658 = vrot.slane %v2558, 1
        %v2659 = vsel %vm2649, %v2656, %v2658
        %v2660 = vrot.slane %v2559, 1
        %v2661 = vrot.slane %v2560, 1
        %v2662 = vsel %vm2649, %v2660, %v2661
        %v2663 = vrot.slane %v2561, 1
        %v2664 = vsel %vm2649, %v2661, %v2663
        %v2665 = vrot.slane %v2562, 1
        %v2666 = vrot.slane %v2563, 1
        %v2667 = vsel %vm2649, %v2665, %v2666
        %v2668 = vrot.slane %v2564, 1
        %v2669 = vsel %vm2649, %v2666, %v2668
        %v2670 = vrot.slane %v2565, 1
        %v2671 = vrot.slane %v2566, 1
        %v2672 = vsel %vm2649, %v2670, %v2671
        %v2673 = vrot.slane %v2567, 1
        %v2674 = vsel %vm2649, %v2671, %v2673
        %v2675 = vrot.slane %v2568, 1
        %v2676 = vrot.slane %v2569, 1
        %v2677 = vsel %vm2649, %v2675, %v2676
        %v2678 = vrot.slane %v2570, 1
        %v2679 = vsel %vm2649, %v2676, %v2678
        %v2680 = vrot.slane %v2571, 1
        %v2681 = vrot.slane %v2572, 1
        %v2682 = vsel %vm2649, %v2680, %v2681
        %v2683 = vrot.slane %v2573, 1
        %v2684 = vsel %vm2649, %v2681, %v2683
        %v2685 = vrot.slane %v2574, 1
        %v2686 = vrot.slane %v2575, 1
        %v2687 = vsel %vm2649, %v2685, %v2686
        %v2688 = vrot.slane %v2576, 1
        %v2689 = vsel %vm2649, %v2686, %v2688
        %v2690 = vrot.slane %v2577, 1
        %v2691 = vrot.slane %v2578, 1
        %v2692 = vsel %vm2649, %v2690, %v2691
        %v2693 = vrot.slane %v2579, 1
        %v2694 = vsel %vm2649, %v2691, %v2693
        %v2695 = vrot.slane %v2580, 1
        %v2696 = vrot.slane %v2581, 1
        %v2697 = vsel %vm2649, %v2695, %v2696
        %v2698 = vrot.slane %v2582, 1
        %v2699 = vsel %vm2649, %v2696, %v2698
        %v2700 = vrot.slane %v2583, 1
        %v2701 = vrot.slane %v2584, 1
        %v2702 = vsel %vm2649, %v2700, %v2701
        %v2703 = vrot.slane %v2585, 1
        %v2704 = vsel %vm2649, %v2701, %v2703
        %v2705 = vrot.slane %v2586, 1
        %v2706 = vrot.slane %v2587, 1
        %v2707 = vsel %vm2649, %v2705, %v2706
        %v2708 = vrot.slane %v2588, 1
        %v2709 = vsel %vm2649, %v2706, %v2708
        %v2710 = vrot.slane %v2589, 1
        %v2711 = vrot.slane %v2590, 1
        %v2712 = vsel %vm2649, %v2710, %v2711
        %v2713 = vrot.slane %v2591, 1
        %v2714 = vsel %vm2649, %v2711, %v2713
        %v2715 = vrot.slane %v2592, 1
        %v2716 = vrot.slane %v2593, 1
        %v2717 = vsel %vm2649, %v2715, %v2716
        %v2718 = vrot.slane %v2594, 1
        %v2719 = vsel %vm2649, %v2716, %v2718
        %v2720 = vrot.slane %v2595, 1
        %v2721 = vrot.slane %v2596, 1
        %v2722 = vsel %vm2649, %v2720, %v2721
        %v2723 = vrot.slane %v2597, 1
        %v2724 = vsel %vm2649, %v2721, %v2723
        %v2725 = vrot.slane %v2598, 1
        %v2726 = vrot.slane %v2599, 1
        %v2727 = vsel %vm2649, %v2725, %v2726
        %v2728 = vrot.slane %v2600, 1
        %v2729 = vsel %vm2649, %v2726, %v2728
        %v2762 = vadd.f32 %v2379, %v2652
        %v2763 = vadd.f32 %v2382, %v2654
        %v2764 = vadd.f32 %v2387, %v2657
        %v2765 = vadd.f32 %v2390, %v2659
        %v2766 = vadd.f32 %v2395, %v2662
        %v2767 = vadd.f32 %v2398, %v2664
        %v2768 = vadd.f32 %v2403, %v2667
        %v2769 = vadd.f32 %v2406, %v2669
        %v2770 = vadd.f32 %v2411, %v2672
        %v2771 = vadd.f32 %v2414, %v2674
        %v2772 = vadd.f32 %v2419, %v2677
        %v2773 = vadd.f32 %v2422, %v2679
        %v2774 = vadd.f32 %v2427, %v2682
        %v2775 = vadd.f32 %v2430, %v2684
        %v2776 = vadd.f32 %v2435, %v2687
        %v2777 = vadd.f32 %v2438, %v2689
        %v2778 = vadd.f32 %v2443, %v2692
        %v2779 = vadd.f32 %v2446, %v2694
        %v2780 = vadd.f32 %v2451, %v2697
        %v2781 = vadd.f32 %v2454, %v2699
        %v2782 = vadd.f32 %v2459, %v2702
        %v2783 = vadd.f32 %v2462, %v2704
        %v2784 = vadd.f32 %v2467, %v2707
        %v2785 = vadd.f32 %v2470, %v2709
        %v2786 = vadd.f32 %v2475, %v2712
        %v2787 = vadd.f32 %v2478, %v2714
        %v2788 = vadd.f32 %v2483, %v2717
        %v2789 = vadd.f32 %v2486, %v2719
        %v2790 = vadd.f32 %v2491, %v2722
        %v2791 = vadd.f32 %v2494, %v2724
        %v2792 = vadd.f32 %v2499, %v2727
        %v2793 = vadd.f32 %v2502, %v2729
        %2794 = vst [vmem:[%s429] sm:$0xff] %v2762
        %2795 = vst [vmem:[%s429 + $0x8] sm:$0xff] %v2763
        %2796 = vst [vmem:[%s429 + $0x10] sm:$0xff] %v2764
        %2797 = vst [vmem:[%s429 + $0x18] sm:$0xff] %v2765
        %2798 = vst [vmem:[%s429 + $0x20] sm:$0xff] %v2766
        %2799 = vst [vmem:[%s429 + $0x28] sm:$0xff] %v2767
        %2800 = vst [vmem:[%s429 + $0x30] sm:$0xff] %v2768
        %2801 = vst [vmem:[%s429 + $0x38] sm:$0xff] %v2769
        %2802 = vst [vmem:[%s429 + $0x40] sm:$0xff] %v2770
        %2803 = vst [vmem:[%s429 + $0x48] sm:$0xff] %v2771
        %2804 = vst [vmem:[%s429 + $0x50] sm:$0xff] %v2772
        %2805 = vst [vmem:[%s429 + $0x58] sm:$0xff] %v2773
        %2806 = vst [vmem:[%s429 + $0x60] sm:$0xff] %v2774
        %2807 = vst [vmem:[%s429 + $0x68] sm:$0xff] %v2775
        %2808 = vst [vmem:[%s429 + $0x70] sm:$0xff] %v2776
        %2809 = vst [vmem:[%s429 + $0x78] sm:$0xff] %v2777
        %2810 = vst [vmem:[%s429 + $0x80] sm:$0xff] %v2778
        %2811 = vst [vmem:[%s429 + $0x88] sm:$0xff] %v2779
        %2812 = vst [vmem:[%s429 + $0x90] sm:$0xff] %v2780
        %2813 = vst [vmem:[%s429 + $0x98] sm:$0xff] %v2781
        %2814 = vst [vmem:[%s429 + $0xa0] sm:$0xff] %v2782
        %2815 = vst [vmem:[%s429 + $0xa8] sm:$0xff] %v2783
        %2816 = vst [vmem:[%s429 + $0xb0] sm:$0xff] %v2784
        %2817 = vst [vmem:[%s429 + $0xb8] sm:$0xff] %v2785
        %2818 = vst [vmem:[%s429 + $0xc0] sm:$0xff] %v2786
        %2819 = vst [vmem:[%s429 + $0xc8] sm:$0xff] %v2787
        %2820 = vst [vmem:[%s429 + $0xd0] sm:$0xff] %v2788
        %2821 = vst [vmem:[%s429 + $0xd8] sm:$0xff] %v2789
        %2822 = vst [vmem:[%s429 + $0xe0] sm:$0xff] %v2790
        %2823 = vst [vmem:[%s429 + $0xe8] sm:$0xff] %v2791
        %2824 = vst [vmem:[%s429 + $0xf0] sm:$0xff] %v2792
        %2825 = vst [vmem:[%s429 + $0xf8] sm:$0xff] %v2793
        %s2826 = sand.u32 %s233, 1
        %s2827 = scalar_lea.sflag [#allocation6], %s2826
        %s2828 = sand.u32 %s233, 1
        %s2829 = smul.addr %s2828, 256
        %s2830 = scalar_lea.vmem [#allocation13], %s2829
        // Predicated region
        $region77: #{tpu_custom_call.1} parent=51 // pred_check
          %p2831 = pneg %p243
        $region78: #{tpu_custom_call.1} parent=51 // pred_check_branch
          %2833 = sbr.rel (%p2831) target = $region80
        $region79: #{tpu_custom_call.1} parent=51 // pred_region
          %s2835 = ssub.s32 4096, 4096
          %2836 = vsyncadd %s2827, %s2835
          %s2837 = smul.addr %s34, 32
          %s2838 = smul.addr %s33, 32
          %s2839 = sadd.s32 %s2837, %s2838
          %s2840 = smul.addr %s2839, 128
          %s2841 = scalar_lea.hbm %s8, %s2840
          %s2842 = sshll.u32 %s2830, 4
          %s2843 = int_to_ptr.vmem [resolvable:$true] %s2842
          %2848 = dma.vmem_to_hbm [thread:$0]  %s2843, 4096, %s2841, %s2827, 128, 128, 8
        $region80: #{tpu_custom_call.1} parent=51 // pred_fallthru
          _
      $region52: #{tpu_custom_call.1} parent=5 // pred_fallthru
        _
      %p2849 = scmp.le.s32.totalorder 2, %s24
      // Predicated region
      $region81: #{tpu_custom_call.1} parent=5 // pred_check
        %p2850 = pneg %p2849
      $region82: #{tpu_custom_call.1} parent=5 // pred_check_branch
        %2852 = sbr.rel (%p2850) target = $region84
      $region83: #{tpu_custom_call.1} parent=5 // pred_region
        %s2853 = ssub.s32 %s24, 2
        // Predicated region
        $region85: #{tpu_custom_call.1} parent=83 // pred_check
          %p2854 = pneg %p249
        $region86: #{tpu_custom_call.1} parent=83 // pred_check_branch
          %2856 = sbr.rel (%p2854) target = $region88
        $region87: #{tpu_custom_call.1} parent=83 // pred_region
          %s2857 = sand.u32 %s234, 1
          %s2858 = scalar_lea.sflag [#allocation6], %s2857
          %s2859 = sand.u32 %s234, 1
          %s2860 = smul.addr %s2859, 256
          %s2861 = scalar_lea.vmem [#allocation13], %s2860
          %2862 = dma.done %s2858, 4096
        $region88: #{tpu_custom_call.1} parent=83 // pred_fallthru
          _
      $region84: #{tpu_custom_call.1} parent=5 // pred_fallthru
        _
    $region6: #{tpu_custom_call.1} parent=1 // loop_footer
      %s28 = sadd.s32 1, %s24
    $region7: #{tpu_custom_call.1} parent=1 // loop_footer_branch
      %23 = sbr.rel target = $region3
    $region8: #{tpu_custom_call.1} parent=1 // loop_exit
      _
    %2863 = vsyncpa [#allocation5], 1
    %s2864 = scalar_lea.sflag [#allocation5], 1
    %2865 = vsyncpa %s2864, 1
    %2866 = vsyncpa [#allocation8], 1
    %s2867 = scalar_lea.sflag [#allocation8], 1
    %2868 = vsyncpa %s2867, 1
    %2869 = vsyncpa [#allocation11], 1
    %2870 = vsyncpa [#allocation6], 1
    %s2871 = scalar_lea.sflag [#allocation6], 1
    %2872 = vsyncpa %s2871, 1

</llo_original>
